<compile_context>
chip_gen: v5e
topology: v5e:2x2
jax: 0.10.0
libtpu: 0.0.40
codegen_flags: <defaults>
</compile_context>

<pallas_src>
import jax
import jax.numpy as jnp
from jax import lax
from jax.experimental import pallas as pl
from jax.experimental.pallas import tpu as pltpu


# --------------------------------------------------------------------------- #
# Kernel 1: the recurrence (LSTM cell + spatial attention), single invocation.
# --------------------------------------------------------------------------- #
def _decoder_recurrent_kernel(gate_x_ref,   # (T, B, 4D) f32  precomputed x-gates (+bias)
                              wvv_ref,      # (B, R, K)  f32  W_v V + b_v
                              v_ref,        # (B, R, D)  f32  spatial features
                              h0_ref,       # (B, D)     f32
                              m0_ref,       # (B, D)     f32
                              len_ref,      # (B, 1)     int32 sequence lengths
                              whh_ref,      # (D, 4D)    bf16
                              wg_ref,       # (D, K)     bf16
                              bg_ref,       # (1, K)     f32
                              wh_ref,       # (1, K)     f32
                              bh_ref,       # (1, 1)     f32
                              out_ref):     # (T, B, D)  f32  (c_t + h_t) * mask_t
    T = gate_x_ref.shape[0]
    d = h0_ref.shape[-1]

    # Hoist all loop-invariant loads out of the recurrence.
    V = v_ref[...]
    wvv = wvv_ref[...]
    whh = whh_ref[...]
    wg = wg_ref[...]
    bg = bg_ref[...]
    wh = wh_ref[...]
    bh = bh_ref[...]
    lengths = len_ref[...]                                   # (B, 1) int32

    def step(t, carry):
        h_prev, m_prev = carry

        # LSTMCell: only the recurrent matmul is left inside the loop.
        gates = gate_x_ref[t] + jnp.dot(h_prev.astype(jnp.bfloat16), whh,
                                        preferred_element_type=jnp.float32)
        i_g = jax.nn.sigmoid(gates[:, 0 * d:1 * d])
        f_g = jax.nn.sigmoid(gates[:, 1 * d:2 * d])
        g_g = jnp.tanh(gates[:, 2 * d:3 * d])
        o_g = jax.nn.sigmoid(gates[:, 3 * d:4 * d])
        m_new = f_g * m_prev + i_g * g_g
        h_new = o_g * jnp.tanh(m_new)

        # Sequences with length <= t keep their state frozen (batch shrinking).
        active = lengths > t                                 # (B, 1) bool
        h_cur = jnp.where(active, h_new, h_prev)
        m_cur = jnp.where(active, m_new, m_prev)

        # Spatial attention (keys W_v V + b_v were precomputed).
        g_h = jnp.dot(h_cur.astype(jnp.bfloat16), wg,
                      preferred_element_type=jnp.float32) + bg            # (B, K)
        att = jnp.tanh(wvv + g_h[:, None, :])                             # (B, R, K)
        z = jnp.sum(att * wh[None, :, :], axis=-1) + bh                   # (B, R)
        z = z - jnp.max(z, axis=-1, keepdims=True)
        e = jnp.exp(z)
        alpha = e * pl.reciprocal(jnp.sum(e, axis=-1, keepdims=True), approx=True)
        c = jnp.sum(alpha[:, :, None] * V, axis=1)                        # (B, D)

        out_ref[t] = (c + h_cur) * active.astype(jnp.float32)
        return h_cur, m_cur

    lax.fori_loop(0, T, step, (h0_ref[...], m0_ref[...]), unroll=(T <= 16))


# --------------------------------------------------------------------------- #
# Kernel 2: batched vocab projection, tiled over the (lane-dense) vocab axis.
# --------------------------------------------------------------------------- #
def _vocab_proj_kernel(x_ref,      # (M, D)  bf16   (c+h)*mask, M = B*T
                       w_ref,      # (D, tn) bf16
                       b_ref,      # (1, tn) f32
                       mask_ref,   # (M, 1)  f32
                       o_ref):     # (M, tn) f32
    o_ref[...] = (jnp.dot(x_ref[...], w_ref[...],
                          preferred_element_type=jnp.float32)
                  + mask_ref[...] * b_ref[...])


def _pick_vocab_tile(vocab):
    for tn in (1024, 512, 256, 128):
        if vocab % tn == 0:
            return tn
    return vocab


# --------------------------------------------------------------------------- #
# Forward pass
# --------------------------------------------------------------------------- #
def decoder_forward(spatial, global_, captions, lengths, params):
    """spatial (B,R,D), global_ (B,D), captions (B,T) int32, lengths python list."""
    B, R, D = spatial.shape
    VOCAB, E = params['embedding'].shape
    T = int(max(lengths))
    lengths_arr = jnp.asarray(lengths, dtype=jnp.int32)

    # ---------- hoisted, time-invariant / fully-batched precompute (XLA glue) ----------
    emb = params['embedding'][captions]                              # (B, T, E)
    emb_tbe = jnp.transpose(emb, (1, 0, 2))                          # (T, B, E)
    # One well-shaped (T*B, E) @ (E, 4D) matmul instead of T tiny M=B matmuls.
    gate_w = jnp.dot(emb_tbe.reshape(T * B, E).astype(jnp.bfloat16),
                     params['wih_w'].astype(jnp.bfloat16),
                     preferred_element_type=jnp.float32).reshape(T, B, 4 * D)
    gate_v = (jnp.dot(global_, params['wih_v'],
                      preferred_element_type=jnp.float32)
              + params['b_lstm'])                                    # (B, 4D), invariant
    gate_x = gate_w + gate_v[None, :, :]                             # (T, B, 4D)

    # Attention keys W_v V + b_v (invariant — was recomputed T times before).
    wvv = (jnp.einsum('brd,dk->brk', spatial, params['wv'],
                      preferred_element_type=jnp.float32)
           + params['bv'][None, :, :])                               # (B, R, K)

    # Initial state h0 = f_init_h(vg), m0 = f_init_m(vg).
    h0 = jnp.dot(global_, params['wi_h'],
                 preferred_element_type=jnp.float32) + params['bi_h']
    m0 = jnp.dot(global_, params['wi_m'],
                 preferred_element_type=jnp.float32) + params['bi_m']

    lengths_col = lengths_arr[:, None]                               # (B, 1)

    # ---------- recurrence: single pallas_call, in-kernel loop over T ----------
    hc_tbd = pl.pallas_call(
        _decoder_recurrent_kernel,
        out_shape=jax.ShapeDtypeStruct((T, B, D), jnp.float32),
    )(gate_x, wvv, spatial, h0, m0, lengths_col,
      params['whh'].astype(jnp.bfloat16),
      params['wg'].astype(jnp.bfloat16),
      params['bg'], params['wh'], params['bh'])

    # ---------- batched vocab projection (one big MXU matmul, vocab-tiled) ----------
    # Small (T,B,D) transpose so the final logits come out directly in (B,T,VOCAB)
    # layout with zero extra passes over the large logits tensor.
    hc_btd = jnp.transpose(hc_tbd, (1, 0, 2)).reshape(B * T, D)
    maskf = (jnp.arange(T, dtype=jnp.int32)[None, :]
             < lengths_arr[:, None]).astype(jnp.float32).reshape(B * T, 1)

    M = B * T
    tn = _pick_vocab_tile(VOCAB)
    logits_flat = pl.pallas_call(
        _vocab_proj_kernel,
        out_shape=jax.ShapeDtypeStruct((M, VOCAB), jnp.float32),
        grid_spec=pltpu.PrefetchScalarGridSpec(
            num_scalar_prefetch=0,
            grid=(VOCAB // tn,),
            in_specs=[
                pl.BlockSpec((M, D), lambda j: (0, 0)),
                pl.BlockSpec((D, tn), lambda j: (0, j)),
                pl.BlockSpec((1, tn), lambda j: (0, j)),
                pl.BlockSpec((M, 1), lambda j: (0, 0)),
            ],
            out_specs=pl.BlockSpec((M, tn), lambda j: (0, j)),
        ),
        compiler_params=pltpu.CompilerParams(
            dimension_semantics=("parallel",)),
    )(hc_btd.astype(jnp.bfloat16), params['wp'].astype(jnp.bfloat16),
      params['bp'], maskf)

    return logits_flat.reshape(B, T, VOCAB)                          # (B, T, VOCAB)


# --------------------------------------------------------------------------- #
# Parameter init (mirrors the PyTorch module's parameters)
# --------------------------------------------------------------------------- #
def init_params(key, vocab_size, d, embed_size, k):
    ks = jax.random.split(key, 16)
    s = 0.05

    def rn(kk, shape):
        return (s * jax.random.normal(kk, shape)).astype(jnp.float32)

    return {
        # nn.Embedding(vocab, E)
        'embedding': rn(ks[0], (vocab_size, embed_size)),
        # f_init_h / f_init_m : Linear(d, d)  (stored transposed: (in, out))
        'wi_h': rn(ks[1], (d, d)), 'bi_h': rn(ks[2], (1, d)),
        'wi_m': rn(ks[3], (d, d)), 'bi_m': rn(ks[4], (1, d)),
        # LSTMCell(E + d, d): weight_ih (4d, E+d) split & transposed, weight_hh transposed
        'wih_w': rn(ks[5], (embed_size, 4 * d)),
        'wih_v': rn(ks[6], (d, 4 * d)),
        'whh': rn(ks[7], (d, 4 * d)),
        'b_lstm': rn(ks[8], (1, 4 * d)),                 # b_ih + b_hh folded together
        # SpatialAttention(k, d): W_v Linear(d,k), W_g Linear(d,k), w_h Linear(k,1)
        'wv': rn(ks[9], (d, k)), 'bv': rn(ks[10], (1, k)),
        'wg': rn(ks[11], (d, k)), 'bg': rn(ks[12], (1, k)),
        'wh': rn(ks[13], (1, k)), 'bh': rn(ks[14], (1, 1)),
        # W_p : Linear(d, vocab)  (stored transposed)
        'wp': rn(ks[15], (d, vocab_size)),
        'bp': jnp.zeros((1, vocab_size), jnp.float32),
    }


if __name__ == "__main__":
    B, R, D = 8, 8, 128          # batch, spatial regions (k in the paper), hidden d
    E, K = 256, 128              # embed_size, attention hidden size
    VOCAB = 512
    lengths = [8, 7, 6, 5, 4, 3, 2, 1]   # sorted descending, as the reference assumes
    T = max(lengths)

    key = jax.random.PRNGKey(0)
    k_param, k_sp, k_gl, k_cap = jax.random.split(key, 4)

    params = init_params(k_param, VOCAB, D, E, K)
    spatial = jax.random.normal(k_sp, (B, R, D), dtype=jnp.float32)
    global_ = jax.random.normal(k_gl, (B, D), dtype=jnp.float32)
    captions = jax.random.randint(k_cap, (B, T), 0, VOCAB, dtype=jnp.int32)

    logits = decoder_forward(spatial, global_, captions, lengths, params)
    logits = jax.block_until_ready(logits)

    assert logits.shape == (B, T, VOCAB)
    # positions past each sequence length must stay exactly zero (matches torch.zeros init)
    len_arr = jnp.asarray(lengths)
    pad_mask = jnp.arange(T)[None, :] >= len_arr[:, None]
    assert float(jnp.max(jnp.abs(jnp.where(pad_mask[:, :, None], logits, 0.0)))) == 0.0

    print("KERNEL_OK")
</pallas_src>

<mosaic_0001>
module attributes {stable_mosaic.version = 11 : i64} {
  func.func @_decoder_recurrent_kernel(%arg0: memref<8x8x512xf32, #tpu.memory_space<vmem>>, %arg1: memref<8x8x128xf32, #tpu.memory_space<vmem>>, %arg2: memref<8x8x128xf32, #tpu.memory_space<vmem>>, %arg3: memref<8x128xf32, #tpu.memory_space<vmem>>, %arg4: memref<8x128xf32, #tpu.memory_space<vmem>>, %arg5: memref<8x1xi32, #tpu.memory_space<vmem>>, %arg6: memref<128x512xbf16, #tpu.memory_space<vmem>>, %arg7: memref<128x128xbf16, #tpu.memory_space<vmem>>, %arg8: memref<1x128xf32, #tpu.memory_space<vmem>>, %arg9: memref<1x128xf32, #tpu.memory_space<vmem>>, %arg10: memref<1x1xf32, #tpu.memory_space<vmem>>, %arg11: memref<8x8x128xf32, #tpu.memory_space<vmem>>) attributes {dimension_semantics = [], scalar_prefetch = 0 : i64, scratch_operands = 0 : i64, tpu.core_type = #tpu.core_type<tc>} {
    %c0 = arith.constant 0 : index
    %c0_0 = arith.constant 0 : index
    %c0_1 = arith.constant 0 : index
    %0 = vector.load %arg2[%c0, %c0_0, %c0_1] : memref<8x8x128xf32, #tpu.memory_space<vmem>>, vector<8x8x128xf32>
    %c0_2 = arith.constant 0 : index
    %c0_3 = arith.constant 0 : index
    %c0_4 = arith.constant 0 : index
    %1 = vector.load %arg1[%c0_2, %c0_3, %c0_4] : memref<8x8x128xf32, #tpu.memory_space<vmem>>, vector<8x8x128xf32>
    %c0_5 = arith.constant 0 : index
    %c0_6 = arith.constant 0 : index
    %2 = vector.load %arg6[%c0_5, %c0_6] : memref<128x512xbf16, #tpu.memory_space<vmem>>, vector<128x512xbf16>
    %c0_7 = arith.constant 0 : index
    %c0_8 = arith.constant 0 : index
    %3 = vector.load %arg7[%c0_7, %c0_8] : memref<128x128xbf16, #tpu.memory_space<vmem>>, vector<128x128xbf16>
    %c0_9 = arith.constant 0 : index
    %c0_10 = arith.constant 0 : index
    %4 = vector.load %arg8[%c0_9, %c0_10] : memref<1x128xf32, #tpu.memory_space<vmem>>, vector<1x128xf32>
    %c0_11 = arith.constant 0 : index
    %c0_12 = arith.constant 0 : index
    %5 = vector.load %arg9[%c0_11, %c0_12] : memref<1x128xf32, #tpu.memory_space<vmem>>, vector<1x128xf32>
    %c0_13 = arith.constant 0 : index
    %c0_14 = arith.constant 0 : index
    %6 = vector.load %arg10[%c0_13, %c0_14] : memref<1x1xf32, #tpu.memory_space<vmem>>, vector<1x1xf32>
    %c0_15 = arith.constant 0 : index
    %c0_16 = arith.constant 0 : index
    %7 = vector.load %arg5[%c0_15, %c0_16] : memref<8x1xi32, #tpu.memory_space<vmem>>, vector<8x1xi32>
    %c0_17 = arith.constant 0 : index
    %c0_18 = arith.constant 0 : index
    %8 = vector.load %arg3[%c0_17, %c0_18] : memref<8x128xf32, #tpu.memory_space<vmem>>, vector<8x128xf32>
    %c0_19 = arith.constant 0 : index
    %c0_20 = arith.constant 0 : index
    %9 = vector.load %arg4[%c0_19, %c0_20] : memref<8x128xf32, #tpu.memory_space<vmem>>, vector<8x128xf32>
    %c0_i32 = arith.constant 0 : i32
    %10 = arith.index_cast %c0_i32 : i32 to index
    %c0_21 = arith.constant 0 : index
    %c0_22 = arith.constant 0 : index
    %11 = vector.load %arg0[%10, %c0_21, %c0_22] : memref<8x8x512xf32, #tpu.memory_space<vmem>>, vector<1x8x512xf32>
    %12 = vector.shape_cast %11 : vector<1x8x512xf32> to vector<8x512xf32>
    %13 = arith.truncf %8 : vector<8x128xf32> to vector<8x128xbf16>
    %cst = arith.constant dense<0.000000e+00> : vector<8x512xf32>
    %14 = tpu.matmul %13, %2, %cst {dimension_numbers = #tpu.dot_dimension_numbers<[1], [0], [0], [1], [0, 0, 1, 1], [], []>} : vector<8x128xbf16>, vector<128x512xbf16>, vector<8x512xf32> -> vector<8x512xf32>
    %15 = arith.addf %12, %14 : vector<8x512xf32>
    %16 = vector.extract_strided_slice %15 {offsets = [0, 0], sizes = [8, 128], strides = [1, 1]} : vector<8x512xf32> to vector<8x128xf32>
    %17 = arith.negf %16 : vector<8x128xf32>
    %18 = math.exp %17 : vector<8x128xf32>
    %cst_23 = arith.constant 1.000000e+00 : f32
    %19 = vector.broadcast %cst_23 : f32 to vector<8x128xf32>
    %20 = arith.addf %19, %18 : vector<8x128xf32>
    %21 = arith.divf %19, %20 : vector<8x128xf32>
    %22 = vector.extract_strided_slice %15 {offsets = [0, 128], sizes = [8, 128], strides = [1, 1]} : vector<8x512xf32> to vector<8x128xf32>
    %23 = arith.negf %22 : vector<8x128xf32>
    %24 = math.exp %23 : vector<8x128xf32>
    %cst_24 = arith.constant 1.000000e+00 : f32
    %25 = vector.broadcast %cst_24 : f32 to vector<8x128xf32>
    %26 = arith.addf %25, %24 : vector<8x128xf32>
    %27 = arith.divf %25, %26 : vector<8x128xf32>
    %28 = vector.extract_strided_slice %15 {offsets = [0, 256], sizes = [8, 128], strides = [1, 1]} : vector<8x512xf32> to vector<8x128xf32>
    %29 = math.tanh %28 : vector<8x128xf32>
    %30 = vector.extract_strided_slice %15 {offsets = [0, 384], sizes = [8, 128], strides = [1, 1]} : vector<8x512xf32> to vector<8x128xf32>
    %31 = arith.negf %30 : vector<8x128xf32>
    %32 = math.exp %31 : vector<8x128xf32>
    %cst_25 = arith.constant 1.000000e+00 : f32
    %33 = vector.broadcast %cst_25 : f32 to vector<8x128xf32>
    %34 = arith.addf %33, %32 : vector<8x128xf32>
    %35 = arith.divf %33, %34 : vector<8x128xf32>
    %36 = arith.mulf %27, %9 : vector<8x128xf32>
    %37 = arith.mulf %21, %29 : vector<8x128xf32>
    %38 = arith.addf %36, %37 : vector<8x128xf32>
    %39 = math.tanh %38 : vector<8x128xf32>
    %40 = arith.mulf %35, %39 : vector<8x128xf32>
    %41 = vector.broadcast %c0_i32 : i32 to vector<8x1xi32>
    %42 = arith.cmpi sgt, %7, %41 : vector<8x1xi32>
    %43 = vector.shape_cast %42 : vector<8x1xi1> to vector<8x1xi1>
    %44 = vector.broadcast %43 : vector<8x1xi1> to vector<8x128xi1>
    %45 = arith.select %44, %40, %8 : vector<8x128xi1>, vector<8x128xf32>
    %46 = vector.shape_cast %42 : vector<8x1xi1> to vector<8x1xi1>
    %47 = vector.broadcast %46 : vector<8x1xi1> to vector<8x128xi1>
    %48 = arith.select %47, %38, %9 : vector<8x128xi1>, vector<8x128xf32>
    %49 = arith.truncf %45 : vector<8x128xf32> to vector<8x128xbf16>
    %cst_26 = arith.constant dense<0.000000e+00> : vector<8x128xf32>
    %50 = tpu.matmul %49, %3, %cst_26 {dimension_numbers = #tpu.dot_dimension_numbers<[1], [0], [0], [1], [0, 0, 1, 1], [], []>} : vector<8x128xbf16>, vector<128x128xbf16>, vector<8x128xf32> -> vector<8x128xf32>
    %51 = vector.broadcast %4 : vector<1x128xf32> to vector<8x128xf32>
    %52 = arith.addf %50, %51 : vector<8x128xf32>
    %53 = vector.shape_cast %52 : vector<8x128xf32> to vector<8x1x128xf32>
    %54 = vector.broadcast %53 : vector<8x1x128xf32> to vector<8x8x128xf32>
    %55 = arith.addf %1, %54 : vector<8x8x128xf32>
    %56 = math.tanh %55 : vector<8x8x128xf32>
    %57 = vector.shape_cast %5 : vector<1x128xf32> to vector<1x1x128xf32>
    %58 = vector.broadcast %57 : vector<1x1x128xf32> to vector<8x8x128xf32>
    %59 = arith.mulf %56, %58 : vector<8x8x128xf32>
    %cst_27 = arith.constant dense<0.000000e+00> : vector<8x8xf32>
    %60 = vector.multi_reduction <add>, %59, %cst_27 [2] : vector<8x8x128xf32> to vector<8x8xf32>
    %61 = vector.broadcast %6 : vector<1x1xf32> to vector<8x8xf32>
    %62 = arith.addf %60, %61 : vector<8x8xf32>
    %cst_28 = arith.constant dense<0xFF800000> : vector<8xf32>
    %63 = vector.multi_reduction <maximumf>, %62, %cst_28 [1] : vector<8x8xf32> to vector<8xf32>
    %64 = vector.shape_cast %63 : vector<8xf32> to vector<8x1xf32>
    %65 = vector.broadcast %64 : vector<8x1xf32> to vector<8x8xf32>
    %66 = arith.subf %62, %65 : vector<8x8xf32>
    %67 = math.exp %66 : vector<8x8xf32>
    %cst_29 = arith.constant dense<0.000000e+00> : vector<8xf32>
    %68 = vector.multi_reduction <add>, %67, %cst_29 [1] : vector<8x8xf32> to vector<8xf32>
    %69 = vector.shape_cast %68 : vector<8xf32> to vector<8x1xf32>
    %70 = tpu.reciprocal %69 {approx = true} : vector<8x1xf32> -> vector<8x1xf32>
    %71 = vector.broadcast %70 : vector<8x1xf32> to vector<8x8xf32>
    %72 = arith.mulf %67, %71 : vector<8x8xf32>
    %73 = vector.shape_cast %72 : vector<8x8xf32> to vector<8x8x1xf32>
    %74 = vector.broadcast %73 : vector<8x8x1xf32> to vector<8x8x128xf32>
    %75 = arith.mulf %74, %0 : vector<8x8x128xf32>
    %cst_30 = arith.constant dense<0.000000e+00> : vector<8x128xf32>
    %76 = vector.multi_reduction <add>, %75, %cst_30 [1] : vector<8x8x128xf32> to vector<8x128xf32>
    %77 = arith.addf %76, %45 : vector<8x128xf32>
    %78 = arith.extui %42 : vector<8x1xi1> to vector<8x1xi32>
    %79 = arith.sitofp %78 : vector<8x1xi32> to vector<8x1xf32>
    %80 = vector.broadcast %79 : vector<8x1xf32> to vector<8x128xf32>
    %81 = arith.mulf %77, %80 : vector<8x128xf32>
    %82 = arith.index_cast %c0_i32 : i32 to index
    %c0_31 = arith.constant 0 : index
    %c0_32 = arith.constant 0 : index
    %83 = vector.load %arg11[%82, %c0_31, %c0_32] : memref<8x8x128xf32, #tpu.memory_space<vmem>>, vector<1x8x128xf32>
    %84 = vector.shape_cast %83 : vector<1x8x128xf32> to vector<8x128xf32>
    %85 = vector.shape_cast %81 : vector<8x128xf32> to vector<1x8x128xf32>
    tpu.vector_store %arg11[%82, %c0_31, %c0_32], %85 {strides = array<i32>} : memref<8x8x128xf32, #tpu.memory_space<vmem>>, vector<1x8x128xf32>,
    %c1_i32 = arith.constant 1 : i32
    %86 = arith.index_cast %c1_i32 : i32 to index
    %c0_33 = arith.constant 0 : index
    %c0_34 = arith.constant 0 : index
    %87 = vector.load %arg0[%86, %c0_33, %c0_34] : memref<8x8x512xf32, #tpu.memory_space<vmem>>, vector<1x8x512xf32>
    %88 = vector.shape_cast %87 : vector<1x8x512xf32> to vector<8x512xf32>
    %89 = arith.truncf %45 : vector<8x128xf32> to vector<8x128xbf16>
    %cst_35 = arith.constant dense<0.000000e+00> : vector<8x512xf32>
    %90 = tpu.matmul %89, %2, %cst_35 {dimension_numbers = #tpu.dot_dimension_numbers<[1], [0], [0], [1], [0, 0, 1, 1], [], []>} : vector<8x128xbf16>, vector<128x512xbf16>, vector<8x512xf32> -> vector<8x512xf32>
    %91 = arith.addf %88, %90 : vector<8x512xf32>
    %92 = vector.extract_strided_slice %91 {offsets = [0, 0], sizes = [8, 128], strides = [1, 1]} : vector<8x512xf32> to vector<8x128xf32>
    %93 = arith.negf %92 : vector<8x128xf32>
    %94 = math.exp %93 : vector<8x128xf32>
    %cst_36 = arith.constant 1.000000e+00 : f32
    %95 = vector.broadcast %cst_36 : f32 to vector<8x128xf32>
    %96 = arith.addf %95, %94 : vector<8x128xf32>
    %97 = arith.divf %95, %96 : vector<8x128xf32>
    %98 = vector.extract_strided_slice %91 {offsets = [0, 128], sizes = [8, 128], strides = [1, 1]} : vector<8x512xf32> to vector<8x128xf32>
    %99 = arith.negf %98 : vector<8x128xf32>
    %100 = math.exp %99 : vector<8x128xf32>
    %cst_37 = arith.constant 1.000000e+00 : f32
    %101 = vector.broadcast %cst_37 : f32 to vector<8x128xf32>
    %102 = arith.addf %101, %100 : vector<8x128xf32>
    %103 = arith.divf %101, %102 : vector<8x128xf32>
    %104 = vector.extract_strided_slice %91 {offsets = [0, 256], sizes = [8, 128], strides = [1, 1]} : vector<8x512xf32> to vector<8x128xf32>
    %105 = math.tanh %104 : vector<8x128xf32>
    %106 = vector.extract_strided_slice %91 {offsets = [0, 384], sizes = [8, 128], strides = [1, 1]} : vector<8x512xf32> to vector<8x128xf32>
    %107 = arith.negf %106 : vector<8x128xf32>
    %108 = math.exp %107 : vector<8x128xf32>
    %cst_38 = arith.constant 1.000000e+00 : f32
    %109 = vector.broadcast %cst_38 : f32 to vector<8x128xf32>
    %110 = arith.addf %109, %108 : vector<8x128xf32>
    %111 = arith.divf %109, %110 : vector<8x128xf32>
    %112 = arith.mulf %103, %48 : vector<8x128xf32>
    %113 = arith.mulf %97, %105 : vector<8x128xf32>
    %114 = arith.addf %112, %113 : vector<8x128xf32>
    %115 = math.tanh %114 : vector<8x128xf32>
    %116 = arith.mulf %111, %115 : vector<8x128xf32>
    %117 = vector.broadcast %c1_i32 : i32 to vector<8x1xi32>
    %118 = arith.cmpi sgt, %7, %117 : vector<8x1xi32>
    %119 = vector.shape_cast %118 : vector<8x1xi1> to vector<8x1xi1>
    %120 = vector.broadcast %119 : vector<8x1xi1> to vector<8x128xi1>
    %121 = arith.select %120, %116, %45 : vector<8x128xi1>, vector<8x128xf32>
    %122 = vector.shape_cast %118 : vector<8x1xi1> to vector<8x1xi1>
    %123 = vector.broadcast %122 : vector<8x1xi1> to vector<8x128xi1>
    %124 = arith.select %123, %114, %48 : vector<8x128xi1>, vector<8x128xf32>
    %125 = arith.truncf %121 : vector<8x128xf32> to vector<8x128xbf16>
    %cst_39 = arith.constant dense<0.000000e+00> : vector<8x128xf32>
    %126 = tpu.matmul %125, %3, %cst_39 {dimension_numbers = #tpu.dot_dimension_numbers<[1], [0], [0], [1], [0, 0, 1, 1], [], []>} : vector<8x128xbf16>, vector<128x128xbf16>, vector<8x128xf32> -> vector<8x128xf32>
    %127 = vector.broadcast %4 : vector<1x128xf32> to vector<8x128xf32>
    %128 = arith.addf %126, %127 : vector<8x128xf32>
    %129 = vector.shape_cast %128 : vector<8x128xf32> to vector<8x1x128xf32>
    %130 = vector.broadcast %129 : vector<8x1x128xf32> to vector<8x8x128xf32>
    %131 = arith.addf %1, %130 : vector<8x8x128xf32>
    %132 = math.tanh %131 : vector<8x8x128xf32>
    %133 = vector.shape_cast %5 : vector<1x128xf32> to vector<1x1x128xf32>
    %134 = vector.broadcast %133 : vector<1x1x128xf32> to vector<8x8x128xf32>
    %135 = arith.mulf %132, %134 : vector<8x8x128xf32>
    %cst_40 = arith.constant dense<0.000000e+00> : vector<8x8xf32>
    %136 = vector.multi_reduction <add>, %135, %cst_40 [2] : vector<8x8x128xf32> to vector<8x8xf32>
    %137 = vector.broadcast %6 : vector<1x1xf32> to vector<8x8xf32>
    %138 = arith.addf %136, %137 : vector<8x8xf32>
    %cst_41 = arith.constant dense<0xFF800000> : vector<8xf32>
    %139 = vector.multi_reduction <maximumf>, %138, %cst_41 [1] : vector<8x8xf32> to vector<8xf32>
    %140 = vector.shape_cast %139 : vector<8xf32> to vector<8x1xf32>
    %141 = vector.broadcast %140 : vector<8x1xf32> to vector<8x8xf32>
    %142 = arith.subf %138, %141 : vector<8x8xf32>
    %143 = math.exp %142 : vector<8x8xf32>
    %cst_42 = arith.constant dense<0.000000e+00> : vector<8xf32>
    %144 = vector.multi_reduction <add>, %143, %cst_42 [1] : vector<8x8xf32> to vector<8xf32>
    %145 = vector.shape_cast %144 : vector<8xf32> to vector<8x1xf32>
    %146 = tpu.reciprocal %145 {approx = true} : vector<8x1xf32> -> vector<8x1xf32>
    %147 = vector.broadcast %146 : vector<8x1xf32> to vector<8x8xf32>
    %148 = arith.mulf %143, %147 : vector<8x8xf32>
    %149 = vector.shape_cast %148 : vector<8x8xf32> to vector<8x8x1xf32>
    %150 = vector.broadcast %149 : vector<8x8x1xf32> to vector<8x8x128xf32>
    %151 = arith.mulf %150, %0 : vector<8x8x128xf32>
    %cst_43 = arith.constant dense<0.000000e+00> : vector<8x128xf32>
    %152 = vector.multi_reduction <add>, %151, %cst_43 [1] : vector<8x8x128xf32> to vector<8x128xf32>
    %153 = arith.addf %152, %121 : vector<8x128xf32>
    %154 = arith.extui %118 : vector<8x1xi1> to vector<8x1xi32>
    %155 = arith.sitofp %154 : vector<8x1xi32> to vector<8x1xf32>
    %156 = vector.broadcast %155 : vector<8x1xf32> to vector<8x128xf32>
    %157 = arith.mulf %153, %156 : vector<8x128xf32>
    %158 = arith.index_cast %c1_i32 : i32 to index
    %c0_44 = arith.constant 0 : index
    %c0_45 = arith.constant 0 : index
    %159 = vector.load %arg11[%158, %c0_44, %c0_45] : memref<8x8x128xf32, #tpu.memory_space<vmem>>, vector<1x8x128xf32>
    %160 = vector.shape_cast %159 : vector<1x8x128xf32> to vector<8x128xf32>
    %161 = vector.shape_cast %157 : vector<8x128xf32> to vector<1x8x128xf32>
    tpu.vector_store %arg11[%158, %c0_44, %c0_45], %161 {strides = array<i32>} : memref<8x8x128xf32, #tpu.memory_space<vmem>>, vector<1x8x128xf32>,
    %c2_i32 = arith.constant 2 : i32
    %162 = arith.index_cast %c2_i32 : i32 to index
    %c0_46 = arith.constant 0 : index
    %c0_47 = arith.constant 0 : index
    %163 = vector.load %arg0[%162, %c0_46, %c0_47] : memref<8x8x512xf32, #tpu.memory_space<vmem>>, vector<1x8x512xf32>
    %164 = vector.shape_cast %163 : vector<1x8x512xf32> to vector<8x512xf32>
    %165 = arith.truncf %121 : vector<8x128xf32> to vector<8x128xbf16>
    %cst_48 = arith.constant dense<0.000000e+00> : vector<8x512xf32>
    %166 = tpu.matmul %165, %2, %cst_48 {dimension_numbers = #tpu.dot_dimension_numbers<[1], [0], [0], [1], [0, 0, 1, 1], [], []>} : vector<8x128xbf16>, vector<128x512xbf16>, vector<8x512xf32> -> vector<8x512xf32>
    %167 = arith.addf %164, %166 : vector<8x512xf32>
    %168 = vector.extract_strided_slice %167 {offsets = [0, 0], sizes = [8, 128], strides = [1, 1]} : vector<8x512xf32> to vector<8x128xf32>
    %169 = arith.negf %168 : vector<8x128xf32>
    %170 = math.exp %169 : vector<8x128xf32>
    %cst_49 = arith.constant 1.000000e+00 : f32
    %171 = vector.broadcast %cst_49 : f32 to vector<8x128xf32>
    %172 = arith.addf %171, %170 : vector<8x128xf32>
    %173 = arith.divf %171, %172 : vector<8x128xf32>
    %174 = vector.extract_strided_slice %167 {offsets = [0, 128], sizes = [8, 128], strides = [1, 1]} : vector<8x512xf32> to vector<8x128xf32>
    %175 = arith.negf %174 : vector<8x128xf32>
    %176 = math.exp %175 : vector<8x128xf32>
    %cst_50 = arith.constant 1.000000e+00 : f32
    %177 = vector.broadcast %cst_50 : f32 to vector<8x128xf32>
    %178 = arith.addf %177, %176 : vector<8x128xf32>
    %179 = arith.divf %177, %178 : vector<8x128xf32>
    %180 = vector.extract_strided_slice %167 {offsets = [0, 256], sizes = [8, 128], strides = [1, 1]} : vector<8x512xf32> to vector<8x128xf32>
    %181 = math.tanh %180 : vector<8x128xf32>
    %182 = vector.extract_strided_slice %167 {offsets = [0, 384], sizes = [8, 128], strides = [1, 1]} : vector<8x512xf32> to vector<8x128xf32>
    %183 = arith.negf %182 : vector<8x128xf32>
    %184 = math.exp %183 : vector<8x128xf32>
    %cst_51 = arith.constant 1.000000e+00 : f32
    %185 = vector.broadcast %cst_51 : f32 to vector<8x128xf32>
    %186 = arith.addf %185, %184 : vector<8x128xf32>
    %187 = arith.divf %185, %186 : vector<8x128xf32>
    %188 = arith.mulf %179, %124 : vector<8x128xf32>
    %189 = arith.mulf %173, %181 : vector<8x128xf32>
    %190 = arith.addf %188, %189 : vector<8x128xf32>
    %191 = math.tanh %190 : vector<8x128xf32>
    %192 = arith.mulf %187, %191 : vector<8x128xf32>
    %193 = vector.broadcast %c2_i32 : i32 to vector<8x1xi32>
    %194 = arith.cmpi sgt, %7, %193 : vector<8x1xi32>
    %195 = vector.shape_cast %194 : vector<8x1xi1> to vector<8x1xi1>
    %196 = vector.broadcast %195 : vector<8x1xi1> to vector<8x128xi1>
    %197 = arith.select %196, %192, %121 : vector<8x128xi1>, vector<8x128xf32>
    %198 = vector.shape_cast %194 : vector<8x1xi1> to vector<8x1xi1>
    %199 = vector.broadcast %198 : vector<8x1xi1> to vector<8x128xi1>
    %200 = arith.select %199, %190, %124 : vector<8x128xi1>, vector<8x128xf32>
    %201 = arith.truncf %197 : vector<8x128xf32> to vector<8x128xbf16>
    %cst_52 = arith.constant dense<0.000000e+00> : vector<8x128xf32>
    %202 = tpu.matmul %201, %3, %cst_52 {dimension_numbers = #tpu.dot_dimension_numbers<[1], [0], [0], [1], [0, 0, 1, 1], [], []>} : vector<8x128xbf16>, vector<128x128xbf16>, vector<8x128xf32> -> vector<8x128xf32>
    %203 = vector.broadcast %4 : vector<1x128xf32> to vector<8x128xf32>
    %204 = arith.addf %202, %203 : vector<8x128xf32>
    %205 = vector.shape_cast %204 : vector<8x128xf32> to vector<8x1x128xf32>
    %206 = vector.broadcast %205 : vector<8x1x128xf32> to vector<8x8x128xf32>
    %207 = arith.addf %1, %206 : vector<8x8x128xf32>
    %208 = math.tanh %207 : vector<8x8x128xf32>
    %209 = vector.shape_cast %5 : vector<1x128xf32> to vector<1x1x128xf32>
    %210 = vector.broadcast %209 : vector<1x1x128xf32> to vector<8x8x128xf32>
    %211 = arith.mulf %208, %210 : vector<8x8x128xf32>
    %cst_53 = arith.constant dense<0.000000e+00> : vector<8x8xf32>
    %212 = vector.multi_reduction <add>, %211, %cst_53 [2] : vector<8x8x128xf32> to vector<8x8xf32>
    %213 = vector.broadcast %6 : vector<1x1xf32> to vector<8x8xf32>
    %214 = arith.addf %212, %213 : vector<8x8xf32>
    %cst_54 = arith.constant dense<0xFF800000> : vector<8xf32>
    %215 = vector.multi_reduction <maximumf>, %214, %cst_54 [1] : vector<8x8xf32> to vector<8xf32>
    %216 = vector.shape_cast %215 : vector<8xf32> to vector<8x1xf32>
    %217 = vector.broadcast %216 : vector<8x1xf32> to vector<8x8xf32>
    %218 = arith.subf %214, %217 : vector<8x8xf32>
    %219 = math.exp %218 : vector<8x8xf32>
    %cst_55 = arith.constant dense<0.000000e+00> : vector<8xf32>
    %220 = vector.multi_reduction <add>, %219, %cst_55 [1] : vector<8x8xf32> to vector<8xf32>
    %221 = vector.shape_cast %220 : vector<8xf32> to vector<8x1xf32>
    %222 = tpu.reciprocal %221 {approx = true} : vector<8x1xf32> -> vector<8x1xf32>
    %223 = vector.broadcast %222 : vector<8x1xf32> to vector<8x8xf32>
    %224 = arith.mulf %219, %223 : vector<8x8xf32>
    %225 = vector.shape_cast %224 : vector<8x8xf32> to vector<8x8x1xf32>
    %226 = vector.broadcast %225 : vector<8x8x1xf32> to vector<8x8x128xf32>
    %227 = arith.mulf %226, %0 : vector<8x8x128xf32>
    %cst_56 = arith.constant dense<0.000000e+00> : vector<8x128xf32>
    %228 = vector.multi_reduction <add>, %227, %cst_56 [1] : vector<8x8x128xf32> to vector<8x128xf32>
    %229 = arith.addf %228, %197 : vector<8x128xf32>
    %230 = arith.extui %194 : vector<8x1xi1> to vector<8x1xi32>
    %231 = arith.sitofp %230 : vector<8x1xi32> to vector<8x1xf32>
    %232 = vector.broadcast %231 : vector<8x1xf32> to vector<8x128xf32>
    %233 = arith.mulf %229, %232 : vector<8x128xf32>
    %234 = arith.index_cast %c2_i32 : i32 to index
    %c0_57 = arith.constant 0 : index
    %c0_58 = arith.constant 0 : index
    %235 = vector.load %arg11[%234, %c0_57, %c0_58] : memref<8x8x128xf32, #tpu.memory_space<vmem>>, vector<1x8x128xf32>
    %236 = vector.shape_cast %235 : vector<1x8x128xf32> to vector<8x128xf32>
    %237 = vector.shape_cast %233 : vector<8x128xf32> to vector<1x8x128xf32>
    tpu.vector_store %arg11[%234, %c0_57, %c0_58], %237 {strides = array<i32>} : memref<8x8x128xf32, #tpu.memory_space<vmem>>, vector<1x8x128xf32>,
    %c3_i32 = arith.constant 3 : i32
    %238 = arith.index_cast %c3_i32 : i32 to index
    %c0_59 = arith.constant 0 : index
    %c0_60 = arith.constant 0 : index
    %239 = vector.load %arg0[%238, %c0_59, %c0_60] : memref<8x8x512xf32, #tpu.memory_space<vmem>>, vector<1x8x512xf32>
    %240 = vector.shape_cast %239 : vector<1x8x512xf32> to vector<8x512xf32>
    %241 = arith.truncf %197 : vector<8x128xf32> to vector<8x128xbf16>
    %cst_61 = arith.constant dense<0.000000e+00> : vector<8x512xf32>
    %242 = tpu.matmul %241, %2, %cst_61 {dimension_numbers = #tpu.dot_dimension_numbers<[1], [0], [0], [1], [0, 0, 1, 1], [], []>} : vector<8x128xbf16>, vector<128x512xbf16>, vector<8x512xf32> -> vector<8x512xf32>
    %243 = arith.addf %240, %242 : vector<8x512xf32>
    %244 = vector.extract_strided_slice %243 {offsets = [0, 0], sizes = [8, 128], strides = [1, 1]} : vector<8x512xf32> to vector<8x128xf32>
    %245 = arith.negf %244 : vector<8x128xf32>
    %246 = math.exp %245 : vector<8x128xf32>
    %cst_62 = arith.constant 1.000000e+00 : f32
    %247 = vector.broadcast %cst_62 : f32 to vector<8x128xf32>
    %248 = arith.addf %247, %246 : vector<8x128xf32>
    %249 = arith.divf %247, %248 : vector<8x128xf32>
    %250 = vector.extract_strided_slice %243 {offsets = [0, 128], sizes = [8, 128], strides = [1, 1]} : vector<8x512xf32> to vector<8x128xf32>
    %251 = arith.negf %250 : vector<8x128xf32>
    %252 = math.exp %251 : vector<8x128xf32>
    %cst_63 = arith.constant 1.000000e+00 : f32
    %253 = vector.broadcast %cst_63 : f32 to vector<8x128xf32>
    %254 = arith.addf %253, %252 : vector<8x128xf32>
    %255 = arith.divf %253, %254 : vector<8x128xf32>
    %256 = vector.extract_strided_slice %243 {offsets = [0, 256], sizes = [8, 128], strides = [1, 1]} : vector<8x512xf32> to vector<8x128xf32>
    %257 = math.tanh %256 : vector<8x128xf32>
    %258 = vector.extract_strided_slice %243 {offsets = [0, 384], sizes = [8, 128], strides = [1, 1]} : vector<8x512xf32> to vector<8x128xf32>
    %259 = arith.negf %258 : vector<8x128xf32>
    %260 = math.exp %259 : vector<8x128xf32>
    %cst_64 = arith.constant 1.000000e+00 : f32
    %261 = vector.broadcast %cst_64 : f32 to vector<8x128xf32>
    %262 = arith.addf %261, %260 : vector<8x128xf32>
    %263 = arith.divf %261, %262 : vector<8x128xf32>
    %264 = arith.mulf %255, %200 : vector<8x128xf32>
    %265 = arith.mulf %249, %257 : vector<8x128xf32>
    %266 = arith.addf %264, %265 : vector<8x128xf32>
    %267 = math.tanh %266 : vector<8x128xf32>
    %268 = arith.mulf %263, %267 : vector<8x128xf32>
    %269 = vector.broadcast %c3_i32 : i32 to vector<8x1xi32>
    %270 = arith.cmpi sgt, %7, %269 : vector<8x1xi32>
    %271 = vector.shape_cast %270 : vector<8x1xi1> to vector<8x1xi1>
    %272 = vector.broadcast %271 : vector<8x1xi1> to vector<8x128xi1>
    %273 = arith.select %272, %268, %197 : vector<8x128xi1>, vector<8x128xf32>
    %274 = vector.shape_cast %270 : vector<8x1xi1> to vector<8x1xi1>
    %275 = vector.broadcast %274 : vector<8x1xi1> to vector<8x128xi1>
    %276 = arith.select %275, %266, %200 : vector<8x128xi1>, vector<8x128xf32>
    %277 = arith.truncf %273 : vector<8x128xf32> to vector<8x128xbf16>
    %cst_65 = arith.constant dense<0.000000e+00> : vector<8x128xf32>
    %278 = tpu.matmul %277, %3, %cst_65 {dimension_numbers = #tpu.dot_dimension_numbers<[1], [0], [0], [1], [0, 0, 1, 1], [], []>} : vector<8x128xbf16>, vector<128x128xbf16>, vector<8x128xf32> -> vector<8x128xf32>
    %279 = vector.broadcast %4 : vector<1x128xf32> to vector<8x128xf32>
    %280 = arith.addf %278, %279 : vector<8x128xf32>
    %281 = vector.shape_cast %280 : vector<8x128xf32> to vector<8x1x128xf32>
    %282 = vector.broadcast %281 : vector<8x1x128xf32> to vector<8x8x128xf32>
    %283 = arith.addf %1, %282 : vector<8x8x128xf32>
    %284 = math.tanh %283 : vector<8x8x128xf32>
    %285 = vector.shape_cast %5 : vector<1x128xf32> to vector<1x1x128xf32>
    %286 = vector.broadcast %285 : vector<1x1x128xf32> to vector<8x8x128xf32>
    %287 = arith.mulf %284, %286 : vector<8x8x128xf32>
    %cst_66 = arith.constant dense<0.000000e+00> : vector<8x8xf32>
    %288 = vector.multi_reduction <add>, %287, %cst_66 [2] : vector<8x8x128xf32> to vector<8x8xf32>
    %289 = vector.broadcast %6 : vector<1x1xf32> to vector<8x8xf32>
    %290 = arith.addf %288, %289 : vector<8x8xf32>
    %cst_67 = arith.constant dense<0xFF800000> : vector<8xf32>
    %291 = vector.multi_reduction <maximumf>, %290, %cst_67 [1] : vector<8x8xf32> to vector<8xf32>
    %292 = vector.shape_cast %291 : vector<8xf32> to vector<8x1xf32>
    %293 = vector.broadcast %292 : vector<8x1xf32> to vector<8x8xf32>
    %294 = arith.subf %290, %293 : vector<8x8xf32>
    %295 = math.exp %294 : vector<8x8xf32>
    %cst_68 = arith.constant dense<0.000000e+00> : vector<8xf32>
    %296 = vector.multi_reduction <add>, %295, %cst_68 [1] : vector<8x8xf32> to vector<8xf32>
    %297 = vector.shape_cast %296 : vector<8xf32> to vector<8x1xf32>
    %298 = tpu.reciprocal %297 {approx = true} : vector<8x1xf32> -> vector<8x1xf32>
    %299 = vector.broadcast %298 : vector<8x1xf32> to vector<8x8xf32>
    %300 = arith.mulf %295, %299 : vector<8x8xf32>
    %301 = vector.shape_cast %300 : vector<8x8xf32> to vector<8x8x1xf32>
    %302 = vector.broadcast %301 : vector<8x8x1xf32> to vector<8x8x128xf32>
    %303 = arith.mulf %302, %0 : vector<8x8x128xf32>
    %cst_69 = arith.constant dense<0.000000e+00> : vector<8x128xf32>
    %304 = vector.multi_reduction <add>, %303, %cst_69 [1] : vector<8x8x128xf32> to vector<8x128xf32>
    %305 = arith.addf %304, %273 : vector<8x128xf32>
    %306 = arith.extui %270 : vector<8x1xi1> to vector<8x1xi32>
    %307 = arith.sitofp %306 : vector<8x1xi32> to vector<8x1xf32>
    %308 = vector.broadcast %307 : vector<8x1xf32> to vector<8x128xf32>
    %309 = arith.mulf %305, %308 : vector<8x128xf32>
    %310 = arith.index_cast %c3_i32 : i32 to index
    %c0_70 = arith.constant 0 : index
    %c0_71 = arith.constant 0 : index
    %311 = vector.load %arg11[%310, %c0_70, %c0_71] : memref<8x8x128xf32, #tpu.memory_space<vmem>>, vector<1x8x128xf32>
    %312 = vector.shape_cast %311 : vector<1x8x128xf32> to vector<8x128xf32>
    %313 = vector.shape_cast %309 : vector<8x128xf32> to vector<1x8x128xf32>
    tpu.vector_store %arg11[%310, %c0_70, %c0_71], %313 {strides = array<i32>} : memref<8x8x128xf32, #tpu.memory_space<vmem>>, vector<1x8x128xf32>,
    %c4_i32 = arith.constant 4 : i32
    %314 = arith.index_cast %c4_i32 : i32 to index
    %c0_72 = arith.constant 0 : index
    %c0_73 = arith.constant 0 : index
    %315 = vector.load %arg0[%314, %c0_72, %c0_73] : memref<8x8x512xf32, #tpu.memory_space<vmem>>, vector<1x8x512xf32>
    %316 = vector.shape_cast %315 : vector<1x8x512xf32> to vector<8x512xf32>
    %317 = arith.truncf %273 : vector<8x128xf32> to vector<8x128xbf16>
    %cst_74 = arith.constant dense<0.000000e+00> : vector<8x512xf32>
    %318 = tpu.matmul %317, %2, %cst_74 {dimension_numbers = #tpu.dot_dimension_numbers<[1], [0], [0], [1], [0, 0, 1, 1], [], []>} : vector<8x128xbf16>, vector<128x512xbf16>, vector<8x512xf32> -> vector<8x512xf32>
    %319 = arith.addf %316, %318 : vector<8x512xf32>
    %320 = vector.extract_strided_slice %319 {offsets = [0, 0], sizes = [8, 128], strides = [1, 1]} : vector<8x512xf32> to vector<8x128xf32>
    %321 = arith.negf %320 : vector<8x128xf32>
    %322 = math.exp %321 : vector<8x128xf32>
    %cst_75 = arith.constant 1.000000e+00 : f32
    %323 = vector.broadcast %cst_75 : f32 to vector<8x128xf32>
    %324 = arith.addf %323, %322 : vector<8x128xf32>
    %325 = arith.divf %323, %324 : vector<8x128xf32>
    %326 = vector.extract_strided_slice %319 {offsets = [0, 128], sizes = [8, 128], strides = [1, 1]} : vector<8x512xf32> to vector<8x128xf32>
    %327 = arith.negf %326 : vector<8x128xf32>
    %328 = math.exp %327 : vector<8x128xf32>
    %cst_76 = arith.constant 1.000000e+00 : f32
    %329 = vector.broadcast %cst_76 : f32 to vector<8x128xf32>
    %330 = arith.addf %329, %328 : vector<8x128xf32>
    %331 = arith.divf %329, %330 : vector<8x128xf32>
    %332 = vector.extract_strided_slice %319 {offsets = [0, 256], sizes = [8, 128], strides = [1, 1]} : vector<8x512xf32> to vector<8x128xf32>
    %333 = math.tanh %332 : vector<8x128xf32>
    %334 = vector.extract_strided_slice %319 {offsets = [0, 384], sizes = [8, 128], strides = [1, 1]} : vector<8x512xf32> to vector<8x128xf32>
    %335 = arith.negf %334 : vector<8x128xf32>
    %336 = math.exp %335 : vector<8x128xf32>
    %cst_77 = arith.constant 1.000000e+00 : f32
    %337 = vector.broadcast %cst_77 : f32 to vector<8x128xf32>
    %338 = arith.addf %337, %336 : vector<8x128xf32>
    %339 = arith.divf %337, %338 : vector<8x128xf32>
    %340 = arith.mulf %331, %276 : vector<8x128xf32>
    %341 = arith.mulf %325, %333 : vector<8x128xf32>
    %342 = arith.addf %340, %341 : vector<8x128xf32>
    %343 = math.tanh %342 : vector<8x128xf32>
    %344 = arith.mulf %339, %343 : vector<8x128xf32>
    %345 = vector.broadcast %c4_i32 : i32 to vector<8x1xi32>
    %346 = arith.cmpi sgt, %7, %345 : vector<8x1xi32>
    %347 = vector.shape_cast %346 : vector<8x1xi1> to vector<8x1xi1>
    %348 = vector.broadcast %347 : vector<8x1xi1> to vector<8x128xi1>
    %349 = arith.select %348, %344, %273 : vector<8x128xi1>, vector<8x128xf32>
    %350 = vector.shape_cast %346 : vector<8x1xi1> to vector<8x1xi1>
    %351 = vector.broadcast %350 : vector<8x1xi1> to vector<8x128xi1>
    %352 = arith.select %351, %342, %276 : vector<8x128xi1>, vector<8x128xf32>
    %353 = arith.truncf %349 : vector<8x128xf32> to vector<8x128xbf16>
    %cst_78 = arith.constant dense<0.000000e+00> : vector<8x128xf32>
    %354 = tpu.matmul %353, %3, %cst_78 {dimension_numbers = #tpu.dot_dimension_numbers<[1], [0], [0], [1], [0, 0, 1, 1], [], []>} : vector<8x128xbf16>, vector<128x128xbf16>, vector<8x128xf32> -> vector<8x128xf32>
    %355 = vector.broadcast %4 : vector<1x128xf32> to vector<8x128xf32>
    %356 = arith.addf %354, %355 : vector<8x128xf32>
    %357 = vector.shape_cast %356 : vector<8x128xf32> to vector<8x1x128xf32>
    %358 = vector.broadcast %357 : vector<8x1x128xf32> to vector<8x8x128xf32>
    %359 = arith.addf %1, %358 : vector<8x8x128xf32>
    %360 = math.tanh %359 : vector<8x8x128xf32>
    %361 = vector.shape_cast %5 : vector<1x128xf32> to vector<1x1x128xf32>
    %362 = vector.broadcast %361 : vector<1x1x128xf32> to vector<8x8x128xf32>
    %363 = arith.mulf %360, %362 : vector<8x8x128xf32>
    %cst_79 = arith.constant dense<0.000000e+00> : vector<8x8xf32>
    %364 = vector.multi_reduction <add>, %363, %cst_79 [2] : vector<8x8x128xf32> to vector<8x8xf32>
    %365 = vector.broadcast %6 : vector<1x1xf32> to vector<8x8xf32>
    %366 = arith.addf %364, %365 : vector<8x8xf32>
    %cst_80 = arith.constant dense<0xFF800000> : vector<8xf32>
    %367 = vector.multi_reduction <maximumf>, %366, %cst_80 [1] : vector<8x8xf32> to vector<8xf32>
    %368 = vector.shape_cast %367 : vector<8xf32> to vector<8x1xf32>
    %369 = vector.broadcast %368 : vector<8x1xf32> to vector<8x8xf32>
    %370 = arith.subf %366, %369 : vector<8x8xf32>
    %371 = math.exp %370 : vector<8x8xf32>
    %cst_81 = arith.constant dense<0.000000e+00> : vector<8xf32>
    %372 = vector.multi_reduction <add>, %371, %cst_81 [1] : vector<8x8xf32> to vector<8xf32>
    %373 = vector.shape_cast %372 : vector<8xf32> to vector<8x1xf32>
    %374 = tpu.reciprocal %373 {approx = true} : vector<8x1xf32> -> vector<8x1xf32>
    %375 = vector.broadcast %374 : vector<8x1xf32> to vector<8x8xf32>
    %376 = arith.mulf %371, %375 : vector<8x8xf32>
    %377 = vector.shape_cast %376 : vector<8x8xf32> to vector<8x8x1xf32>
    %378 = vector.broadcast %377 : vector<8x8x1xf32> to vector<8x8x128xf32>
    %379 = arith.mulf %378, %0 : vector<8x8x128xf32>
    %cst_82 = arith.constant dense<0.000000e+00> : vector<8x128xf32>
    %380 = vector.multi_reduction <add>, %379, %cst_82 [1] : vector<8x8x128xf32> to vector<8x128xf32>
    %381 = arith.addf %380, %349 : vector<8x128xf32>
    %382 = arith.extui %346 : vector<8x1xi1> to vector<8x1xi32>
    %383 = arith.sitofp %382 : vector<8x1xi32> to vector<8x1xf32>
    %384 = vector.broadcast %383 : vector<8x1xf32> to vector<8x128xf32>
    %385 = arith.mulf %381, %384 : vector<8x128xf32>
    %386 = arith.index_cast %c4_i32 : i32 to index
    %c0_83 = arith.constant 0 : index
    %c0_84 = arith.constant 0 : index
    %387 = vector.load %arg11[%386, %c0_83, %c0_84] : memref<8x8x128xf32, #tpu.memory_space<vmem>>, vector<1x8x128xf32>
    %388 = vector.shape_cast %387 : vector<1x8x128xf32> to vector<8x128xf32>
    %389 = vector.shape_cast %385 : vector<8x128xf32> to vector<1x8x128xf32>
    tpu.vector_store %arg11[%386, %c0_83, %c0_84], %389 {strides = array<i32>} : memref<8x8x128xf32, #tpu.memory_space<vmem>>, vector<1x8x128xf32>,
    %c5_i32 = arith.constant 5 : i32
    %390 = arith.index_cast %c5_i32 : i32 to index
    %c0_85 = arith.constant 0 : index
    %c0_86 = arith.constant 0 : index
    %391 = vector.load %arg0[%390, %c0_85, %c0_86] : memref<8x8x512xf32, #tpu.memory_space<vmem>>, vector<1x8x512xf32>
    %392 = vector.shape_cast %391 : vector<1x8x512xf32> to vector<8x512xf32>
    %393 = arith.truncf %349 : vector<8x128xf32> to vector<8x128xbf16>
    %cst_87 = arith.constant dense<0.000000e+00> : vector<8x512xf32>
    %394 = tpu.matmul %393, %2, %cst_87 {dimension_numbers = #tpu.dot_dimension_numbers<[1], [0], [0], [1], [0, 0, 1, 1], [], []>} : vector<8x128xbf16>, vector<128x512xbf16>, vector<8x512xf32> -> vector<8x512xf32>
    %395 = arith.addf %392, %394 : vector<8x512xf32>
    %396 = vector.extract_strided_slice %395 {offsets = [0, 0], sizes = [8, 128], strides = [1, 1]} : vector<8x512xf32> to vector<8x128xf32>
    %397 = arith.negf %396 : vector<8x128xf32>
    %398 = math.exp %397 : vector<8x128xf32>
    %cst_88 = arith.constant 1.000000e+00 : f32
    %399 = vector.broadcast %cst_88 : f32 to vector<8x128xf32>
    %400 = arith.addf %399, %398 : vector<8x128xf32>
    %401 = arith.divf %399, %400 : vector<8x128xf32>
    %402 = vector.extract_strided_slice %395 {offsets = [0, 128], sizes = [8, 128], strides = [1, 1]} : vector<8x512xf32> to vector<8x128xf32>
    %403 = arith.negf %402 : vector<8x128xf32>
    %404 = math.exp %403 : vector<8x128xf32>
    %cst_89 = arith.constant 1.000000e+00 : f32
    %405 = vector.broadcast %cst_89 : f32 to vector<8x128xf32>
    %406 = arith.addf %405, %404 : vector<8x128xf32>
    %407 = arith.divf %405, %406 : vector<8x128xf32>
    %408 = vector.extract_strided_slice %395 {offsets = [0, 256], sizes = [8, 128], strides = [1, 1]} : vector<8x512xf32> to vector<8x128xf32>
    %409 = math.tanh %408 : vector<8x128xf32>
    %410 = vector.extract_strided_slice %395 {offsets = [0, 384], sizes = [8, 128], strides = [1, 1]} : vector<8x512xf32> to vector<8x128xf32>
    %411 = arith.negf %410 : vector<8x128xf32>
    %412 = math.exp %411 : vector<8x128xf32>
    %cst_90 = arith.constant 1.000000e+00 : f32
    %413 = vector.broadcast %cst_90 : f32 to vector<8x128xf32>
    %414 = arith.addf %413, %412 : vector<8x128xf32>
    %415 = arith.divf %413, %414 : vector<8x128xf32>
    %416 = arith.mulf %407, %352 : vector<8x128xf32>
    %417 = arith.mulf %401, %409 : vector<8x128xf32>
    %418 = arith.addf %416, %417 : vector<8x128xf32>
    %419 = math.tanh %418 : vector<8x128xf32>
    %420 = arith.mulf %415, %419 : vector<8x128xf32>
    %421 = vector.broadcast %c5_i32 : i32 to vector<8x1xi32>
    %422 = arith.cmpi sgt, %7, %421 : vector<8x1xi32>
    %423 = vector.shape_cast %422 : vector<8x1xi1> to vector<8x1xi1>
    %424 = vector.broadcast %423 : vector<8x1xi1> to vector<8x128xi1>
    %425 = arith.select %424, %420, %349 : vector<8x128xi1>, vector<8x128xf32>
    %426 = vector.shape_cast %422 : vector<8x1xi1> to vector<8x1xi1>
    %427 = vector.broadcast %426 : vector<8x1xi1> to vector<8x128xi1>
    %428 = arith.select %427, %418, %352 : vector<8x128xi1>, vector<8x128xf32>
    %429 = arith.truncf %425 : vector<8x128xf32> to vector<8x128xbf16>
    %cst_91 = arith.constant dense<0.000000e+00> : vector<8x128xf32>
    %430 = tpu.matmul %429, %3, %cst_91 {dimension_numbers = #tpu.dot_dimension_numbers<[1], [0], [0], [1], [0, 0, 1, 1], [], []>} : vector<8x128xbf16>, vector<128x128xbf16>, vector<8x128xf32> -> vector<8x128xf32>
    %431 = vector.broadcast %4 : vector<1x128xf32> to vector<8x128xf32>
    %432 = arith.addf %430, %431 : vector<8x128xf32>
    %433 = vector.shape_cast %432 : vector<8x128xf32> to vector<8x1x128xf32>
    %434 = vector.broadcast %433 : vector<8x1x128xf32> to vector<8x8x128xf32>
    %435 = arith.addf %1, %434 : vector<8x8x128xf32>
    %436 = math.tanh %435 : vector<8x8x128xf32>
    %437 = vector.shape_cast %5 : vector<1x128xf32> to vector<1x1x128xf32>
    %438 = vector.broadcast %437 : vector<1x1x128xf32> to vector<8x8x128xf32>
    %439 = arith.mulf %436, %438 : vector<8x8x128xf32>
    %cst_92 = arith.constant dense<0.000000e+00> : vector<8x8xf32>
    %440 = vector.multi_reduction <add>, %439, %cst_92 [2] : vector<8x8x128xf32> to vector<8x8xf32>
    %441 = vector.broadcast %6 : vector<1x1xf32> to vector<8x8xf32>
    %442 = arith.addf %440, %441 : vector<8x8xf32>
    %cst_93 = arith.constant dense<0xFF800000> : vector<8xf32>
    %443 = vector.multi_reduction <maximumf>, %442, %cst_93 [1] : vector<8x8xf32> to vector<8xf32>
    %444 = vector.shape_cast %443 : vector<8xf32> to vector<8x1xf32>
    %445 = vector.broadcast %444 : vector<8x1xf32> to vector<8x8xf32>
    %446 = arith.subf %442, %445 : vector<8x8xf32>
    %447 = math.exp %446 : vector<8x8xf32>
    %cst_94 = arith.constant dense<0.000000e+00> : vector<8xf32>
    %448 = vector.multi_reduction <add>, %447, %cst_94 [1] : vector<8x8xf32> to vector<8xf32>
    %449 = vector.shape_cast %448 : vector<8xf32> to vector<8x1xf32>
    %450 = tpu.reciprocal %449 {approx = true} : vector<8x1xf32> -> vector<8x1xf32>
    %451 = vector.broadcast %450 : vector<8x1xf32> to vector<8x8xf32>
    %452 = arith.mulf %447, %451 : vector<8x8xf32>
    %453 = vector.shape_cast %452 : vector<8x8xf32> to vector<8x8x1xf32>
    %454 = vector.broadcast %453 : vector<8x8x1xf32> to vector<8x8x128xf32>
    %455 = arith.mulf %454, %0 : vector<8x8x128xf32>
    %cst_95 = arith.constant dense<0.000000e+00> : vector<8x128xf32>
    %456 = vector.multi_reduction <add>, %455, %cst_95 [1] : vector<8x8x128xf32> to vector<8x128xf32>
    %457 = arith.addf %456, %425 : vector<8x128xf32>
    %458 = arith.extui %422 : vector<8x1xi1> to vector<8x1xi32>
    %459 = arith.sitofp %458 : vector<8x1xi32> to vector<8x1xf32>
    %460 = vector.broadcast %459 : vector<8x1xf32> to vector<8x128xf32>
    %461 = arith.mulf %457, %460 : vector<8x128xf32>
    %462 = arith.index_cast %c5_i32 : i32 to index
    %c0_96 = arith.constant 0 : index
    %c0_97 = arith.constant 0 : index
    %463 = vector.load %arg11[%462, %c0_96, %c0_97] : memref<8x8x128xf32, #tpu.memory_space<vmem>>, vector<1x8x128xf32>
    %464 = vector.shape_cast %463 : vector<1x8x128xf32> to vector<8x128xf32>
    %465 = vector.shape_cast %461 : vector<8x128xf32> to vector<1x8x128xf32>
    tpu.vector_store %arg11[%462, %c0_96, %c0_97], %465 {strides = array<i32>} : memref<8x8x128xf32, #tpu.memory_space<vmem>>, vector<1x8x128xf32>,
    %c6_i32 = arith.constant 6 : i32
    %466 = arith.index_cast %c6_i32 : i32 to index
    %c0_98 = arith.constant 0 : index
    %c0_99 = arith.constant 0 : index
    %467 = vector.load %arg0[%466, %c0_98, %c0_99] : memref<8x8x512xf32, #tpu.memory_space<vmem>>, vector<1x8x512xf32>
    %468 = vector.shape_cast %467 : vector<1x8x512xf32> to vector<8x512xf32>
    %469 = arith.truncf %425 : vector<8x128xf32> to vector<8x128xbf16>
    %cst_100 = arith.constant dense<0.000000e+00> : vector<8x512xf32>
    %470 = tpu.matmul %469, %2, %cst_100 {dimension_numbers = #tpu.dot_dimension_numbers<[1], [0], [0], [1], [0, 0, 1, 1], [], []>} : vector<8x128xbf16>, vector<128x512xbf16>, vector<8x512xf32> -> vector<8x512xf32>
    %471 = arith.addf %468, %470 : vector<8x512xf32>
    %472 = vector.extract_strided_slice %471 {offsets = [0, 0], sizes = [8, 128], strides = [1, 1]} : vector<8x512xf32> to vector<8x128xf32>
    %473 = arith.negf %472 : vector<8x128xf32>
    %474 = math.exp %473 : vector<8x128xf32>
    %cst_101 = arith.constant 1.000000e+00 : f32
    %475 = vector.broadcast %cst_101 : f32 to vector<8x128xf32>
    %476 = arith.addf %475, %474 : vector<8x128xf32>
    %477 = arith.divf %475, %476 : vector<8x128xf32>
    %478 = vector.extract_strided_slice %471 {offsets = [0, 128], sizes = [8, 128], strides = [1, 1]} : vector<8x512xf32> to vector<8x128xf32>
    %479 = arith.negf %478 : vector<8x128xf32>
    %480 = math.exp %479 : vector<8x128xf32>
    %cst_102 = arith.constant 1.000000e+00 : f32
    %481 = vector.broadcast %cst_102 : f32 to vector<8x128xf32>
    %482 = arith.addf %481, %480 : vector<8x128xf32>
    %483 = arith.divf %481, %482 : vector<8x128xf32>
    %484 = vector.extract_strided_slice %471 {offsets = [0, 256], sizes = [8, 128], strides = [1, 1]} : vector<8x512xf32> to vector<8x128xf32>
    %485 = math.tanh %484 : vector<8x128xf32>
    %486 = vector.extract_strided_slice %471 {offsets = [0, 384], sizes = [8, 128], strides = [1, 1]} : vector<8x512xf32> to vector<8x128xf32>
    %487 = arith.negf %486 : vector<8x128xf32>
    %488 = math.exp %487 : vector<8x128xf32>
    %cst_103 = arith.constant 1.000000e+00 : f32
    %489 = vector.broadcast %cst_103 : f32 to vector<8x128xf32>
    %490 = arith.addf %489, %488 : vector<8x128xf32>
    %491 = arith.divf %489, %490 : vector<8x128xf32>
    %492 = arith.mulf %483, %428 : vector<8x128xf32>
    %493 = arith.mulf %477, %485 : vector<8x128xf32>
    %494 = arith.addf %492, %493 : vector<8x128xf32>
    %495 = math.tanh %494 : vector<8x128xf32>
    %496 = arith.mulf %491, %495 : vector<8x128xf32>
    %497 = vector.broadcast %c6_i32 : i32 to vector<8x1xi32>
    %498 = arith.cmpi sgt, %7, %497 : vector<8x1xi32>
    %499 = vector.shape_cast %498 : vector<8x1xi1> to vector<8x1xi1>
    %500 = vector.broadcast %499 : vector<8x1xi1> to vector<8x128xi1>
    %501 = arith.select %500, %496, %425 : vector<8x128xi1>, vector<8x128xf32>
    %502 = vector.shape_cast %498 : vector<8x1xi1> to vector<8x1xi1>
    %503 = vector.broadcast %502 : vector<8x1xi1> to vector<8x128xi1>
    %504 = arith.select %503, %494, %428 : vector<8x128xi1>, vector<8x128xf32>
    %505 = arith.truncf %501 : vector<8x128xf32> to vector<8x128xbf16>
    %cst_104 = arith.constant dense<0.000000e+00> : vector<8x128xf32>
    %506 = tpu.matmul %505, %3, %cst_104 {dimension_numbers = #tpu.dot_dimension_numbers<[1], [0], [0], [1], [0, 0, 1, 1], [], []>} : vector<8x128xbf16>, vector<128x128xbf16>, vector<8x128xf32> -> vector<8x128xf32>
    %507 = vector.broadcast %4 : vector<1x128xf32> to vector<8x128xf32>
    %508 = arith.addf %506, %507 : vector<8x128xf32>
    %509 = vector.shape_cast %508 : vector<8x128xf32> to vector<8x1x128xf32>
    %510 = vector.broadcast %509 : vector<8x1x128xf32> to vector<8x8x128xf32>
    %511 = arith.addf %1, %510 : vector<8x8x128xf32>
    %512 = math.tanh %511 : vector<8x8x128xf32>
    %513 = vector.shape_cast %5 : vector<1x128xf32> to vector<1x1x128xf32>
    %514 = vector.broadcast %513 : vector<1x1x128xf32> to vector<8x8x128xf32>
    %515 = arith.mulf %512, %514 : vector<8x8x128xf32>
    %cst_105 = arith.constant dense<0.000000e+00> : vector<8x8xf32>
    %516 = vector.multi_reduction <add>, %515, %cst_105 [2] : vector<8x8x128xf32> to vector<8x8xf32>
    %517 = vector.broadcast %6 : vector<1x1xf32> to vector<8x8xf32>
    %518 = arith.addf %516, %517 : vector<8x8xf32>
    %cst_106 = arith.constant dense<0xFF800000> : vector<8xf32>
    %519 = vector.multi_reduction <maximumf>, %518, %cst_106 [1] : vector<8x8xf32> to vector<8xf32>
    %520 = vector.shape_cast %519 : vector<8xf32> to vector<8x1xf32>
    %521 = vector.broadcast %520 : vector<8x1xf32> to vector<8x8xf32>
    %522 = arith.subf %518, %521 : vector<8x8xf32>
    %523 = math.exp %522 : vector<8x8xf32>
    %cst_107 = arith.constant dense<0.000000e+00> : vector<8xf32>
    %524 = vector.multi_reduction <add>, %523, %cst_107 [1] : vector<8x8xf32> to vector<8xf32>
    %525 = vector.shape_cast %524 : vector<8xf32> to vector<8x1xf32>
    %526 = tpu.reciprocal %525 {approx = true} : vector<8x1xf32> -> vector<8x1xf32>
    %527 = vector.broadcast %526 : vector<8x1xf32> to vector<8x8xf32>
    %528 = arith.mulf %523, %527 : vector<8x8xf32>
    %529 = vector.shape_cast %528 : vector<8x8xf32> to vector<8x8x1xf32>
    %530 = vector.broadcast %529 : vector<8x8x1xf32> to vector<8x8x128xf32>
    %531 = arith.mulf %530, %0 : vector<8x8x128xf32>
    %cst_108 = arith.constant dense<0.000000e+00> : vector<8x128xf32>
    %532 = vector.multi_reduction <add>, %531, %cst_108 [1] : vector<8x8x128xf32> to vector<8x128xf32>
    %533 = arith.addf %532, %501 : vector<8x128xf32>
    %534 = arith.extui %498 : vector<8x1xi1> to vector<8x1xi32>
    %535 = arith.sitofp %534 : vector<8x1xi32> to vector<8x1xf32>
    %536 = vector.broadcast %535 : vector<8x1xf32> to vector<8x128xf32>
    %537 = arith.mulf %533, %536 : vector<8x128xf32>
    %538 = arith.index_cast %c6_i32 : i32 to index
    %c0_109 = arith.constant 0 : index
    %c0_110 = arith.constant 0 : index
    %539 = vector.load %arg11[%538, %c0_109, %c0_110] : memref<8x8x128xf32, #tpu.memory_space<vmem>>, vector<1x8x128xf32>
    %540 = vector.shape_cast %539 : vector<1x8x128xf32> to vector<8x128xf32>
    %541 = vector.shape_cast %537 : vector<8x128xf32> to vector<1x8x128xf32>
    tpu.vector_store %arg11[%538, %c0_109, %c0_110], %541 {strides = array<i32>} : memref<8x8x128xf32, #tpu.memory_space<vmem>>, vector<1x8x128xf32>,
    %c7_i32 = arith.constant 7 : i32
    %542 = arith.index_cast %c7_i32 : i32 to index
    %c0_111 = arith.constant 0 : index
    %c0_112 = arith.constant 0 : index
    %543 = vector.load %arg0[%542, %c0_111, %c0_112] : memref<8x8x512xf32, #tpu.memory_space<vmem>>, vector<1x8x512xf32>
    %544 = vector.shape_cast %543 : vector<1x8x512xf32> to vector<8x512xf32>
    %545 = arith.truncf %501 : vector<8x128xf32> to vector<8x128xbf16>
    %cst_113 = arith.constant dense<0.000000e+00> : vector<8x512xf32>
    %546 = tpu.matmul %545, %2, %cst_113 {dimension_numbers = #tpu.dot_dimension_numbers<[1], [0], [0], [1], [0, 0, 1, 1], [], []>} : vector<8x128xbf16>, vector<128x512xbf16>, vector<8x512xf32> -> vector<8x512xf32>
    %547 = arith.addf %544, %546 : vector<8x512xf32>
    %548 = vector.extract_strided_slice %547 {offsets = [0, 0], sizes = [8, 128], strides = [1, 1]} : vector<8x512xf32> to vector<8x128xf32>
    %549 = arith.negf %548 : vector<8x128xf32>
    %550 = math.exp %549 : vector<8x128xf32>
    %cst_114 = arith.constant 1.000000e+00 : f32
    %551 = vector.broadcast %cst_114 : f32 to vector<8x128xf32>
    %552 = arith.addf %551, %550 : vector<8x128xf32>
    %553 = arith.divf %551, %552 : vector<8x128xf32>
    %554 = vector.extract_strided_slice %547 {offsets = [0, 128], sizes = [8, 128], strides = [1, 1]} : vector<8x512xf32> to vector<8x128xf32>
    %555 = arith.negf %554 : vector<8x128xf32>
    %556 = math.exp %555 : vector<8x128xf32>
    %cst_115 = arith.constant 1.000000e+00 : f32
    %557 = vector.broadcast %cst_115 : f32 to vector<8x128xf32>
    %558 = arith.addf %557, %556 : vector<8x128xf32>
    %559 = arith.divf %557, %558 : vector<8x128xf32>
    %560 = vector.extract_strided_slice %547 {offsets = [0, 256], sizes = [8, 128], strides = [1, 1]} : vector<8x512xf32> to vector<8x128xf32>
    %561 = math.tanh %560 : vector<8x128xf32>
    %562 = vector.extract_strided_slice %547 {offsets = [0, 384], sizes = [8, 128], strides = [1, 1]} : vector<8x512xf32> to vector<8x128xf32>
    %563 = arith.negf %562 : vector<8x128xf32>
    %564 = math.exp %563 : vector<8x128xf32>
    %cst_116 = arith.constant 1.000000e+00 : f32
    %565 = vector.broadcast %cst_116 : f32 to vector<8x128xf32>
    %566 = arith.addf %565, %564 : vector<8x128xf32>
    %567 = arith.divf %565, %566 : vector<8x128xf32>
    %568 = arith.mulf %559, %504 : vector<8x128xf32>
    %569 = arith.mulf %553, %561 : vector<8x128xf32>
    %570 = arith.addf %568, %569 : vector<8x128xf32>
    %571 = math.tanh %570 : vector<8x128xf32>
    %572 = arith.mulf %567, %571 : vector<8x128xf32>
    %573 = vector.broadcast %c7_i32 : i32 to vector<8x1xi32>
    %574 = arith.cmpi sgt, %7, %573 : vector<8x1xi32>
    %575 = vector.shape_cast %574 : vector<8x1xi1> to vector<8x1xi1>
    %576 = vector.broadcast %575 : vector<8x1xi1> to vector<8x128xi1>
    %577 = arith.select %576, %572, %501 : vector<8x128xi1>, vector<8x128xf32>
    %578 = vector.shape_cast %574 : vector<8x1xi1> to vector<8x1xi1>
    %579 = vector.broadcast %578 : vector<8x1xi1> to vector<8x128xi1>
    %580 = arith.select %579, %570, %504 : vector<8x128xi1>, vector<8x128xf32>
    %581 = arith.truncf %577 : vector<8x128xf32> to vector<8x128xbf16>
    %cst_117 = arith.constant dense<0.000000e+00> : vector<8x128xf32>
    %582 = tpu.matmul %581, %3, %cst_117 {dimension_numbers = #tpu.dot_dimension_numbers<[1], [0], [0], [1], [0, 0, 1, 1], [], []>} : vector<8x128xbf16>, vector<128x128xbf16>, vector<8x128xf32> -> vector<8x128xf32>
    %583 = vector.broadcast %4 : vector<1x128xf32> to vector<8x128xf32>
    %584 = arith.addf %582, %583 : vector<8x128xf32>
    %585 = vector.shape_cast %584 : vector<8x128xf32> to vector<8x1x128xf32>
    %586 = vector.broadcast %585 : vector<8x1x128xf32> to vector<8x8x128xf32>
    %587 = arith.addf %1, %586 : vector<8x8x128xf32>
    %588 = math.tanh %587 : vector<8x8x128xf32>
    %589 = vector.shape_cast %5 : vector<1x128xf32> to vector<1x1x128xf32>
    %590 = vector.broadcast %589 : vector<1x1x128xf32> to vector<8x8x128xf32>
    %591 = arith.mulf %588, %590 : vector<8x8x128xf32>
    %cst_118 = arith.constant dense<0.000000e+00> : vector<8x8xf32>
    %592 = vector.multi_reduction <add>, %591, %cst_118 [2] : vector<8x8x128xf32> to vector<8x8xf32>
    %593 = vector.broadcast %6 : vector<1x1xf32> to vector<8x8xf32>
    %594 = arith.addf %592, %593 : vector<8x8xf32>
    %cst_119 = arith.constant dense<0xFF800000> : vector<8xf32>
    %595 = vector.multi_reduction <maximumf>, %594, %cst_119 [1] : vector<8x8xf32> to vector<8xf32>
    %596 = vector.shape_cast %595 : vector<8xf32> to vector<8x1xf32>
    %597 = vector.broadcast %596 : vector<8x1xf32> to vector<8x8xf32>
    %598 = arith.subf %594, %597 : vector<8x8xf32>
    %599 = math.exp %598 : vector<8x8xf32>
    %cst_120 = arith.constant dense<0.000000e+00> : vector<8xf32>
    %600 = vector.multi_reduction <add>, %599, %cst_120 [1] : vector<8x8xf32> to vector<8xf32>
    %601 = vector.shape_cast %600 : vector<8xf32> to vector<8x1xf32>
    %602 = tpu.reciprocal %601 {approx = true} : vector<8x1xf32> -> vector<8x1xf32>
    %603 = vector.broadcast %602 : vector<8x1xf32> to vector<8x8xf32>
    %604 = arith.mulf %599, %603 : vector<8x8xf32>
    %605 = vector.shape_cast %604 : vector<8x8xf32> to vector<8x8x1xf32>
    %606 = vector.broadcast %605 : vector<8x8x1xf32> to vector<8x8x128xf32>
    %607 = arith.mulf %606, %0 : vector<8x8x128xf32>
    %cst_121 = arith.constant dense<0.000000e+00> : vector<8x128xf32>
    %608 = vector.multi_reduction <add>, %607, %cst_121 [1] : vector<8x8x128xf32> to vector<8x128xf32>
    %609 = arith.addf %608, %577 : vector<8x128xf32>
    %610 = arith.extui %574 : vector<8x1xi1> to vector<8x1xi32>
    %611 = arith.sitofp %610 : vector<8x1xi32> to vector<8x1xf32>
    %612 = vector.broadcast %611 : vector<8x1xf32> to vector<8x128xf32>
    %613 = arith.mulf %609, %612 : vector<8x128xf32>
    %614 = arith.index_cast %c7_i32 : i32 to index
    %c0_122 = arith.constant 0 : index
    %c0_123 = arith.constant 0 : index
    %615 = vector.load %arg11[%614, %c0_122, %c0_123] : memref<8x8x128xf32, #tpu.memory_space<vmem>>, vector<1x8x128xf32>
    %616 = vector.shape_cast %615 : vector<1x8x128xf32> to vector<8x128xf32>
    %617 = vector.shape_cast %613 : vector<8x128xf32> to vector<1x8x128xf32>
    tpu.vector_store %arg11[%614, %c0_122, %c0_123], %617 {strides = array<i32>} : memref<8x8x128xf32, #tpu.memory_space<vmem>>, vector<1x8x128xf32>,
    %c8_i32 = arith.constant 8 : i32
    return
  }
}

</mosaic_0001>

<llo_original>
// kernel: tpu_custom_call.1
$region0: #{tpu_custom_call.1}
  #allocation0 [shape = 'u32[]', space=smem, size = 0x4, offset = 0x4, fixed_abs, tag = 'smem constant byte address 0x4 - core index']
  #allocation1 [shape = 'u32[72,128]{1,0:T(1,128)}', space=vmem, size = 0x9000, scoped, tag = 'internal scratch']
  #allocation2 [shape = 'f32[1,1]{1,0:T(1,128)S(1)}', space=vmem, size = 0x200, scoped, tag = 'scoped memory for tpu_custom_call.1']
  %s0 = inlined_call_operand.hbm [shape: f32[8,8,512], index: 0, kind: input, shape index: {}]
  %s1 = inlined_call_operand.hbm [shape: f32[8,8,128], index: 1, kind: input, shape index: {}]
  %s2 = inlined_call_operand.hbm [shape: f32[8,8,128], index: 2, kind: input, shape index: {}]
  %s3 = inlined_call_operand.vmem [shape: f32[8,128], index: 3, kind: input, shape index: {}]
  %s4 = inlined_call_operand.hbm [shape: f32[8,128], index: 4, kind: input, shape index: {}]
  %s5 = inlined_call_operand.vmem [shape: s32[8,1], index: 5, kind: input, shape index: {}]
  %s6 = inlined_call_operand.hbm [shape: bf16[128,512], index: 6, kind: input, shape index: {}]
  %s7 = inlined_call_operand.hbm [shape: bf16[128,128], index: 7, kind: input, shape index: {}]
  %s8 = inlined_call_operand.vmem [shape: f32[1,128], index: 8, kind: input, shape index: {}]
  %s9 = inlined_call_operand.vmem [shape: f32[1,128], index: 9, kind: input, shape index: {}]
  %s10 = inlined_call_operand.<no memory space> [shape: f32[1,1], index: 10, kind: input, shape index: {}]
  %s11 = inlined_call_operand.hbm [shape: f32[8,8,128], index: 11, kind: output, shape index: {}]
  %s12 = sld [smem:[#allocation0]]
  $region78: #{tpu_custom_call.1} parent=0
    _
  %s14 = ssub.s32 1, %s12
  %s15 = scalar_select 0, %s14, %s12
  %v16 = vstv %s10
  %17 = vst [vmem:[#allocation2] sm:$0x1] %v16
  $region1: #{tpu_custom_call.1} parent=0
    #allocation3 [shape = 'u8[131072]{0}', space=vmem, size = 0x20000, scoped, tag = 'input window, operand 0, single buffered']
    #allocation4 [shape = 's32[1]{0}', space=sflag, size = 0x4, scoped, tag = 'scoped memory for tpu_custom_call.1']
    #allocation5 [shape = 's32[1]{0}', space=sflag, size = 0x4, scoped, tag = 'scoped memory for tpu_custom_call.1']
    #allocation6 [shape = 'u8[32768]{0}', space=vmem, size = 0x8000, scoped, tag = 'input window, operand 1, single buffered']
    #allocation7 [shape = 's32[1]{0}', space=sflag, size = 0x4, scoped, tag = 'scoped memory for tpu_custom_call.1']
    #allocation8 [shape = 'u8[32768]{0}', space=vmem, size = 0x8000, scoped, tag = 'input window, operand 2, single buffered']
    #allocation9 [shape = 'u8[4096]{0}', space=vmem, size = 0x1000, scoped, tag = 'input window, operand 4, single buffered']
    #allocation10 [shape = 's32[1]{0}', space=sflag, size = 0x4, scoped, tag = 'scoped memory for tpu_custom_call.1']
    #allocation11 [shape = 'u8[131072]{0}', space=vmem, size = 0x20000, scoped, tag = 'input window, operand 6, single buffered']
    #allocation12 [shape = 'u8[32768]{0}', space=vmem, size = 0x8000, scoped, tag = 'input window, operand 7, single buffered']
    #allocation13 [shape = 's32[1]{0}', space=sflag, size = 0x4, scoped, tag = 'scoped memory for tpu_custom_call.1']
    #allocation14 [shape = 'u8[32768]{0}', space=vmem, size = 0x8000, scoped, tag = 'output window, operand 0, single buffered']
    %18 = vsyncpa [#allocation4], 0
    %19 = vsyncpa [#allocation7], 0
    %20 = vsyncpa [#allocation10], 0
    %21 = vsyncpa [#allocation13], 0
    %22 = vsyncpa [#allocation5], 0
    // Predicated region
    $region2: #{tpu_custom_call.1} parent=1 // pred_check
      _
    $region3: #{tpu_custom_call.1} parent=1 // pred_check_branch
      %24 = sbr.rel (0) target = $region5
    $region4: #{tpu_custom_call.1} parent=1 // pred_region
      %26 = vsyncadd [#allocation4], 0
      %s27 = sshll.u32 %s0, 4
      %s28 = int_to_ptr.hbm [resolvable:$true] %s27
      %s29 = sshll.u32 [#allocation3], 4
      %s30 = int_to_ptr.vmem [resolvable:$true] %s29
      %35 = dma.hbm_to_vmem [thread:$0]  %s28, 4096, %s30, [#allocation4], 512, 512, 32
    $region5: #{tpu_custom_call.1} parent=1 // pred_fallthru
      _
    // Predicated region
    $region6: #{tpu_custom_call.1} parent=1 // pred_check
      _
    $region7: #{tpu_custom_call.1} parent=1 // pred_check_branch
      %37 = sbr.rel (0) target = $region9
    $region8: #{tpu_custom_call.1} parent=1 // pred_region
      %39 = vsyncadd [#allocation7], 0
      %s40 = sshll.u32 %s1, 4
      %s41 = int_to_ptr.hbm [resolvable:$true] %s40
      %s42 = sshll.u32 [#allocation6], 4
      %s43 = int_to_ptr.vmem [resolvable:$true] %s42
      %48 = dma.hbm_to_vmem [thread:$0]  %s41, 1024, %s43, [#allocation7], 128, 128, 8
    $region9: #{tpu_custom_call.1} parent=1 // pred_fallthru
      _
    // Predicated region
    $region10: #{tpu_custom_call.1} parent=1 // pred_check
      _
    $region11: #{tpu_custom_call.1} parent=1 // pred_check_branch
      %50 = sbr.rel (0) target = $region13
    $region12: #{tpu_custom_call.1} parent=1 // pred_region
      %52 = vsyncadd [#allocation7], 0
      %s53 = sshll.u32 %s2, 4
      %s54 = int_to_ptr.hbm [resolvable:$true] %s53
      %s55 = sshll.u32 [#allocation8], 4
      %s56 = int_to_ptr.vmem [resolvable:$true] %s55
      %61 = dma.hbm_to_vmem [thread:$0]  %s54, 1024, %s56, [#allocation7], 128, 128, 8
    $region13: #{tpu_custom_call.1} parent=1 // pred_fallthru
      _
    // Predicated region
    $region14: #{tpu_custom_call.1} parent=1 // pred_check
      _
    $region15: #{tpu_custom_call.1} parent=1 // pred_check_branch
      %63 = sbr.rel (0) target = $region17
    $region16: #{tpu_custom_call.1} parent=1 // pred_region
      _
    $region17: #{tpu_custom_call.1} parent=1 // pred_fallthru
      _
    // Predicated region
    $region18: #{tpu_custom_call.1} parent=1 // pred_check
      _
    $region19: #{tpu_custom_call.1} parent=1 // pred_check_branch
      %65 = sbr.rel (0) target = $region21
    $region20: #{tpu_custom_call.1} parent=1 // pred_region
      %67 = vsyncadd [#allocation10], 0
      %s69 = sshll.u32 %s4, 4
      %s70 = int_to_ptr.hbm [resolvable:$true] %s69
      %s71 = sshll.u32 [#allocation9], 4
      %s72 = int_to_ptr.vmem [resolvable:$true] %s71
      %74 = dma.hbm_to_vmem [thread:$0]  %s70, 128, %s72, [#allocation10]
    $region21: #{tpu_custom_call.1} parent=1 // pred_fallthru
      _
    // Predicated region
    $region22: #{tpu_custom_call.1} parent=1 // pred_check
      _
    $region23: #{tpu_custom_call.1} parent=1 // pred_check_branch
      %76 = sbr.rel (0) target = $region25
    $region24: #{tpu_custom_call.1} parent=1 // pred_region
      _
    $region25: #{tpu_custom_call.1} parent=1 // pred_fallthru
      _
    // Predicated region
    $region26: #{tpu_custom_call.1} parent=1 // pred_check
      _
    $region27: #{tpu_custom_call.1} parent=1 // pred_check_branch
      %78 = sbr.rel (0) target = $region29
    $region28: #{tpu_custom_call.1} parent=1 // pred_region
      %80 = vsyncadd [#allocation10], 0
      %s81 = sshll.u32 %s6, 4
      %s82 = int_to_ptr.hbm [resolvable:$true] %s81
      %s83 = sshll.u32 [#allocation11], 4
      %s84 = int_to_ptr.vmem [resolvable:$true] %s83
      %89 = dma.hbm_to_vmem [thread:$0]  %s82, 4096, %s84, [#allocation10], 256, 256, 16
    $region29: #{tpu_custom_call.1} parent=1 // pred_fallthru
      _
    // Predicated region
    $region30: #{tpu_custom_call.1} parent=1 // pred_check
      _
    $region31: #{tpu_custom_call.1} parent=1 // pred_check_branch
      %91 = sbr.rel (0) target = $region33
    $region32: #{tpu_custom_call.1} parent=1 // pred_region
      %93 = vsyncadd [#allocation13], 0
      %s94 = sshll.u32 %s7, 4
      %s95 = int_to_ptr.hbm [resolvable:$true] %s94
      %s96 = sshll.u32 [#allocation12], 4
      %s97 = int_to_ptr.vmem [resolvable:$true] %s96
      %102 = dma.hbm_to_vmem [thread:$0]  %s95, 1024, %s97, [#allocation13], 64, 64, 4
    $region33: #{tpu_custom_call.1} parent=1 // pred_fallthru
      _
    // Predicated region
    $region34: #{tpu_custom_call.1} parent=1 // pred_check
      _
    $region35: #{tpu_custom_call.1} parent=1 // pred_check_branch
      %104 = sbr.rel (0) target = $region37
    $region36: #{tpu_custom_call.1} parent=1 // pred_region
      _
    $region37: #{tpu_custom_call.1} parent=1 // pred_fallthru
      _
    // Predicated region
    $region38: #{tpu_custom_call.1} parent=1 // pred_check
      _
    $region39: #{tpu_custom_call.1} parent=1 // pred_check_branch
      %106 = sbr.rel (0) target = $region41
    $region40: #{tpu_custom_call.1} parent=1 // pred_region
      _
    $region41: #{tpu_custom_call.1} parent=1 // pred_fallthru
      _
    // Predicated region
    $region42: #{tpu_custom_call.1} parent=1 // pred_check
      _
    $region43: #{tpu_custom_call.1} parent=1 // pred_check_branch
      %108 = sbr.rel (0) target = $region45
    $region44: #{tpu_custom_call.1} parent=1 // pred_region
      _
    $region45: #{tpu_custom_call.1} parent=1 // pred_fallthru
      _
    // Predicated region
    $region46: #{tpu_custom_call.1} parent=1 // pred_check
      _
    $region47: #{tpu_custom_call.1} parent=1 // pred_check_branch
      %110 = sbr.rel (0) target = $region49
    $region48: #{tpu_custom_call.1} parent=1 // pred_region
      %112 = dma.done [#allocation4], 4096
    $region49: #{tpu_custom_call.1} parent=1 // pred_fallthru
      _
    // Predicated region
    $region50: #{tpu_custom_call.1} parent=1 // pred_check
      _
    $region51: #{tpu_custom_call.1} parent=1 // pred_check_branch
      %114 = sbr.rel (0) target = $region53
    $region52: #{tpu_custom_call.1} parent=1 // pred_region
      %116 = dma.done [#allocation7], 1024
    $region53: #{tpu_custom_call.1} parent=1 // pred_fallthru
      _
    // Predicated region
    $region54: #{tpu_custom_call.1} parent=1 // pred_check
      _
    $region55: #{tpu_custom_call.1} parent=1 // pred_check_branch
      %118 = sbr.rel (0) target = $region57
    $region56: #{tpu_custom_call.1} parent=1 // pred_region
      %120 = dma.done [#allocation7], 1024
    $region57: #{tpu_custom_call.1} parent=1 // pred_fallthru
      _
    // Predicated region
    $region58: #{tpu_custom_call.1} parent=1 // pred_check
      _
    $region59: #{tpu_custom_call.1} parent=1 // pred_check_branch
      %122 = sbr.rel (0) target = $region61
    $region60: #{tpu_custom_call.1} parent=1 // pred_region
      %124 = dma.done [#allocation10], 128
    $region61: #{tpu_custom_call.1} parent=1 // pred_fallthru
      _
    // Predicated region
    $region62: #{tpu_custom_call.1} parent=1 // pred_check
      _
    $region63: #{tpu_custom_call.1} parent=1 // pred_check_branch
      %126 = sbr.rel (0) target = $region65
    $region64: #{tpu_custom_call.1} parent=1 // pred_region
      %128 = dma.done [#allocation10], 4096
    $region65: #{tpu_custom_call.1} parent=1 // pred_fallthru
      _
    // Predicated region
    $region66: #{tpu_custom_call.1} parent=1 // pred_check
      _
    $region67: #{tpu_custom_call.1} parent=1 // pred_check_branch
      %130 = sbr.rel (0) target = $region69
    $region68: #{tpu_custom_call.1} parent=1 // pred_region
      %132 = dma.done [#allocation13], 1024
    $region69: #{tpu_custom_call.1} parent=1 // pred_fallthru
      _
    %v133 = vld [vmem:[#allocation8] sm:$0xff]
    %v134 = vld [vmem:[#allocation8 + $0x8] sm:$0xff]
    %v135 = vld [vmem:[#allocation8 + $0x10] sm:$0xff]
    %v136 = vld [vmem:[#allocation8 + $0x18] sm:$0xff]
    %v137 = vld [vmem:[#allocation8 + $0x20] sm:$0xff]
    %v138 = vld [vmem:[#allocation8 + $0x28] sm:$0xff]
    %v139 = vld [vmem:[#allocation8 + $0x30] sm:$0xff]
    %v140 = vld [vmem:[#allocation8 + $0x38] sm:$0xff]
    %v141 = vld [vmem:[#allocation6] sm:$0xff]
    %v142 = vld [vmem:[#allocation6 + $0x8] sm:$0xff]
    %v143 = vld [vmem:[#allocation6 + $0x10] sm:$0xff]
    %v144 = vld [vmem:[#allocation6 + $0x18] sm:$0xff]
    %v145 = vld [vmem:[#allocation6 + $0x20] sm:$0xff]
    %v146 = vld [vmem:[#allocation6 + $0x28] sm:$0xff]
    %v147 = vld [vmem:[#allocation6 + $0x30] sm:$0xff]
    %v148 = vld [vmem:[#allocation6 + $0x38] sm:$0xff]
    %v149 = vld [vmem:[#allocation11] sm:$0xff]
    %v150 = vld [vmem:[#allocation11 + $0x8] sm:$0xff]
    %v151 = vld [vmem:[#allocation11 + $0x10] sm:$0xff]
    %v152 = vld [vmem:[#allocation11 + $0x18] sm:$0xff]
    %v153 = vld [vmem:[#allocation11 + $0x20] sm:$0xff]
    %v154 = vld [vmem:[#allocation11 + $0x28] sm:$0xff]
    %v155 = vld [vmem:[#allocation11 + $0x30] sm:$0xff]
    %v156 = vld [vmem:[#allocation11 + $0x38] sm:$0xff]
    %v157 = vld [vmem:[#allocation11 + $0x40] sm:$0xff]
    %v158 = vld [vmem:[#allocation11 + $0x48] sm:$0xff]
    %v159 = vld [vmem:[#allocation11 + $0x50] sm:$0xff]
    %v160 = vld [vmem:[#allocation11 + $0x58] sm:$0xff]
    %v161 = vld [vmem:[#allocation11 + $0x60] sm:$0xff]
    %v162 = vld [vmem:[#allocation11 + $0x68] sm:$0xff]
    %v163 = vld [vmem:[#allocation11 + $0x70] sm:$0xff]
    %v164 = vld [vmem:[#allocation11 + $0x78] sm:$0xff]
    %v165 = vld [vmem:[#allocation11 + $0x80] sm:$0xff]
    %v166 = vld [vmem:[#allocation11 + $0x88] sm:$0xff]
    %v167 = vld [vmem:[#allocation11 + $0x90] sm:$0xff]
    %v168 = vld [vmem:[#allocation11 + $0x98] sm:$0xff]
    %v169 = vld [vmem:[#allocation11 + $0xa0] sm:$0xff]
    %v170 = vld [vmem:[#allocation11 + $0xa8] sm:$0xff]
    %v171 = vld [vmem:[#allocation11 + $0xb0] sm:$0xff]
    %v172 = vld [vmem:[#allocation11 + $0xb8] sm:$0xff]
    %v173 = vld [vmem:[#allocation11 + $0xc0] sm:$0xff]
    %v174 = vld [vmem:[#allocation11 + $0xc8] sm:$0xff]
    %v175 = vld [vmem:[#allocation11 + $0xd0] sm:$0xff]
    %v176 = vld [vmem:[#allocation11 + $0xd8] sm:$0xff]
    %v177 = vld [vmem:[#allocation11 + $0xe0] sm:$0xff]
    %v178 = vld [vmem:[#allocation11 + $0xe8] sm:$0xff]
    %v179 = vld [vmem:[#allocation11 + $0xf0] sm:$0xff]
    %v180 = vld [vmem:[#allocation11 + $0xf8] sm:$0xff]
    %v181 = vld [vmem:[#allocation12] sm:$0xf]
    %v182 = vld [vmem:[#allocation12 + $0x4] sm:$0xf]
    %v183 = vld [vmem:[#allocation12 + $0x8] sm:$0xf]
    %v184 = vld [vmem:[#allocation12 + $0xc] sm:$0xf]
    %v185 = vld [vmem:[#allocation12 + $0x10] sm:$0xf]
    %v186 = vld [vmem:[#allocation12 + $0x14] sm:$0xf]
    %v187 = vld [vmem:[#allocation12 + $0x18] sm:$0xf]
    %v188 = vld [vmem:[#allocation12 + $0x1c] sm:$0xf]
    %v189 = vld [vmem:[#allocation12 + $0x20] sm:$0xf]
    %v190 = vld [vmem:[#allocation12 + $0x24] sm:$0xf]
    %v191 = vld [vmem:[#allocation12 + $0x28] sm:$0xf]
    %v192 = vld [vmem:[#allocation12 + $0x2c] sm:$0xf]
    %v193 = vld [vmem:[#allocation12 + $0x30] sm:$0xf]
    %v194 = vld [vmem:[#allocation12 + $0x34] sm:$0xf]
    %v195 = vld [vmem:[#allocation12 + $0x38] sm:$0xf]
    %v196 = vld [vmem:[#allocation12 + $0x3c] sm:$0xf]
    %v197 = vld [vmem:[%s8] sm:$0x1]
    %v198 = vld [vmem:[%s9] sm:$0x1]
    %v199 = vld [vmem:[#allocation2] sm:$0x1]
    %v200 = vld [vmem:[%s5] sm:$0xff]
    %v201 = vld [vmem:[%s3] sm:$0xff]
    %v202 = vld [vmem:[#allocation9] sm:$0xff]
    %v203 = vld [vmem:[#allocation3] sm:$0xff]
    %v204 = vld [vmem:[#allocation3 + $0x8] sm:$0xff]
    %v205 = vld [vmem:[#allocation3 + $0x10] sm:$0xff]
    %v206 = vld [vmem:[#allocation3 + $0x18] sm:$0xff]
    %v207 = vpack.c.bf16 %v201, %v201
    %v240 = vunpack.c.l.b16 %v149
    %v241 = vunpack.c.h.b16 %v149
    %v242 = vunpack.c.l.b16 %v150
    %v243 = vunpack.c.h.b16 %v150
    %v244 = vunpack.c.l.b16 %v151
    %v245 = vunpack.c.h.b16 %v151
    %v246 = vunpack.c.l.b16 %v152
    %v247 = vunpack.c.h.b16 %v152
    %v248 = vunpack.c.l.b16 %v153
    %v249 = vunpack.c.h.b16 %v153
    %v250 = vunpack.c.l.b16 %v154
    %v251 = vunpack.c.h.b16 %v154
    %v252 = vunpack.c.l.b16 %v155
    %v253 = vunpack.c.h.b16 %v155
    %v254 = vunpack.c.l.b16 %v156
    %v255 = vunpack.c.h.b16 %v156
    %v256 = vunpack.c.l.b16 %v157
    %v257 = vunpack.c.h.b16 %v157
    %v258 = vunpack.c.l.b16 %v158
    %v259 = vunpack.c.h.b16 %v158
    %v260 = vunpack.c.l.b16 %v159
    %v261 = vunpack.c.h.b16 %v159
    %v262 = vunpack.c.l.b16 %v160
    %v263 = vunpack.c.h.b16 %v160
    %v264 = vunpack.c.l.b16 %v161
    %v265 = vunpack.c.h.b16 %v161
    %v266 = vunpack.c.l.b16 %v162
    %v267 = vunpack.c.h.b16 %v162
    %v268 = vunpack.c.l.b16 %v163
    %v269 = vunpack.c.h.b16 %v163
    %v270 = vunpack.c.l.b16 %v164
    %v271 = vunpack.c.h.b16 %v164
    %v272 = vunpack.c.l.b16 %v165
    %v273 = vunpack.c.h.b16 %v165
    %v274 = vunpack.c.l.b16 %v166
    %v275 = vunpack.c.h.b16 %v166
    %v276 = vunpack.c.l.b16 %v167
    %v277 = vunpack.c.h.b16 %v167
    %v278 = vunpack.c.l.b16 %v168
    %v279 = vunpack.c.h.b16 %v168
    %v280 = vunpack.c.l.b16 %v169
    %v281 = vunpack.c.h.b16 %v169
    %v282 = vunpack.c.l.b16 %v170
    %v283 = vunpack.c.h.b16 %v170
    %v284 = vunpack.c.l.b16 %v171
    %v285 = vunpack.c.h.b16 %v171
    %v286 = vunpack.c.l.b16 %v172
    %v287 = vunpack.c.h.b16 %v172
    %v288 = vunpack.c.l.b16 %v173
    %v289 = vunpack.c.h.b16 %v173
    %v290 = vunpack.c.l.b16 %v174
    %v291 = vunpack.c.h.b16 %v174
    %v292 = vunpack.c.l.b16 %v175
    %v293 = vunpack.c.h.b16 %v175
    %v294 = vunpack.c.l.b16 %v176
    %v295 = vunpack.c.h.b16 %v176
    %v296 = vunpack.c.l.b16 %v177
    %v297 = vunpack.c.h.b16 %v177
    %v298 = vunpack.c.l.b16 %v178
    %v299 = vunpack.c.h.b16 %v178
    %v300 = vunpack.c.l.b16 %v179
    %v301 = vunpack.c.h.b16 %v179
    %v302 = vunpack.c.l.b16 %v180
    %v303 = vunpack.c.h.b16 %v180
    %v304 = vpack.c.b16 %v244, %v240
    %v305 = vpack.c.b16 %v245, %v241
    %v306 = vpack.c.b16 %v246, %v242
    %v307 = vpack.c.b16 %v247, %v243
    %v308 = vpack.c.b16 %v252, %v248
    %v309 = vpack.c.b16 %v253, %v249
    %v310 = vpack.c.b16 %v254, %v250
    %v311 = vpack.c.b16 %v255, %v251
    %v312 = vpack.c.b16 %v260, %v256
    %v313 = vpack.c.b16 %v261, %v257
    %v314 = vpack.c.b16 %v262, %v258
    %v315 = vpack.c.b16 %v263, %v259
    %v316 = vpack.c.b16 %v268, %v264
    %v317 = vpack.c.b16 %v269, %v265
    %v318 = vpack.c.b16 %v270, %v266
    %v319 = vpack.c.b16 %v271, %v267
    %v320 = vpack.c.b16 %v276, %v272
    %v321 = vpack.c.b16 %v277, %v273
    %v322 = vpack.c.b16 %v278, %v274
    %v323 = vpack.c.b16 %v279, %v275
    %v324 = vpack.c.b16 %v284, %v280
    %v325 = vpack.c.b16 %v285, %v281
    %v326 = vpack.c.b16 %v286, %v282
    %v327 = vpack.c.b16 %v287, %v283
    %v328 = vpack.c.b16 %v292, %v288
    %v329 = vpack.c.b16 %v293, %v289
    %v330 = vpack.c.b16 %v294, %v290
    %v331 = vpack.c.b16 %v295, %v291
    %v332 = vpack.c.b16 %v300, %v296
    %v333 = vpack.c.b16 %v301, %v297
    %v334 = vpack.c.b16 %v302, %v298
    %v335 = vpack.c.b16 %v303, %v299
    %368 = vmatpush.bf16.msra.mxu0 %v332
    %369 = vmatpush.bf16.msra.mxu0 %v328
    %370 = vmatpush.bf16.msra.mxu0 %v324
    %371 = vmatpush.bf16.msra.mxu0 %v320
    %372 = vmatpush.bf16.msra.mxu0 %v316
    %373 = vmatpush.bf16.msra.mxu0 %v312
    %374 = vmatpush.bf16.msra.mxu0 %v308
    %375 = vmatpush.bf16.msra.mxu0 %v304
    %376 = vmatmul.bf16.gmra.mxu0 %v207
    %v377 = vpop.f32.mrf.mxu0
    %v378 = vadd.f32 0.0, %v377
    %v379 = vpop.f32.mrf.mxu0
    %380 = vdwg.mxu0
    %381 = vmatpush.bf16.msra.mxu0 %v333
    %382 = vmatpush.bf16.msra.mxu0 %v329
    %383 = vmatpush.bf16.msra.mxu0 %v325
    %384 = vmatpush.bf16.msra.mxu0 %v321
    %385 = vmatpush.bf16.msra.mxu0 %v317
    %386 = vmatpush.bf16.msra.mxu0 %v313
    %387 = vmatpush.bf16.msra.mxu0 %v309
    %388 = vmatpush.bf16.msra.mxu0 %v305
    %389 = vmatmul.bf16.gmra.mxu0 %v207
    %v390 = vpop.f32.mrf.mxu0
    %v391 = vadd.f32 0.0, %v390
    %v392 = vpop.f32.mrf.mxu0
    %393 = vdwg.mxu0
    %394 = vmatpush.bf16.msra.mxu0 %v334
    %395 = vmatpush.bf16.msra.mxu0 %v330
    %396 = vmatpush.bf16.msra.mxu0 %v326
    %397 = vmatpush.bf16.msra.mxu0 %v322
    %398 = vmatpush.bf16.msra.mxu0 %v318
    %399 = vmatpush.bf16.msra.mxu0 %v314
    %400 = vmatpush.bf16.msra.mxu0 %v310
    %401 = vmatpush.bf16.msra.mxu0 %v306
    %402 = vmatmul.bf16.gmra.mxu0 %v207
    %v403 = vpop.f32.mrf.mxu0
    %v404 = vadd.f32 0.0, %v403
    %v405 = vpop.f32.mrf.mxu0
    %406 = vdwg.mxu0
    %407 = vmatpush.bf16.msra.mxu0 %v335
    %408 = vmatpush.bf16.msra.mxu0 %v331
    %409 = vmatpush.bf16.msra.mxu0 %v327
    %410 = vmatpush.bf16.msra.mxu0 %v323
    %411 = vmatpush.bf16.msra.mxu0 %v319
    %412 = vmatpush.bf16.msra.mxu0 %v315
    %413 = vmatpush.bf16.msra.mxu0 %v311
    %414 = vmatpush.bf16.msra.mxu0 %v307
    %415 = vmatmul.bf16.gmra.mxu0 %v207
    %v416 = vpop.f32.mrf.mxu0
    %v417 = vadd.f32 0.0, %v416
    %v418 = vpop.f32.mrf.mxu0
    %419 = vdwg.mxu0
    %v420 = vadd.f32 %v203, %v378
    %v421 = vadd.f32 %v204, %v391
    %v422 = vadd.f32 %v205, %v404
    %v423 = vadd.f32 %v206, %v417
    %v424 = vxor.u32 %v420, 2147483648
    %v425 = vmul.f32 %v424, 1.442695
    %v426 = vpow.pop %v425
    %v427 = vadd.f32 %v426, 1.0
    %v428 = vrcp.pop %v427
    %v429 = vmul.f32 %v427, %v428
    %v430 = vsub.f32 1.0, %v429
    %v431 = vmul.f32 %v428, %v430
    %v432 = vadd.f32 %v428, %v431
    %vm433 = vweird.f32 %v427
    %vm434 = vweird.f32 %v428
    %vm435 = vmor %vm433, %vm434
    %v436 = vsel %vm435, %v428, %v432
    %v437 = vand.u32 2147483647, %v427
    %vm438 = vcmp.eq.f32.partialorder %v437, 8.507059e+37
    %v439 = vand.u32 %v427, 2147483648
    %v440 = vor.u32 1.1754944e-38, %v439
    %v441 = vsel %vm438, %v440, %v436
    %v442 = vmul.f32 1.0, %v441
    %v443 = vxor.u32 %v421, 2147483648
    %v444 = vmul.f32 %v443, 1.442695
    %v445 = vpow.pop %v444
    %v446 = vadd.f32 %v445, 1.0
    %v447 = vrcp.pop %v446
    %v448 = vmul.f32 %v446, %v447
    %v449 = vsub.f32 1.0, %v448
    %v450 = vmul.f32 %v447, %v449
    %v451 = vadd.f32 %v447, %v450
    %vm452 = vweird.f32 %v446
    %vm453 = vweird.f32 %v447
    %vm454 = vmor %vm452, %vm453
    %v455 = vsel %vm454, %v447, %v451
    %v456 = vand.u32 2147483647, %v446
    %vm457 = vcmp.eq.f32.partialorder %v456, 8.507059e+37
    %v458 = vand.u32 %v446, 2147483648
    %v459 = vor.u32 1.1754944e-38, %v458
    %v460 = vsel %vm457, %v459, %v455
    %v461 = vmul.f32 1.0, %v460
    %v462 = vtanh.pop %v422
    %v463 = vxor.u32 %v423, 2147483648
    %v464 = vmul.f32 %v463, 1.442695
    %v465 = vpow.pop %v464
    %v466 = vadd.f32 %v465, 1.0
    %v467 = vrcp.pop %v466
    %v468 = vmul.f32 %v466, %v467
    %v469 = vsub.f32 1.0, %v468
    %v470 = vmul.f32 %v467, %v469
    %v471 = vadd.f32 %v467, %v470
    %vm472 = vweird.f32 %v466
    %vm473 = vweird.f32 %v467
    %vm474 = vmor %vm472, %vm473
    %v475 = vsel %vm474, %v467, %v471
    %v476 = vand.u32 2147483647, %v466
    %vm477 = vcmp.eq.f32.partialorder %v476, 8.507059e+37
    %v478 = vand.u32 %v466, 2147483648
    %v479 = vor.u32 1.1754944e-38, %v478
    %v480 = vsel %vm477, %v479, %v475
    %v481 = vmul.f32 1.0, %v480
    %v482 = vmul.f32 %v461, %v202
    %v483 = vmul.f32 %v442, %v462
    %v484 = vadd.f32 %v482, %v483
    %v485 = vtanh.pop %v484
    %v486 = vmul.f32 %v481, %v485
    %vm487 = vcmp.gt.s32.totalorder %v200, 0
    %v488 = vsel %vm487, 1, 0
    %489 = vset.pattern.permute.xlu0 0
    %490 = vperm.xlu0 %489, %v488
    %v491 = vpop.permute.xlu0 %490
    %vm492 = vcmp.eq.s32.totalorder %v491, 1
    %v493 = vsel %vm492, %v486, %v201
    %v494 = vsel %vm492, %v484, %v202
    %v495 = vpack.c.bf16 %v493, %v493
    %v497 = vperm.slane %v197, 0
    %v515 = vunpack.c.l.b16 %v181
    %v516 = vunpack.c.l.b16 %v182
    %v517 = vunpack.c.l.b16 %v183
    %v518 = vunpack.c.l.b16 %v184
    %v519 = vunpack.c.l.b16 %v185
    %v520 = vunpack.c.l.b16 %v186
    %v521 = vunpack.c.l.b16 %v187
    %v522 = vunpack.c.l.b16 %v188
    %v523 = vunpack.c.l.b16 %v189
    %v524 = vunpack.c.l.b16 %v190
    %v525 = vunpack.c.l.b16 %v191
    %v526 = vunpack.c.l.b16 %v192
    %v527 = vunpack.c.l.b16 %v193
    %v528 = vunpack.c.l.b16 %v194
    %v529 = vunpack.c.l.b16 %v195
    %v530 = vunpack.c.l.b16 %v196
    %v531 = vpack.c.b16 %v516, %v515
    %v532 = vpack.c.b16 %v518, %v517
    %v533 = vpack.c.b16 %v520, %v519
    %v534 = vpack.c.b16 %v522, %v521
    %v535 = vpack.c.b16 %v524, %v523
    %v536 = vpack.c.b16 %v526, %v525
    %v537 = vpack.c.b16 %v528, %v527
    %v538 = vpack.c.b16 %v530, %v529
    %547 = vmatpush.bf16.msra.mxu0 %v538
    %548 = vmatpush.bf16.msra.mxu0 %v537
    %549 = vmatpush.bf16.msra.mxu0 %v536
    %550 = vmatpush.bf16.msra.mxu0 %v535
    %551 = vmatpush.bf16.msra.mxu0 %v534
    %552 = vmatpush.bf16.msra.mxu0 %v533
    %553 = vmatpush.bf16.msra.mxu0 %v532
    %554 = vmatpush.bf16.msra.mxu0 %v531
    %555 = vmatmul.bf16.gmra.mxu0 %v495
    %v556 = vpop.f32.mrf.mxu0
    %v557 = vadd.f32 %v497, %v556
    %v558 = vpop.f32.mrf.mxu0
    %559 = vdwg.mxu0
    %v561 = vrot.slane %v557, 1
    %v562 = vrot.slane %v557, 2
    %v563 = vrot.slane %v557, 3
    %v564 = vrot.slane %v557, 4
    %v565 = vrot.slane %v557, 5
    %v566 = vrot.slane %v557, 6
    %v567 = vrot.slane %v557, 7
    %v568 = vperm.slane %v557, 0
    %v569 = vperm.slane %v561, 0
    %v570 = vperm.slane %v562, 0
    %v571 = vperm.slane %v563, 0
    %v572 = vperm.slane %v564, 0
    %v573 = vperm.slane %v565, 0
    %v574 = vperm.slane %v566, 0
    %v575 = vperm.slane %v567, 0
    %v584 = vadd.f32 %v141, %v568
    %v585 = vadd.f32 %v142, %v569
    %v586 = vadd.f32 %v143, %v570
    %v587 = vadd.f32 %v144, %v571
    %v588 = vadd.f32 %v145, %v572
    %v589 = vadd.f32 %v146, %v573
    %v590 = vadd.f32 %v147, %v574
    %v591 = vadd.f32 %v148, %v575
    %v592 = vtanh.pop %v584
    %v593 = vtanh.pop %v585
    %v594 = vtanh.pop %v586
    %v595 = vtanh.pop %v587
    %v596 = vtanh.pop %v588
    %v597 = vtanh.pop %v589
    %v598 = vtanh.pop %v590
    %v599 = vtanh.pop %v591
    %v601 = vperm.slane %v198, 0
    %v603 = vmul.f32 %v592, %v601
    %v604 = vmul.f32 %v593, %v601
    %v605 = vmul.f32 %v594, %v601
    %v606 = vmul.f32 %v595, %v601
    %v607 = vmul.f32 %v596, %v601
    %v608 = vmul.f32 %v597, %v601
    %v609 = vmul.f32 %v598, %v601
    %v610 = vmul.f32 %v599, %v601
    %611 = vadd.xlane.f32.xlu0 %v603
    %v612 = vpop.xlane.xlu0 %611
    %613 = vadd.xlane.f32.xlu0 %v604
    %v614 = vpop.xlane.xlu0 %613
    %615 = vadd.xlane.f32.xlu0 %v605
    %v616 = vpop.xlane.xlu0 %615
    %617 = vadd.xlane.f32.xlu0 %v606
    %v618 = vpop.xlane.xlu0 %617
    %619 = vadd.xlane.f32.xlu0 %v607
    %v620 = vpop.xlane.xlu0 %619
    %621 = vadd.xlane.f32.xlu0 %v608
    %v622 = vpop.xlane.xlu0 %621
    %623 = vadd.xlane.f32.xlu0 %v609
    %v624 = vpop.xlane.xlu0 %623
    %625 = vadd.xlane.f32.xlu0 %v610
    %v626 = vpop.xlane.xlu0 %625
    %v628 = vperm.slane %v199, 0
    %629 = vset.pattern.permute.xlu0 0
    %630 = vperm.xlu0 %629, %v628
    %v631 = vpop.permute.xlu0 %630
    %v633 = vadd.f32 %v612, %v631
    %v634 = vadd.f32 %v614, %v631
    %v635 = vadd.f32 %v616, %v631
    %v636 = vadd.f32 %v618, %v631
    %v637 = vadd.f32 %v620, %v631
    %v638 = vadd.f32 %v622, %v631
    %v639 = vadd.f32 %v624, %v631
    %v640 = vadd.f32 %v626, %v631
    %v649 = vlaneseq
    %v650 = vand.u32 %v649, 127
    %v651 = vperm.slane %v633, %v650
    %v652 = vperm.slane %v634, %v650
    %v653 = vperm.slane %v635, %v650
    %v654 = vperm.slane %v636, %v650
    %v655 = vperm.slane %v637, %v650
    %v656 = vperm.slane %v638, %v650
    %v657 = vperm.slane %v639, %v650
    %v658 = vperm.slane %v640, %v650
    %vm659 = vcmask 1041409
    %v660 = vsel %vm659, %v652, %v651
    %vm661 = vcmask 1042434
    %v662 = vsel %vm661, %v653, %v660
    %vm663 = vcmask 1043459
    %v664 = vsel %vm663, %v654, %v662
    %vm665 = vcmask 1044484
    %v666 = vsel %vm665, %v655, %v664
    %vm667 = vcmask 1045509
    %v668 = vsel %vm667, %v656, %v666
    %vm669 = vcmask 1046534
    %v670 = vsel %vm669, %v657, %v668
    %vm671 = vcmask 1047559
    %v672 = vsel %vm671, %v658, %v670
    %vm674 = vcmask 64512
    %v675 = vsel %vm674, %v672, -inf
    %676 = vmax.xlane.f32.xlu0 %v675
    %v677 = vpop.xlane.xlu0 %676
    %v679 = vperm.slane %v677, 0
    %v680 = vperm.slane %v677, 1
    %v681 = vperm.slane %v677, 2
    %v682 = vperm.slane %v677, 3
    %v683 = vperm.slane %v677, 4
    %v684 = vperm.slane %v677, 5
    %v685 = vperm.slane %v677, 6
    %v686 = vperm.slane %v677, 7
    %v695 = vsub.f32 %v633, %v679
    %v696 = vsub.f32 %v634, %v680
    %v697 = vsub.f32 %v635, %v681
    %v698 = vsub.f32 %v636, %v682
    %v699 = vsub.f32 %v637, %v683
    %v700 = vsub.f32 %v638, %v684
    %v701 = vsub.f32 %v639, %v685
    %v702 = vsub.f32 %v640, %v686
    %v703 = vmul.f32 %v695, 1.442695
    %v704 = vpow.pop %v703
    %v705 = vmul.f32 %v696, 1.442695
    %v706 = vpow.pop %v705
    %v707 = vmul.f32 %v697, 1.442695
    %v708 = vpow.pop %v707
    %v709 = vmul.f32 %v698, 1.442695
    %v710 = vpow.pop %v709
    %v711 = vmul.f32 %v699, 1.442695
    %v712 = vpow.pop %v711
    %v713 = vmul.f32 %v700, 1.442695
    %v714 = vpow.pop %v713
    %v715 = vmul.f32 %v701, 1.442695
    %v716 = vpow.pop %v715
    %v717 = vmul.f32 %v702, 1.442695
    %v718 = vpow.pop %v717
    %727 = vset.pattern.permute.xlu0 0
    %728 = vperm.xlu0 %727, %v704
    %v729 = vpop.permute.xlu0 %728
    %730 = vset.pattern.permute.xlu0 0
    %731 = vperm.xlu0 %730, %v706
    %v732 = vpop.permute.xlu0 %731
    %733 = vset.pattern.permute.xlu0 0
    %734 = vperm.xlu0 %733, %v708
    %v735 = vpop.permute.xlu0 %734
    %736 = vset.pattern.permute.xlu0 0
    %737 = vperm.xlu0 %736, %v710
    %v738 = vpop.permute.xlu0 %737
    %739 = vset.pattern.permute.xlu0 0
    %740 = vperm.xlu0 %739, %v712
    %v741 = vpop.permute.xlu0 %740
    %742 = vset.pattern.permute.xlu0 0
    %743 = vperm.xlu0 %742, %v714
    %v744 = vpop.permute.xlu0 %743
    %745 = vset.pattern.permute.xlu0 0
    %746 = vperm.xlu0 %745, %v716
    %v747 = vpop.permute.xlu0 %746
    %748 = vset.pattern.permute.xlu0 0
    %749 = vperm.xlu0 %748, %v718
    %v750 = vpop.permute.xlu0 %749
    %v751 = vperm.slane %v729, %v650
    %v752 = vperm.slane %v732, %v650
    %v753 = vperm.slane %v735, %v650
    %v754 = vperm.slane %v738, %v650
    %v755 = vperm.slane %v741, %v650
    %v756 = vperm.slane %v744, %v650
    %v757 = vperm.slane %v747, %v650
    %v758 = vperm.slane %v750, %v650
    %v759 = vsel %vm659, %v752, %v751
    %v760 = vsel %vm661, %v753, %v759
    %v761 = vsel %vm663, %v754, %v760
    %v762 = vsel %vm665, %v755, %v761
    %v763 = vsel %vm667, %v756, %v762
    %v764 = vsel %vm669, %v757, %v763
    %v765 = vsel %vm671, %v758, %v764
    %v767 = vsel %vm674, %v765, 0.0
    %768 = vadd.xlane.f32.xlu0 %v767
    %v769 = vpop.xlane.xlu0 %768
    %v770 = vrcp.pop %v769
    %v772 = vperm.slane %v770, 0
    %v773 = vperm.slane %v770, 1
    %v774 = vperm.slane %v770, 2
    %v775 = vperm.slane %v770, 3
    %v776 = vperm.slane %v770, 4
    %v777 = vperm.slane %v770, 5
    %v778 = vperm.slane %v770, 6
    %v779 = vperm.slane %v770, 7
    %v788 = vmul.f32 %v704, %v772
    %v789 = vmul.f32 %v706, %v773
    %v790 = vmul.f32 %v708, %v774
    %v791 = vmul.f32 %v710, %v775
    %v792 = vmul.f32 %v712, %v776
    %v793 = vmul.f32 %v714, %v777
    %v794 = vmul.f32 %v716, %v778
    %v795 = vmul.f32 %v718, %v779
    %797 = vset.pattern.permute.xlu0 0
    %798 = vperm.xlu0 %797, %v788
    %v799 = vpop.permute.xlu0 %798
    %802 = vset.pattern.permute.xlu0 0
    %803 = vperm.xlu0 %802, %v789
    %v804 = vpop.permute.xlu0 %803
    %807 = vset.pattern.permute.xlu0 0
    %808 = vperm.xlu0 %807, %v790
    %v809 = vpop.permute.xlu0 %808
    %812 = vset.pattern.permute.xlu0 0
    %813 = vperm.xlu0 %812, %v791
    %v814 = vpop.permute.xlu0 %813
    %817 = vset.pattern.permute.xlu0 0
    %818 = vperm.xlu0 %817, %v792
    %v819 = vpop.permute.xlu0 %818
    %822 = vset.pattern.permute.xlu0 0
    %823 = vperm.xlu0 %822, %v793
    %v824 = vpop.permute.xlu0 %823
    %827 = vset.pattern.permute.xlu0 0
    %828 = vperm.xlu0 %827, %v794
    %v829 = vpop.permute.xlu0 %828
    %832 = vset.pattern.permute.xlu0 0
    %833 = vperm.xlu0 %832, %v795
    %v834 = vpop.permute.xlu0 %833
    %v836 = vmul.f32 %v799, %v133
    %v837 = vmul.f32 %v804, %v134
    %v838 = vmul.f32 %v809, %v135
    %v839 = vmul.f32 %v814, %v136
    %v840 = vmul.f32 %v819, %v137
    %v841 = vmul.f32 %v824, %v138
    %v842 = vmul.f32 %v829, %v139
    %v843 = vmul.f32 %v834, %v140
    %v844 = vrot.slane %v836, 4
    %v845 = vadd.f32 %v836, %v844
    %v846 = vrot.slane %v845, 2
    %v847 = vadd.f32 %v845, %v846
    %v848 = vrot.slane %v847, 1
    %v849 = vadd.f32 %v847, %v848
    %v850 = vrot.slane %v837, 4
    %v851 = vadd.f32 %v837, %v850
    %v852 = vrot.slane %v851, 2
    %v853 = vadd.f32 %v851, %v852
    %v854 = vrot.slane %v853, 1
    %v855 = vadd.f32 %v853, %v854
    %v856 = vrot.slane %v838, 4
    %v857 = vadd.f32 %v838, %v856
    %v858 = vrot.slane %v857, 2
    %v859 = vadd.f32 %v857, %v858
    %v860 = vrot.slane %v859, 1
    %v861 = vadd.f32 %v859, %v860
    %v862 = vrot.slane %v839, 4
    %v863 = vadd.f32 %v839, %v862
    %v864 = vrot.slane %v863, 2
    %v865 = vadd.f32 %v863, %v864
    %v866 = vrot.slane %v865, 1
    %v867 = vadd.f32 %v865, %v866
    %v868 = vrot.slane %v840, 4
    %v869 = vadd.f32 %v840, %v868
    %v870 = vrot.slane %v869, 2
    %v871 = vadd.f32 %v869, %v870
    %v872 = vrot.slane %v871, 1
    %v873 = vadd.f32 %v871, %v872
    %v874 = vrot.slane %v841, 4
    %v875 = vadd.f32 %v841, %v874
    %v876 = vrot.slane %v875, 2
    %v877 = vadd.f32 %v875, %v876
    %v878 = vrot.slane %v877, 1
    %v879 = vadd.f32 %v877, %v878
    %v880 = vrot.slane %v842, 4
    %v881 = vadd.f32 %v842, %v880
    %v882 = vrot.slane %v881, 2
    %v883 = vadd.f32 %v881, %v882
    %v884 = vrot.slane %v883, 1
    %v885 = vadd.f32 %v883, %v884
    %v886 = vrot.slane %v843, 4
    %v887 = vadd.f32 %v843, %v886
    %v888 = vrot.slane %v887, 2
    %v889 = vadd.f32 %v887, %v888
    %v890 = vrot.slane %v889, 1
    %v891 = vadd.f32 %v889, %v890
    %v893 = vrot.slane %v493, 1
    %v894 = vrot.slane %v493, 2
    %v895 = vrot.slane %v493, 3
    %v896 = vrot.slane %v493, 4
    %v897 = vrot.slane %v493, 5
    %v898 = vrot.slane %v493, 6
    %v899 = vrot.slane %v493, 7
    %v908 = vadd.f32 %v849, %v493
    %v909 = vadd.f32 %v855, %v893
    %v910 = vadd.f32 %v861, %v894
    %v911 = vadd.f32 %v867, %v895
    %v912 = vadd.f32 %v873, %v896
    %v913 = vadd.f32 %v879, %v897
    %v914 = vadd.f32 %v885, %v898
    %v915 = vadd.f32 %v891, %v899
    %v916 = vcvt.s32.f32 %v488
    %918 = vset.pattern.permute.xlu0 0
    %919 = vperm.xlu0 %918, %v916
    %v920 = vpop.permute.xlu0 %919
    %v921 = vrot.slane %v920, 1
    %v922 = vrot.slane %v920, 2
    %v923 = vrot.slane %v920, 3
    %v924 = vrot.slane %v920, 4
    %v925 = vrot.slane %v920, 5
    %v926 = vrot.slane %v920, 6
    %v927 = vrot.slane %v920, 7
    %v936 = vmul.f32 %v908, %v920
    %v937 = vmul.f32 %v909, %v921
    %v938 = vmul.f32 %v910, %v922
    %v939 = vmul.f32 %v911, %v923
    %v940 = vmul.f32 %v912, %v924
    %v941 = vmul.f32 %v913, %v925
    %v942 = vmul.f32 %v914, %v926
    %v943 = vmul.f32 %v915, %v927
    %v952 = vrot.slane %v937, 7
    %v953 = vsel %vm659, %v952, %v936
    %v954 = vrot.slane %v938, 6
    %v955 = vsel %vm661, %v954, %v953
    %v956 = vrot.slane %v939, 5
    %v957 = vsel %vm663, %v956, %v955
    %v958 = vrot.slane %v940, 4
    %v959 = vsel %vm665, %v958, %v957
    %v960 = vrot.slane %v941, 3
    %v961 = vsel %vm667, %v960, %v959
    %v962 = vrot.slane %v942, 2
    %v963 = vsel %vm669, %v962, %v961
    %v964 = vrot.slane %v943, 1
    %v965 = vsel %vm671, %v964, %v963
    %967 = vst [vmem:[#allocation14] sm:$0xff] %v965
    %s968 = scalar_lea.vmem [#allocation3], 32
    %v969 = vld [vmem:[%s968] sm:$0xff]
    %v970 = vld [vmem:[%s968 + $0x8] sm:$0xff]
    %v971 = vld [vmem:[%s968 + $0x10] sm:$0xff]
    %v972 = vld [vmem:[%s968 + $0x18] sm:$0xff]
    %973 = vmatpush.bf16.msra.mxu0 %v332
    %974 = vmatpush.bf16.msra.mxu0 %v328
    %975 = vmatpush.bf16.msra.mxu0 %v324
    %976 = vmatpush.bf16.msra.mxu0 %v320
    %977 = vmatpush.bf16.msra.mxu0 %v316
    %978 = vmatpush.bf16.msra.mxu0 %v312
    %979 = vmatpush.bf16.msra.mxu0 %v308
    %980 = vmatpush.bf16.msra.mxu0 %v304
    %981 = vmatmul.bf16.gmra.mxu0 %v495
    %v982 = vpop.f32.mrf.mxu0
    %v983 = vadd.f32 0.0, %v982
    %v984 = vpop.f32.mrf.mxu0
    %985 = vdwg.mxu0
    %986 = vmatpush.bf16.msra.mxu0 %v333
    %987 = vmatpush.bf16.msra.mxu0 %v329
    %988 = vmatpush.bf16.msra.mxu0 %v325
    %989 = vmatpush.bf16.msra.mxu0 %v321
    %990 = vmatpush.bf16.msra.mxu0 %v317
    %991 = vmatpush.bf16.msra.mxu0 %v313
    %992 = vmatpush.bf16.msra.mxu0 %v309
    %993 = vmatpush.bf16.msra.mxu0 %v305
    %994 = vmatmul.bf16.gmra.mxu0 %v495
    %v995 = vpop.f32.mrf.mxu0
    %v996 = vadd.f32 0.0, %v995
    %v997 = vpop.f32.mrf.mxu0
    %998 = vdwg.mxu0
    %999 = vmatpush.bf16.msra.mxu0 %v334
    %1000 = vmatpush.bf16.msra.mxu0 %v330
    %1001 = vmatpush.bf16.msra.mxu0 %v326
    %1002 = vmatpush.bf16.msra.mxu0 %v322
    %1003 = vmatpush.bf16.msra.mxu0 %v318
    %1004 = vmatpush.bf16.msra.mxu0 %v314
    %1005 = vmatpush.bf16.msra.mxu0 %v310
    %1006 = vmatpush.bf16.msra.mxu0 %v306
    %1007 = vmatmul.bf16.gmra.mxu0 %v495
    %v1008 = vpop.f32.mrf.mxu0
    %v1009 = vadd.f32 0.0, %v1008
    %v1010 = vpop.f32.mrf.mxu0
    %1011 = vdwg.mxu0
    %1012 = vmatpush.bf16.msra.mxu0 %v335
    %1013 = vmatpush.bf16.msra.mxu0 %v331
    %1014 = vmatpush.bf16.msra.mxu0 %v327
    %1015 = vmatpush.bf16.msra.mxu0 %v323
    %1016 = vmatpush.bf16.msra.mxu0 %v319
    %1017 = vmatpush.bf16.msra.mxu0 %v315
    %1018 = vmatpush.bf16.msra.mxu0 %v311
    %1019 = vmatpush.bf16.msra.mxu0 %v307
    %1020 = vmatmul.bf16.gmra.mxu0 %v495
    %v1021 = vpop.f32.mrf.mxu0
    %v1022 = vadd.f32 0.0, %v1021
    %v1023 = vpop.f32.mrf.mxu0
    %1024 = vdwg.mxu0
    %v1025 = vadd.f32 %v969, %v983
    %v1026 = vadd.f32 %v970, %v996
    %v1027 = vadd.f32 %v971, %v1009
    %v1028 = vadd.f32 %v972, %v1022
    %v1029 = vxor.u32 %v1025, 2147483648
    %v1030 = vmul.f32 %v1029, 1.442695
    %v1031 = vpow.pop %v1030
    %v1032 = vadd.f32 %v1031, 1.0
    %v1033 = vrcp.pop %v1032
    %v1034 = vmul.f32 %v1032, %v1033
    %v1035 = vsub.f32 1.0, %v1034
    %v1036 = vmul.f32 %v1033, %v1035
    %v1037 = vadd.f32 %v1033, %v1036
    %vm1038 = vweird.f32 %v1032
    %vm1039 = vweird.f32 %v1033
    %vm1040 = vmor %vm1038, %vm1039
    %v1041 = vsel %vm1040, %v1033, %v1037
    %v1042 = vand.u32 2147483647, %v1032
    %vm1043 = vcmp.eq.f32.partialorder %v1042, 8.507059e+37
    %v1044 = vand.u32 %v1032, 2147483648
    %v1045 = vor.u32 1.1754944e-38, %v1044
    %v1046 = vsel %vm1043, %v1045, %v1041
    %v1047 = vmul.f32 1.0, %v1046
    %v1048 = vxor.u32 %v1026, 2147483648
    %v1049 = vmul.f32 %v1048, 1.442695
    %v1050 = vpow.pop %v1049
    %v1051 = vadd.f32 %v1050, 1.0
    %v1052 = vrcp.pop %v1051
    %v1053 = vmul.f32 %v1051, %v1052
    %v1054 = vsub.f32 1.0, %v1053
    %v1055 = vmul.f32 %v1052, %v1054
    %v1056 = vadd.f32 %v1052, %v1055
    %vm1057 = vweird.f32 %v1051
    %vm1058 = vweird.f32 %v1052
    %vm1059 = vmor %vm1057, %vm1058
    %v1060 = vsel %vm1059, %v1052, %v1056
    %v1061 = vand.u32 2147483647, %v1051
    %vm1062 = vcmp.eq.f32.partialorder %v1061, 8.507059e+37
    %v1063 = vand.u32 %v1051, 2147483648
    %v1064 = vor.u32 1.1754944e-38, %v1063
    %v1065 = vsel %vm1062, %v1064, %v1060
    %v1066 = vmul.f32 1.0, %v1065
    %v1067 = vtanh.pop %v1027
    %v1068 = vxor.u32 %v1028, 2147483648
    %v1069 = vmul.f32 %v1068, 1.442695
    %v1070 = vpow.pop %v1069
    %v1071 = vadd.f32 %v1070, 1.0
    %v1072 = vrcp.pop %v1071
    %v1073 = vmul.f32 %v1071, %v1072
    %v1074 = vsub.f32 1.0, %v1073
    %v1075 = vmul.f32 %v1072, %v1074
    %v1076 = vadd.f32 %v1072, %v1075
    %vm1077 = vweird.f32 %v1071
    %vm1078 = vweird.f32 %v1072
    %vm1079 = vmor %vm1077, %vm1078
    %v1080 = vsel %vm1079, %v1072, %v1076
    %v1081 = vand.u32 2147483647, %v1071
    %vm1082 = vcmp.eq.f32.partialorder %v1081, 8.507059e+37
    %v1083 = vand.u32 %v1071, 2147483648
    %v1084 = vor.u32 1.1754944e-38, %v1083
    %v1085 = vsel %vm1082, %v1084, %v1080
    %v1086 = vmul.f32 1.0, %v1085
    %v1087 = vmul.f32 %v1066, %v494
    %v1088 = vmul.f32 %v1047, %v1067
    %v1089 = vadd.f32 %v1087, %v1088
    %v1090 = vtanh.pop %v1089
    %v1091 = vmul.f32 %v1086, %v1090
    %vm1092 = vcmp.gt.s32.totalorder %v200, 1
    %v1093 = vsel %vm1092, 1, 0
    %1094 = vset.pattern.permute.xlu0 0
    %1095 = vperm.xlu0 %1094, %v1093
    %v1096 = vpop.permute.xlu0 %1095
    %vm1097 = vcmp.eq.s32.totalorder %v1096, 1
    %v1098 = vsel %vm1097, %v1091, %v493
    %v1099 = vsel %vm1097, %v1089, %v494
    %v1100 = vpack.c.bf16 %v1098, %v1098
    %1101 = vmatpush.bf16.msra.mxu0 %v538
    %1102 = vmatpush.bf16.msra.mxu0 %v537
    %1103 = vmatpush.bf16.msra.mxu0 %v536
    %1104 = vmatpush.bf16.msra.mxu0 %v535
    %1105 = vmatpush.bf16.msra.mxu0 %v534
    %1106 = vmatpush.bf16.msra.mxu0 %v533
    %1107 = vmatpush.bf16.msra.mxu0 %v532
    %1108 = vmatpush.bf16.msra.mxu0 %v531
    %1109 = vmatmul.bf16.gmra.mxu0 %v1100
    %v1110 = vpop.f32.mrf.mxu0
    %v1111 = vadd.f32 %v497, %v1110
    %v1112 = vpop.f32.mrf.mxu0
    %1113 = vdwg.mxu0
    %v1115 = vrot.slane %v1111, 1
    %v1116 = vrot.slane %v1111, 2
    %v1117 = vrot.slane %v1111, 3
    %v1118 = vrot.slane %v1111, 4
    %v1119 = vrot.slane %v1111, 5
    %v1120 = vrot.slane %v1111, 6
    %v1121 = vrot.slane %v1111, 7
    %v1122 = vperm.slane %v1111, 0
    %v1123 = vperm.slane %v1115, 0
    %v1124 = vperm.slane %v1116, 0
    %v1125 = vperm.slane %v1117, 0
    %v1126 = vperm.slane %v1118, 0
    %v1127 = vperm.slane %v1119, 0
    %v1128 = vperm.slane %v1120, 0
    %v1129 = vperm.slane %v1121, 0
    %v1138 = vadd.f32 %v141, %v1122
    %v1139 = vadd.f32 %v142, %v1123
    %v1140 = vadd.f32 %v143, %v1124
    %v1141 = vadd.f32 %v144, %v1125
    %v1142 = vadd.f32 %v145, %v1126
    %v1143 = vadd.f32 %v146, %v1127
    %v1144 = vadd.f32 %v147, %v1128
    %v1145 = vadd.f32 %v148, %v1129
    %v1146 = vtanh.pop %v1138
    %v1147 = vtanh.pop %v1139
    %v1148 = vtanh.pop %v1140
    %v1149 = vtanh.pop %v1141
    %v1150 = vtanh.pop %v1142
    %v1151 = vtanh.pop %v1143
    %v1152 = vtanh.pop %v1144
    %v1153 = vtanh.pop %v1145
    %v1154 = vmul.f32 %v1146, %v601
    %v1155 = vmul.f32 %v1147, %v601
    %v1156 = vmul.f32 %v1148, %v601
    %v1157 = vmul.f32 %v1149, %v601
    %v1158 = vmul.f32 %v1150, %v601
    %v1159 = vmul.f32 %v1151, %v601
    %v1160 = vmul.f32 %v1152, %v601
    %v1161 = vmul.f32 %v1153, %v601
    %1162 = vadd.xlane.f32.xlu0 %v1154
    %v1163 = vpop.xlane.xlu0 %1162
    %1164 = vadd.xlane.f32.xlu0 %v1155
    %v1165 = vpop.xlane.xlu0 %1164
    %1166 = vadd.xlane.f32.xlu0 %v1156
    %v1167 = vpop.xlane.xlu0 %1166
    %1168 = vadd.xlane.f32.xlu0 %v1157
    %v1169 = vpop.xlane.xlu0 %1168
    %1170 = vadd.xlane.f32.xlu0 %v1158
    %v1171 = vpop.xlane.xlu0 %1170
    %1172 = vadd.xlane.f32.xlu0 %v1159
    %v1173 = vpop.xlane.xlu0 %1172
    %1174 = vadd.xlane.f32.xlu0 %v1160
    %v1175 = vpop.xlane.xlu0 %1174
    %1176 = vadd.xlane.f32.xlu0 %v1161
    %v1177 = vpop.xlane.xlu0 %1176
    %v1178 = vadd.f32 %v1163, %v631
    %v1179 = vadd.f32 %v1165, %v631
    %v1180 = vadd.f32 %v1167, %v631
    %v1181 = vadd.f32 %v1169, %v631
    %v1182 = vadd.f32 %v1171, %v631
    %v1183 = vadd.f32 %v1173, %v631
    %v1184 = vadd.f32 %v1175, %v631
    %v1185 = vadd.f32 %v1177, %v631
    %v1194 = vperm.slane %v1178, %v650
    %v1195 = vperm.slane %v1179, %v650
    %v1196 = vperm.slane %v1180, %v650
    %v1197 = vperm.slane %v1181, %v650
    %v1198 = vperm.slane %v1182, %v650
    %v1199 = vperm.slane %v1183, %v650
    %v1200 = vperm.slane %v1184, %v650
    %v1201 = vperm.slane %v1185, %v650
    %v1202 = vsel %vm659, %v1195, %v1194
    %v1203 = vsel %vm661, %v1196, %v1202
    %v1204 = vsel %vm663, %v1197, %v1203
    %v1205 = vsel %vm665, %v1198, %v1204
    %v1206 = vsel %vm667, %v1199, %v1205
    %v1207 = vsel %vm669, %v1200, %v1206
    %v1208 = vsel %vm671, %v1201, %v1207
    %v1210 = vsel %vm674, %v1208, -inf
    %1211 = vmax.xlane.f32.xlu0 %v1210
    %v1212 = vpop.xlane.xlu0 %1211
    %v1214 = vperm.slane %v1212, 0
    %v1215 = vperm.slane %v1212, 1
    %v1216 = vperm.slane %v1212, 2
    %v1217 = vperm.slane %v1212, 3
    %v1218 = vperm.slane %v1212, 4
    %v1219 = vperm.slane %v1212, 5
    %v1220 = vperm.slane %v1212, 6
    %v1221 = vperm.slane %v1212, 7
    %v1230 = vsub.f32 %v1178, %v1214
    %v1231 = vsub.f32 %v1179, %v1215
    %v1232 = vsub.f32 %v1180, %v1216
    %v1233 = vsub.f32 %v1181, %v1217
    %v1234 = vsub.f32 %v1182, %v1218
    %v1235 = vsub.f32 %v1183, %v1219
    %v1236 = vsub.f32 %v1184, %v1220
    %v1237 = vsub.f32 %v1185, %v1221
    %v1238 = vmul.f32 %v1230, 1.442695
    %v1239 = vpow.pop %v1238
    %v1240 = vmul.f32 %v1231, 1.442695
    %v1241 = vpow.pop %v1240
    %v1242 = vmul.f32 %v1232, 1.442695
    %v1243 = vpow.pop %v1242
    %v1244 = vmul.f32 %v1233, 1.442695
    %v1245 = vpow.pop %v1244
    %v1246 = vmul.f32 %v1234, 1.442695
    %v1247 = vpow.pop %v1246
    %v1248 = vmul.f32 %v1235, 1.442695
    %v1249 = vpow.pop %v1248
    %v1250 = vmul.f32 %v1236, 1.442695
    %v1251 = vpow.pop %v1250
    %v1252 = vmul.f32 %v1237, 1.442695
    %v1253 = vpow.pop %v1252
    %1262 = vset.pattern.permute.xlu0 0
    %1263 = vperm.xlu0 %1262, %v1239
    %v1264 = vpop.permute.xlu0 %1263
    %1265 = vset.pattern.permute.xlu0 0
    %1266 = vperm.xlu0 %1265, %v1241
    %v1267 = vpop.permute.xlu0 %1266
    %1268 = vset.pattern.permute.xlu0 0
    %1269 = vperm.xlu0 %1268, %v1243
    %v1270 = vpop.permute.xlu0 %1269
    %1271 = vset.pattern.permute.xlu0 0
    %1272 = vperm.xlu0 %1271, %v1245
    %v1273 = vpop.permute.xlu0 %1272
    %1274 = vset.pattern.permute.xlu0 0
    %1275 = vperm.xlu0 %1274, %v1247
    %v1276 = vpop.permute.xlu0 %1275
    %1277 = vset.pattern.permute.xlu0 0
    %1278 = vperm.xlu0 %1277, %v1249
    %v1279 = vpop.permute.xlu0 %1278
    %1280 = vset.pattern.permute.xlu0 0
    %1281 = vperm.xlu0 %1280, %v1251
    %v1282 = vpop.permute.xlu0 %1281
    %1283 = vset.pattern.permute.xlu0 0
    %1284 = vperm.xlu0 %1283, %v1253
    %v1285 = vpop.permute.xlu0 %1284
    %v1286 = vperm.slane %v1264, %v650
    %v1287 = vperm.slane %v1267, %v650
    %v1288 = vperm.slane %v1270, %v650
    %v1289 = vperm.slane %v1273, %v650
    %v1290 = vperm.slane %v1276, %v650
    %v1291 = vperm.slane %v1279, %v650
    %v1292 = vperm.slane %v1282, %v650
    %v1293 = vperm.slane %v1285, %v650
    %v1294 = vsel %vm659, %v1287, %v1286
    %v1295 = vsel %vm661, %v1288, %v1294
    %v1296 = vsel %vm663, %v1289, %v1295
    %v1297 = vsel %vm665, %v1290, %v1296
    %v1298 = vsel %vm667, %v1291, %v1297
    %v1299 = vsel %vm669, %v1292, %v1298
    %v1300 = vsel %vm671, %v1293, %v1299
    %v1302 = vsel %vm674, %v1300, 0.0
    %1303 = vadd.xlane.f32.xlu0 %v1302
    %v1304 = vpop.xlane.xlu0 %1303
    %v1305 = vrcp.pop %v1304
    %v1307 = vperm.slane %v1305, 0
    %v1308 = vperm.slane %v1305, 1
    %v1309 = vperm.slane %v1305, 2
    %v1310 = vperm.slane %v1305, 3
    %v1311 = vperm.slane %v1305, 4
    %v1312 = vperm.slane %v1305, 5
    %v1313 = vperm.slane %v1305, 6
    %v1314 = vperm.slane %v1305, 7
    %v1323 = vmul.f32 %v1239, %v1307
    %v1324 = vmul.f32 %v1241, %v1308
    %v1325 = vmul.f32 %v1243, %v1309
    %v1326 = vmul.f32 %v1245, %v1310
    %v1327 = vmul.f32 %v1247, %v1311
    %v1328 = vmul.f32 %v1249, %v1312
    %v1329 = vmul.f32 %v1251, %v1313
    %v1330 = vmul.f32 %v1253, %v1314
    %1332 = vset.pattern.permute.xlu0 0
    %1333 = vperm.xlu0 %1332, %v1323
    %v1334 = vpop.permute.xlu0 %1333
    %1337 = vset.pattern.permute.xlu0 0
    %1338 = vperm.xlu0 %1337, %v1324
    %v1339 = vpop.permute.xlu0 %1338
    %1342 = vset.pattern.permute.xlu0 0
    %1343 = vperm.xlu0 %1342, %v1325
    %v1344 = vpop.permute.xlu0 %1343
    %1347 = vset.pattern.permute.xlu0 0
    %1348 = vperm.xlu0 %1347, %v1326
    %v1349 = vpop.permute.xlu0 %1348
    %1352 = vset.pattern.permute.xlu0 0
    %1353 = vperm.xlu0 %1352, %v1327
    %v1354 = vpop.permute.xlu0 %1353
    %1357 = vset.pattern.permute.xlu0 0
    %1358 = vperm.xlu0 %1357, %v1328
    %v1359 = vpop.permute.xlu0 %1358
    %1362 = vset.pattern.permute.xlu0 0
    %1363 = vperm.xlu0 %1362, %v1329
    %v1364 = vpop.permute.xlu0 %1363
    %1367 = vset.pattern.permute.xlu0 0
    %1368 = vperm.xlu0 %1367, %v1330
    %v1369 = vpop.permute.xlu0 %1368
    %v1371 = vmul.f32 %v1334, %v133
    %v1372 = vmul.f32 %v1339, %v134
    %v1373 = vmul.f32 %v1344, %v135
    %v1374 = vmul.f32 %v1349, %v136
    %v1375 = vmul.f32 %v1354, %v137
    %v1376 = vmul.f32 %v1359, %v138
    %v1377 = vmul.f32 %v1364, %v139
    %v1378 = vmul.f32 %v1369, %v140
    %v1379 = vrot.slane %v1371, 4
    %v1380 = vadd.f32 %v1371, %v1379
    %v1381 = vrot.slane %v1380, 2
    %v1382 = vadd.f32 %v1380, %v1381
    %v1383 = vrot.slane %v1382, 1
    %v1384 = vadd.f32 %v1382, %v1383
    %v1385 = vrot.slane %v1372, 4
    %v1386 = vadd.f32 %v1372, %v1385
    %v1387 = vrot.slane %v1386, 2
    %v1388 = vadd.f32 %v1386, %v1387
    %v1389 = vrot.slane %v1388, 1
    %v1390 = vadd.f32 %v1388, %v1389
    %v1391 = vrot.slane %v1373, 4
    %v1392 = vadd.f32 %v1373, %v1391
    %v1393 = vrot.slane %v1392, 2
    %v1394 = vadd.f32 %v1392, %v1393
    %v1395 = vrot.slane %v1394, 1
    %v1396 = vadd.f32 %v1394, %v1395
    %v1397 = vrot.slane %v1374, 4
    %v1398 = vadd.f32 %v1374, %v1397
    %v1399 = vrot.slane %v1398, 2
    %v1400 = vadd.f32 %v1398, %v1399
    %v1401 = vrot.slane %v1400, 1
    %v1402 = vadd.f32 %v1400, %v1401
    %v1403 = vrot.slane %v1375, 4
    %v1404 = vadd.f32 %v1375, %v1403
    %v1405 = vrot.slane %v1404, 2
    %v1406 = vadd.f32 %v1404, %v1405
    %v1407 = vrot.slane %v1406, 1
    %v1408 = vadd.f32 %v1406, %v1407
    %v1409 = vrot.slane %v1376, 4
    %v1410 = vadd.f32 %v1376, %v1409
    %v1411 = vrot.slane %v1410, 2
    %v1412 = vadd.f32 %v1410, %v1411
    %v1413 = vrot.slane %v1412, 1
    %v1414 = vadd.f32 %v1412, %v1413
    %v1415 = vrot.slane %v1377, 4
    %v1416 = vadd.f32 %v1377, %v1415
    %v1417 = vrot.slane %v1416, 2
    %v1418 = vadd.f32 %v1416, %v1417
    %v1419 = vrot.slane %v1418, 1
    %v1420 = vadd.f32 %v1418, %v1419
    %v1421 = vrot.slane %v1378, 4
    %v1422 = vadd.f32 %v1378, %v1421
    %v1423 = vrot.slane %v1422, 2
    %v1424 = vadd.f32 %v1422, %v1423
    %v1425 = vrot.slane %v1424, 1
    %v1426 = vadd.f32 %v1424, %v1425
    %v1428 = vrot.slane %v1098, 1
    %v1429 = vrot.slane %v1098, 2
    %v1430 = vrot.slane %v1098, 3
    %v1431 = vrot.slane %v1098, 4
    %v1432 = vrot.slane %v1098, 5
    %v1433 = vrot.slane %v1098, 6
    %v1434 = vrot.slane %v1098, 7
    %v1443 = vadd.f32 %v1384, %v1098
    %v1444 = vadd.f32 %v1390, %v1428
    %v1445 = vadd.f32 %v1396, %v1429
    %v1446 = vadd.f32 %v1402, %v1430
    %v1447 = vadd.f32 %v1408, %v1431
    %v1448 = vadd.f32 %v1414, %v1432
    %v1449 = vadd.f32 %v1420, %v1433
    %v1450 = vadd.f32 %v1426, %v1434
    %v1451 = vcvt.s32.f32 %v1093
    %1453 = vset.pattern.permute.xlu0 0
    %1454 = vperm.xlu0 %1453, %v1451
    %v1455 = vpop.permute.xlu0 %1454
    %v1456 = vrot.slane %v1455, 1
    %v1457 = vrot.slane %v1455, 2
    %v1458 = vrot.slane %v1455, 3
    %v1459 = vrot.slane %v1455, 4
    %v1460 = vrot.slane %v1455, 5
    %v1461 = vrot.slane %v1455, 6
    %v1462 = vrot.slane %v1455, 7
    %v1471 = vmul.f32 %v1443, %v1455
    %v1472 = vmul.f32 %v1444, %v1456
    %v1473 = vmul.f32 %v1445, %v1457
    %v1474 = vmul.f32 %v1446, %v1458
    %v1475 = vmul.f32 %v1447, %v1459
    %v1476 = vmul.f32 %v1448, %v1460
    %v1477 = vmul.f32 %v1449, %v1461
    %v1478 = vmul.f32 %v1450, %v1462
    %v1487 = vrot.slane %v1472, 7
    %v1488 = vsel %vm659, %v1487, %v1471
    %v1489 = vrot.slane %v1473, 6
    %v1490 = vsel %vm661, %v1489, %v1488
    %v1491 = vrot.slane %v1474, 5
    %v1492 = vsel %vm663, %v1491, %v1490
    %v1493 = vrot.slane %v1475, 4
    %v1494 = vsel %vm665, %v1493, %v1492
    %v1495 = vrot.slane %v1476, 3
    %v1496 = vsel %vm667, %v1495, %v1494
    %v1497 = vrot.slane %v1477, 2
    %v1498 = vsel %vm669, %v1497, %v1496
    %v1499 = vrot.slane %v1478, 1
    %v1500 = vsel %vm671, %v1499, %v1498
    %s1502 = scalar_lea.vmem [#allocation14], 8
    %1503 = vst [vmem:[%s1502] sm:$0xff] %v1500
    %s1504 = scalar_lea.vmem [#allocation3], 64
    %v1505 = vld [vmem:[%s1504] sm:$0xff]
    %v1506 = vld [vmem:[%s1504 + $0x8] sm:$0xff]
    %v1507 = vld [vmem:[%s1504 + $0x10] sm:$0xff]
    %v1508 = vld [vmem:[%s1504 + $0x18] sm:$0xff]
    %1509 = vmatpush.bf16.msra.mxu0 %v332
    %1510 = vmatpush.bf16.msra.mxu0 %v328
    %1511 = vmatpush.bf16.msra.mxu0 %v324
    %1512 = vmatpush.bf16.msra.mxu0 %v320
    %1513 = vmatpush.bf16.msra.mxu0 %v316
    %1514 = vmatpush.bf16.msra.mxu0 %v312
    %1515 = vmatpush.bf16.msra.mxu0 %v308
    %1516 = vmatpush.bf16.msra.mxu0 %v304
    %1517 = vmatmul.bf16.gmra.mxu0 %v1100
    %v1518 = vpop.f32.mrf.mxu0
    %v1519 = vadd.f32 0.0, %v1518
    %v1520 = vpop.f32.mrf.mxu0
    %1521 = vdwg.mxu0
    %1522 = vmatpush.bf16.msra.mxu0 %v333
    %1523 = vmatpush.bf16.msra.mxu0 %v329
    %1524 = vmatpush.bf16.msra.mxu0 %v325
    %1525 = vmatpush.bf16.msra.mxu0 %v321
    %1526 = vmatpush.bf16.msra.mxu0 %v317
    %1527 = vmatpush.bf16.msra.mxu0 %v313
    %1528 = vmatpush.bf16.msra.mxu0 %v309
    %1529 = vmatpush.bf16.msra.mxu0 %v305
    %1530 = vmatmul.bf16.gmra.mxu0 %v1100
    %v1531 = vpop.f32.mrf.mxu0
    %v1532 = vadd.f32 0.0, %v1531
    %v1533 = vpop.f32.mrf.mxu0
    %1534 = vdwg.mxu0
    %1535 = vmatpush.bf16.msra.mxu0 %v334
    %1536 = vmatpush.bf16.msra.mxu0 %v330
    %1537 = vmatpush.bf16.msra.mxu0 %v326
    %1538 = vmatpush.bf16.msra.mxu0 %v322
    %1539 = vmatpush.bf16.msra.mxu0 %v318
    %1540 = vmatpush.bf16.msra.mxu0 %v314
    %1541 = vmatpush.bf16.msra.mxu0 %v310
    %1542 = vmatpush.bf16.msra.mxu0 %v306
    %1543 = vmatmul.bf16.gmra.mxu0 %v1100
    %v1544 = vpop.f32.mrf.mxu0
    %v1545 = vadd.f32 0.0, %v1544
    %v1546 = vpop.f32.mrf.mxu0
    %1547 = vdwg.mxu0
    %1548 = vmatpush.bf16.msra.mxu0 %v335
    %1549 = vmatpush.bf16.msra.mxu0 %v331
    %1550 = vmatpush.bf16.msra.mxu0 %v327
    %1551 = vmatpush.bf16.msra.mxu0 %v323
    %1552 = vmatpush.bf16.msra.mxu0 %v319
    %1553 = vmatpush.bf16.msra.mxu0 %v315
    %1554 = vmatpush.bf16.msra.mxu0 %v311
    %1555 = vmatpush.bf16.msra.mxu0 %v307
    %1556 = vmatmul.bf16.gmra.mxu0 %v1100
    %v1557 = vpop.f32.mrf.mxu0
    %v1558 = vadd.f32 0.0, %v1557
    %v1559 = vpop.f32.mrf.mxu0
    %1560 = vdwg.mxu0
    %v1561 = vadd.f32 %v1505, %v1519
    %v1562 = vadd.f32 %v1506, %v1532
    %v1563 = vadd.f32 %v1507, %v1545
    %v1564 = vadd.f32 %v1508, %v1558
    %v1565 = vxor.u32 %v1561, 2147483648
    %v1566 = vmul.f32 %v1565, 1.442695
    %v1567 = vpow.pop %v1566
    %v1568 = vadd.f32 %v1567, 1.0
    %v1569 = vrcp.pop %v1568
    %v1570 = vmul.f32 %v1568, %v1569
    %v1571 = vsub.f32 1.0, %v1570
    %v1572 = vmul.f32 %v1569, %v1571
    %v1573 = vadd.f32 %v1569, %v1572
    %vm1574 = vweird.f32 %v1568
    %vm1575 = vweird.f32 %v1569
    %vm1576 = vmor %vm1574, %vm1575
    %v1577 = vsel %vm1576, %v1569, %v1573
    %v1578 = vand.u32 2147483647, %v1568
    %vm1579 = vcmp.eq.f32.partialorder %v1578, 8.507059e+37
    %v1580 = vand.u32 %v1568, 2147483648
    %v1581 = vor.u32 1.1754944e-38, %v1580
    %v1582 = vsel %vm1579, %v1581, %v1577
    %v1583 = vmul.f32 1.0, %v1582
    %v1584 = vxor.u32 %v1562, 2147483648
    %v1585 = vmul.f32 %v1584, 1.442695
    %v1586 = vpow.pop %v1585
    %v1587 = vadd.f32 %v1586, 1.0
    %v1588 = vrcp.pop %v1587
    %v1589 = vmul.f32 %v1587, %v1588
    %v1590 = vsub.f32 1.0, %v1589
    %v1591 = vmul.f32 %v1588, %v1590
    %v1592 = vadd.f32 %v1588, %v1591
    %vm1593 = vweird.f32 %v1587
    %vm1594 = vweird.f32 %v1588
    %vm1595 = vmor %vm1593, %vm1594
    %v1596 = vsel %vm1595, %v1588, %v1592
    %v1597 = vand.u32 2147483647, %v1587
    %vm1598 = vcmp.eq.f32.partialorder %v1597, 8.507059e+37
    %v1599 = vand.u32 %v1587, 2147483648
    %v1600 = vor.u32 1.1754944e-38, %v1599
    %v1601 = vsel %vm1598, %v1600, %v1596
    %v1602 = vmul.f32 1.0, %v1601
    %v1603 = vtanh.pop %v1563
    %v1604 = vxor.u32 %v1564, 2147483648
    %v1605 = vmul.f32 %v1604, 1.442695
    %v1606 = vpow.pop %v1605
    %v1607 = vadd.f32 %v1606, 1.0
    %v1608 = vrcp.pop %v1607
    %v1609 = vmul.f32 %v1607, %v1608
    %v1610 = vsub.f32 1.0, %v1609
    %v1611 = vmul.f32 %v1608, %v1610
    %v1612 = vadd.f32 %v1608, %v1611
    %vm1613 = vweird.f32 %v1607
    %vm1614 = vweird.f32 %v1608
    %vm1615 = vmor %vm1613, %vm1614
    %v1616 = vsel %vm1615, %v1608, %v1612
    %v1617 = vand.u32 2147483647, %v1607
    %vm1618 = vcmp.eq.f32.partialorder %v1617, 8.507059e+37
    %v1619 = vand.u32 %v1607, 2147483648
    %v1620 = vor.u32 1.1754944e-38, %v1619
    %v1621 = vsel %vm1618, %v1620, %v1616
    %v1622 = vmul.f32 1.0, %v1621
    %v1623 = vmul.f32 %v1602, %v1099
    %v1624 = vmul.f32 %v1583, %v1603
    %v1625 = vadd.f32 %v1623, %v1624
    %v1626 = vtanh.pop %v1625
    %v1627 = vmul.f32 %v1622, %v1626
    %vm1628 = vcmp.gt.s32.totalorder %v200, 2
    %v1629 = vsel %vm1628, 1, 0
    %1630 = vset.pattern.permute.xlu0 0
    %1631 = vperm.xlu0 %1630, %v1629
    %v1632 = vpop.permute.xlu0 %1631
    %vm1633 = vcmp.eq.s32.totalorder %v1632, 1
    %v1634 = vsel %vm1633, %v1627, %v1098
    %v1635 = vsel %vm1633, %v1625, %v1099
    %v1636 = vpack.c.bf16 %v1634, %v1634
    %1637 = vmatpush.bf16.msra.mxu0 %v538
    %1638 = vmatpush.bf16.msra.mxu0 %v537
    %1639 = vmatpush.bf16.msra.mxu0 %v536
    %1640 = vmatpush.bf16.msra.mxu0 %v535
    %1641 = vmatpush.bf16.msra.mxu0 %v534
    %1642 = vmatpush.bf16.msra.mxu0 %v533
    %1643 = vmatpush.bf16.msra.mxu0 %v532
    %1644 = vmatpush.bf16.msra.mxu0 %v531
    %1645 = vmatmul.bf16.gmra.mxu0 %v1636
    %v1646 = vpop.f32.mrf.mxu0
    %v1647 = vadd.f32 %v497, %v1646
    %v1648 = vpop.f32.mrf.mxu0
    %1649 = vdwg.mxu0
    %v1651 = vrot.slane %v1647, 1
    %v1652 = vrot.slane %v1647, 2
    %v1653 = vrot.slane %v1647, 3
    %v1654 = vrot.slane %v1647, 4
    %v1655 = vrot.slane %v1647, 5
    %v1656 = vrot.slane %v1647, 6
    %v1657 = vrot.slane %v1647, 7
    %v1658 = vperm.slane %v1647, 0
    %v1659 = vperm.slane %v1651, 0
    %v1660 = vperm.slane %v1652, 0
    %v1661 = vperm.slane %v1653, 0
    %v1662 = vperm.slane %v1654, 0
    %v1663 = vperm.slane %v1655, 0
    %v1664 = vperm.slane %v1656, 0
    %v1665 = vperm.slane %v1657, 0
    %v1674 = vadd.f32 %v141, %v1658
    %v1675 = vadd.f32 %v142, %v1659
    %v1676 = vadd.f32 %v143, %v1660
    %v1677 = vadd.f32 %v144, %v1661
    %v1678 = vadd.f32 %v145, %v1662
    %v1679 = vadd.f32 %v146, %v1663
    %v1680 = vadd.f32 %v147, %v1664
    %v1681 = vadd.f32 %v148, %v1665
    %v1682 = vtanh.pop %v1674
    %v1683 = vtanh.pop %v1675
    %v1684 = vtanh.pop %v1676
    %v1685 = vtanh.pop %v1677
    %v1686 = vtanh.pop %v1678
    %v1687 = vtanh.pop %v1679
    %v1688 = vtanh.pop %v1680
    %v1689 = vtanh.pop %v1681
    %v1690 = vmul.f32 %v1682, %v601
    %v1691 = vmul.f32 %v1683, %v601
    %v1692 = vmul.f32 %v1684, %v601
    %v1693 = vmul.f32 %v1685, %v601
    %v1694 = vmul.f32 %v1686, %v601
    %v1695 = vmul.f32 %v1687, %v601
    %v1696 = vmul.f32 %v1688, %v601
    %v1697 = vmul.f32 %v1689, %v601
    %1698 = vadd.xlane.f32.xlu0 %v1690
    %v1699 = vpop.xlane.xlu0 %1698
    %1700 = vadd.xlane.f32.xlu0 %v1691
    %v1701 = vpop.xlane.xlu0 %1700
    %1702 = vadd.xlane.f32.xlu0 %v1692
    %v1703 = vpop.xlane.xlu0 %1702
    %1704 = vadd.xlane.f32.xlu0 %v1693
    %v1705 = vpop.xlane.xlu0 %1704
    %1706 = vadd.xlane.f32.xlu0 %v1694
    %v1707 = vpop.xlane.xlu0 %1706
    %1708 = vadd.xlane.f32.xlu0 %v1695
    %v1709 = vpop.xlane.xlu0 %1708
    %1710 = vadd.xlane.f32.xlu0 %v1696
    %v1711 = vpop.xlane.xlu0 %1710
    %1712 = vadd.xlane.f32.xlu0 %v1697
    %v1713 = vpop.xlane.xlu0 %1712
    %v1714 = vadd.f32 %v1699, %v631
    %v1715 = vadd.f32 %v1701, %v631
    %v1716 = vadd.f32 %v1703, %v631
    %v1717 = vadd.f32 %v1705, %v631
    %v1718 = vadd.f32 %v1707, %v631
    %v1719 = vadd.f32 %v1709, %v631
    %v1720 = vadd.f32 %v1711, %v631
    %v1721 = vadd.f32 %v1713, %v631
    %v1730 = vperm.slane %v1714, %v650
    %v1731 = vperm.slane %v1715, %v650
    %v1732 = vperm.slane %v1716, %v650
    %v1733 = vperm.slane %v1717, %v650
    %v1734 = vperm.slane %v1718, %v650
    %v1735 = vperm.slane %v1719, %v650
    %v1736 = vperm.slane %v1720, %v650
    %v1737 = vperm.slane %v1721, %v650
    %v1738 = vsel %vm659, %v1731, %v1730
    %v1739 = vsel %vm661, %v1732, %v1738
    %v1740 = vsel %vm663, %v1733, %v1739
    %v1741 = vsel %vm665, %v1734, %v1740
    %v1742 = vsel %vm667, %v1735, %v1741
    %v1743 = vsel %vm669, %v1736, %v1742
    %v1744 = vsel %vm671, %v1737, %v1743
    %v1746 = vsel %vm674, %v1744, -inf
    %1747 = vmax.xlane.f32.xlu0 %v1746
    %v1748 = vpop.xlane.xlu0 %1747
    %v1750 = vperm.slane %v1748, 0
    %v1751 = vperm.slane %v1748, 1
    %v1752 = vperm.slane %v1748, 2
    %v1753 = vperm.slane %v1748, 3
    %v1754 = vperm.slane %v1748, 4
    %v1755 = vperm.slane %v1748, 5
    %v1756 = vperm.slane %v1748, 6
    %v1757 = vperm.slane %v1748, 7
    %v1766 = vsub.f32 %v1714, %v1750
    %v1767 = vsub.f32 %v1715, %v1751
    %v1768 = vsub.f32 %v1716, %v1752
    %v1769 = vsub.f32 %v1717, %v1753
    %v1770 = vsub.f32 %v1718, %v1754
    %v1771 = vsub.f32 %v1719, %v1755
    %v1772 = vsub.f32 %v1720, %v1756
    %v1773 = vsub.f32 %v1721, %v1757
    %v1774 = vmul.f32 %v1766, 1.442695
    %v1775 = vpow.pop %v1774
    %v1776 = vmul.f32 %v1767, 1.442695
    %v1777 = vpow.pop %v1776
    %v1778 = vmul.f32 %v1768, 1.442695
    %v1779 = vpow.pop %v1778
    %v1780 = vmul.f32 %v1769, 1.442695
    %v1781 = vpow.pop %v1780
    %v1782 = vmul.f32 %v1770, 1.442695
    %v1783 = vpow.pop %v1782
    %v1784 = vmul.f32 %v1771, 1.442695
    %v1785 = vpow.pop %v1784
    %v1786 = vmul.f32 %v1772, 1.442695
    %v1787 = vpow.pop %v1786
    %v1788 = vmul.f32 %v1773, 1.442695
    %v1789 = vpow.pop %v1788
    %1798 = vset.pattern.permute.xlu0 0
    %1799 = vperm.xlu0 %1798, %v1775
    %v1800 = vpop.permute.xlu0 %1799
    %1801 = vset.pattern.permute.xlu0 0
    %1802 = vperm.xlu0 %1801, %v1777
    %v1803 = vpop.permute.xlu0 %1802
    %1804 = vset.pattern.permute.xlu0 0
    %1805 = vperm.xlu0 %1804, %v1779
    %v1806 = vpop.permute.xlu0 %1805
    %1807 = vset.pattern.permute.xlu0 0
    %1808 = vperm.xlu0 %1807, %v1781
    %v1809 = vpop.permute.xlu0 %1808
    %1810 = vset.pattern.permute.xlu0 0
    %1811 = vperm.xlu0 %1810, %v1783
    %v1812 = vpop.permute.xlu0 %1811
    %1813 = vset.pattern.permute.xlu0 0
    %1814 = vperm.xlu0 %1813, %v1785
    %v1815 = vpop.permute.xlu0 %1814
    %1816 = vset.pattern.permute.xlu0 0
    %1817 = vperm.xlu0 %1816, %v1787
    %v1818 = vpop.permute.xlu0 %1817
    %1819 = vset.pattern.permute.xlu0 0
    %1820 = vperm.xlu0 %1819, %v1789
    %v1821 = vpop.permute.xlu0 %1820
    %v1822 = vperm.slane %v1800, %v650
    %v1823 = vperm.slane %v1803, %v650
    %v1824 = vperm.slane %v1806, %v650
    %v1825 = vperm.slane %v1809, %v650
    %v1826 = vperm.slane %v1812, %v650
    %v1827 = vperm.slane %v1815, %v650
    %v1828 = vperm.slane %v1818, %v650
    %v1829 = vperm.slane %v1821, %v650
    %v1830 = vsel %vm659, %v1823, %v1822
    %v1831 = vsel %vm661, %v1824, %v1830
    %v1832 = vsel %vm663, %v1825, %v1831
    %v1833 = vsel %vm665, %v1826, %v1832
    %v1834 = vsel %vm667, %v1827, %v1833
    %v1835 = vsel %vm669, %v1828, %v1834
    %v1836 = vsel %vm671, %v1829, %v1835
    %v1838 = vsel %vm674, %v1836, 0.0
    %1839 = vadd.xlane.f32.xlu0 %v1838
    %v1840 = vpop.xlane.xlu0 %1839
    %v1841 = vrcp.pop %v1840
    %v1843 = vperm.slane %v1841, 0
    %v1844 = vperm.slane %v1841, 1
    %v1845 = vperm.slane %v1841, 2
    %v1846 = vperm.slane %v1841, 3
    %v1847 = vperm.slane %v1841, 4
    %v1848 = vperm.slane %v1841, 5
    %v1849 = vperm.slane %v1841, 6
    %v1850 = vperm.slane %v1841, 7
    %v1859 = vmul.f32 %v1775, %v1843
    %v1860 = vmul.f32 %v1777, %v1844
    %v1861 = vmul.f32 %v1779, %v1845
    %v1862 = vmul.f32 %v1781, %v1846
    %v1863 = vmul.f32 %v1783, %v1847
    %v1864 = vmul.f32 %v1785, %v1848
    %v1865 = vmul.f32 %v1787, %v1849
    %v1866 = vmul.f32 %v1789, %v1850
    %1868 = vset.pattern.permute.xlu0 0
    %1869 = vperm.xlu0 %1868, %v1859
    %v1870 = vpop.permute.xlu0 %1869
    %1873 = vset.pattern.permute.xlu0 0
    %1874 = vperm.xlu0 %1873, %v1860
    %v1875 = vpop.permute.xlu0 %1874
    %1878 = vset.pattern.permute.xlu0 0
    %1879 = vperm.xlu0 %1878, %v1861
    %v1880 = vpop.permute.xlu0 %1879
    %1883 = vset.pattern.permute.xlu0 0
    %1884 = vperm.xlu0 %1883, %v1862
    %v1885 = vpop.permute.xlu0 %1884
    %1888 = vset.pattern.permute.xlu0 0
    %1889 = vperm.xlu0 %1888, %v1863
    %v1890 = vpop.permute.xlu0 %1889
    %1893 = vset.pattern.permute.xlu0 0
    %1894 = vperm.xlu0 %1893, %v1864
    %v1895 = vpop.permute.xlu0 %1894
    %1898 = vset.pattern.permute.xlu0 0
    %1899 = vperm.xlu0 %1898, %v1865
    %v1900 = vpop.permute.xlu0 %1899
    %1903 = vset.pattern.permute.xlu0 0
    %1904 = vperm.xlu0 %1903, %v1866
    %v1905 = vpop.permute.xlu0 %1904
    %v1907 = vmul.f32 %v1870, %v133
    %v1908 = vmul.f32 %v1875, %v134
    %v1909 = vmul.f32 %v1880, %v135
    %v1910 = vmul.f32 %v1885, %v136
    %v1911 = vmul.f32 %v1890, %v137
    %v1912 = vmul.f32 %v1895, %v138
    %v1913 = vmul.f32 %v1900, %v139
    %v1914 = vmul.f32 %v1905, %v140
    %v1915 = vrot.slane %v1907, 4
    %v1916 = vadd.f32 %v1907, %v1915
    %v1917 = vrot.slane %v1916, 2
    %v1918 = vadd.f32 %v1916, %v1917
    %v1919 = vrot.slane %v1918, 1
    %v1920 = vadd.f32 %v1918, %v1919
    %v1921 = vrot.slane %v1908, 4
    %v1922 = vadd.f32 %v1908, %v1921
    %v1923 = vrot.slane %v1922, 2
    %v1924 = vadd.f32 %v1922, %v1923
    %v1925 = vrot.slane %v1924, 1
    %v1926 = vadd.f32 %v1924, %v1925
    %v1927 = vrot.slane %v1909, 4
    %v1928 = vadd.f32 %v1909, %v1927
    %v1929 = vrot.slane %v1928, 2
    %v1930 = vadd.f32 %v1928, %v1929
    %v1931 = vrot.slane %v1930, 1
    %v1932 = vadd.f32 %v1930, %v1931
    %v1933 = vrot.slane %v1910, 4
    %v1934 = vadd.f32 %v1910, %v1933
    %v1935 = vrot.slane %v1934, 2
    %v1936 = vadd.f32 %v1934, %v1935
    %v1937 = vrot.slane %v1936, 1
    %v1938 = vadd.f32 %v1936, %v1937
    %v1939 = vrot.slane %v1911, 4
    %v1940 = vadd.f32 %v1911, %v1939
    %v1941 = vrot.slane %v1940, 2
    %v1942 = vadd.f32 %v1940, %v1941
    %v1943 = vrot.slane %v1942, 1
    %v1944 = vadd.f32 %v1942, %v1943
    %v1945 = vrot.slane %v1912, 4
    %v1946 = vadd.f32 %v1912, %v1945
    %v1947 = vrot.slane %v1946, 2
    %v1948 = vadd.f32 %v1946, %v1947
    %v1949 = vrot.slane %v1948, 1
    %v1950 = vadd.f32 %v1948, %v1949
    %v1951 = vrot.slane %v1913, 4
    %v1952 = vadd.f32 %v1913, %v1951
    %v1953 = vrot.slane %v1952, 2
    %v1954 = vadd.f32 %v1952, %v1953
    %v1955 = vrot.slane %v1954, 1
    %v1956 = vadd.f32 %v1954, %v1955
    %v1957 = vrot.slane %v1914, 4
    %v1958 = vadd.f32 %v1914, %v1957
    %v1959 = vrot.slane %v1958, 2
    %v1960 = vadd.f32 %v1958, %v1959
    %v1961 = vrot.slane %v1960, 1
    %v1962 = vadd.f32 %v1960, %v1961
    %v1964 = vrot.slane %v1634, 1
    %v1965 = vrot.slane %v1634, 2
    %v1966 = vrot.slane %v1634, 3
    %v1967 = vrot.slane %v1634, 4
    %v1968 = vrot.slane %v1634, 5
    %v1969 = vrot.slane %v1634, 6
    %v1970 = vrot.slane %v1634, 7
    %v1979 = vadd.f32 %v1920, %v1634
    %v1980 = vadd.f32 %v1926, %v1964
    %v1981 = vadd.f32 %v1932, %v1965
    %v1982 = vadd.f32 %v1938, %v1966
    %v1983 = vadd.f32 %v1944, %v1967
    %v1984 = vadd.f32 %v1950, %v1968
    %v1985 = vadd.f32 %v1956, %v1969
    %v1986 = vadd.f32 %v1962, %v1970
    %v1987 = vcvt.s32.f32 %v1629
    %1989 = vset.pattern.permute.xlu0 0
    %1990 = vperm.xlu0 %1989, %v1987
    %v1991 = vpop.permute.xlu0 %1990
    %v1992 = vrot.slane %v1991, 1
    %v1993 = vrot.slane %v1991, 2
    %v1994 = vrot.slane %v1991, 3
    %v1995 = vrot.slane %v1991, 4
    %v1996 = vrot.slane %v1991, 5
    %v1997 = vrot.slane %v1991, 6
    %v1998 = vrot.slane %v1991, 7
    %v2007 = vmul.f32 %v1979, %v1991
    %v2008 = vmul.f32 %v1980, %v1992
    %v2009 = vmul.f32 %v1981, %v1993
    %v2010 = vmul.f32 %v1982, %v1994
    %v2011 = vmul.f32 %v1983, %v1995
    %v2012 = vmul.f32 %v1984, %v1996
    %v2013 = vmul.f32 %v1985, %v1997
    %v2014 = vmul.f32 %v1986, %v1998
    %v2023 = vrot.slane %v2008, 7
    %v2024 = vsel %vm659, %v2023, %v2007
    %v2025 = vrot.slane %v2009, 6
    %v2026 = vsel %vm661, %v2025, %v2024
    %v2027 = vrot.slane %v2010, 5
    %v2028 = vsel %vm663, %v2027, %v2026
    %v2029 = vrot.slane %v2011, 4
    %v2030 = vsel %vm665, %v2029, %v2028
    %v2031 = vrot.slane %v2012, 3
    %v2032 = vsel %vm667, %v2031, %v2030
    %v2033 = vrot.slane %v2013, 2
    %v2034 = vsel %vm669, %v2033, %v2032
    %v2035 = vrot.slane %v2014, 1
    %v2036 = vsel %vm671, %v2035, %v2034
    %s2038 = scalar_lea.vmem [#allocation14], 16
    %2039 = vst [vmem:[%s2038] sm:$0xff] %v2036
    %s2040 = scalar_lea.vmem [#allocation3], 96
    %v2041 = vld [vmem:[%s2040] sm:$0xff]
    %v2042 = vld [vmem:[%s2040 + $0x8] sm:$0xff]
    %v2043 = vld [vmem:[%s2040 + $0x10] sm:$0xff]
    %v2044 = vld [vmem:[%s2040 + $0x18] sm:$0xff]
    %2045 = vmatpush.bf16.msra.mxu0 %v332
    %2046 = vmatpush.bf16.msra.mxu0 %v328
    %2047 = vmatpush.bf16.msra.mxu0 %v324
    %2048 = vmatpush.bf16.msra.mxu0 %v320
    %2049 = vmatpush.bf16.msra.mxu0 %v316
    %2050 = vmatpush.bf16.msra.mxu0 %v312
    %2051 = vmatpush.bf16.msra.mxu0 %v308
    %2052 = vmatpush.bf16.msra.mxu0 %v304
    %2053 = vmatmul.bf16.gmra.mxu0 %v1636
    %v2054 = vpop.f32.mrf.mxu0
    %v2055 = vadd.f32 0.0, %v2054
    %v2056 = vpop.f32.mrf.mxu0
    %2057 = vdwg.mxu0
    %2058 = vmatpush.bf16.msra.mxu0 %v333
    %2059 = vmatpush.bf16.msra.mxu0 %v329
    %2060 = vmatpush.bf16.msra.mxu0 %v325
    %2061 = vmatpush.bf16.msra.mxu0 %v321
    %2062 = vmatpush.bf16.msra.mxu0 %v317
    %2063 = vmatpush.bf16.msra.mxu0 %v313
    %2064 = vmatpush.bf16.msra.mxu0 %v309
    %2065 = vmatpush.bf16.msra.mxu0 %v305
    %2066 = vmatmul.bf16.gmra.mxu0 %v1636
    %v2067 = vpop.f32.mrf.mxu0
    %v2068 = vadd.f32 0.0, %v2067
    %v2069 = vpop.f32.mrf.mxu0
    %2070 = vdwg.mxu0
    %2071 = vmatpush.bf16.msra.mxu0 %v334
    %2072 = vmatpush.bf16.msra.mxu0 %v330
    %2073 = vmatpush.bf16.msra.mxu0 %v326
    %2074 = vmatpush.bf16.msra.mxu0 %v322
    %2075 = vmatpush.bf16.msra.mxu0 %v318
    %2076 = vmatpush.bf16.msra.mxu0 %v314
    %2077 = vmatpush.bf16.msra.mxu0 %v310
    %2078 = vmatpush.bf16.msra.mxu0 %v306
    %2079 = vmatmul.bf16.gmra.mxu0 %v1636
    %v2080 = vpop.f32.mrf.mxu0
    %v2081 = vadd.f32 0.0, %v2080
    %v2082 = vpop.f32.mrf.mxu0
    %2083 = vdwg.mxu0
    %2084 = vmatpush.bf16.msra.mxu0 %v335
    %2085 = vmatpush.bf16.msra.mxu0 %v331
    %2086 = vmatpush.bf16.msra.mxu0 %v327
    %2087 = vmatpush.bf16.msra.mxu0 %v323
    %2088 = vmatpush.bf16.msra.mxu0 %v319
    %2089 = vmatpush.bf16.msra.mxu0 %v315
    %2090 = vmatpush.bf16.msra.mxu0 %v311
    %2091 = vmatpush.bf16.msra.mxu0 %v307
    %2092 = vmatmul.bf16.gmra.mxu0 %v1636
    %v2093 = vpop.f32.mrf.mxu0
    %v2094 = vadd.f32 0.0, %v2093
    %v2095 = vpop.f32.mrf.mxu0
    %2096 = vdwg.mxu0
    %v2097 = vadd.f32 %v2041, %v2055
    %v2098 = vadd.f32 %v2042, %v2068
    %v2099 = vadd.f32 %v2043, %v2081
    %v2100 = vadd.f32 %v2044, %v2094
    %v2101 = vxor.u32 %v2097, 2147483648
    %v2102 = vmul.f32 %v2101, 1.442695
    %v2103 = vpow.pop %v2102
    %v2104 = vadd.f32 %v2103, 1.0
    %v2105 = vrcp.pop %v2104
    %v2106 = vmul.f32 %v2104, %v2105
    %v2107 = vsub.f32 1.0, %v2106
    %v2108 = vmul.f32 %v2105, %v2107
    %v2109 = vadd.f32 %v2105, %v2108
    %vm2110 = vweird.f32 %v2104
    %vm2111 = vweird.f32 %v2105
    %vm2112 = vmor %vm2110, %vm2111
    %v2113 = vsel %vm2112, %v2105, %v2109
    %v2114 = vand.u32 2147483647, %v2104
    %vm2115 = vcmp.eq.f32.partialorder %v2114, 8.507059e+37
    %v2116 = vand.u32 %v2104, 2147483648
    %v2117 = vor.u32 1.1754944e-38, %v2116
    %v2118 = vsel %vm2115, %v2117, %v2113
    %v2119 = vmul.f32 1.0, %v2118
    %v2120 = vxor.u32 %v2098, 2147483648
    %v2121 = vmul.f32 %v2120, 1.442695
    %v2122 = vpow.pop %v2121
    %v2123 = vadd.f32 %v2122, 1.0
    %v2124 = vrcp.pop %v2123
    %v2125 = vmul.f32 %v2123, %v2124
    %v2126 = vsub.f32 1.0, %v2125
    %v2127 = vmul.f32 %v2124, %v2126
    %v2128 = vadd.f32 %v2124, %v2127
    %vm2129 = vweird.f32 %v2123
    %vm2130 = vweird.f32 %v2124
    %vm2131 = vmor %vm2129, %vm2130
    %v2132 = vsel %vm2131, %v2124, %v2128
    %v2133 = vand.u32 2147483647, %v2123
    %vm2134 = vcmp.eq.f32.partialorder %v2133, 8.507059e+37
    %v2135 = vand.u32 %v2123, 2147483648
    %v2136 = vor.u32 1.1754944e-38, %v2135
    %v2137 = vsel %vm2134, %v2136, %v2132
    %v2138 = vmul.f32 1.0, %v2137
    %v2139 = vtanh.pop %v2099
    %v2140 = vxor.u32 %v2100, 2147483648
    %v2141 = vmul.f32 %v2140, 1.442695
    %v2142 = vpow.pop %v2141
    %v2143 = vadd.f32 %v2142, 1.0
    %v2144 = vrcp.pop %v2143
    %v2145 = vmul.f32 %v2143, %v2144
    %v2146 = vsub.f32 1.0, %v2145
    %v2147 = vmul.f32 %v2144, %v2146
    %v2148 = vadd.f32 %v2144, %v2147
    %vm2149 = vweird.f32 %v2143
    %vm2150 = vweird.f32 %v2144
    %vm2151 = vmor %vm2149, %vm2150
    %v2152 = vsel %vm2151, %v2144, %v2148
    %v2153 = vand.u32 2147483647, %v2143
    %vm2154 = vcmp.eq.f32.partialorder %v2153, 8.507059e+37
    %v2155 = vand.u32 %v2143, 2147483648
    %v2156 = vor.u32 1.1754944e-38, %v2155
    %v2157 = vsel %vm2154, %v2156, %v2152
    %v2158 = vmul.f32 1.0, %v2157
    %v2159 = vmul.f32 %v2138, %v1635
    %v2160 = vmul.f32 %v2119, %v2139
    %v2161 = vadd.f32 %v2159, %v2160
    %v2162 = vtanh.pop %v2161
    %v2163 = vmul.f32 %v2158, %v2162
    %vm2164 = vcmp.gt.s32.totalorder %v200, 3
    %v2165 = vsel %vm2164, 1, 0
    %2166 = vset.pattern.permute.xlu0 0
    %2167 = vperm.xlu0 %2166, %v2165
    %v2168 = vpop.permute.xlu0 %2167
    %vm2169 = vcmp.eq.s32.totalorder %v2168, 1
    %v2170 = vsel %vm2169, %v2163, %v1634
    %v2171 = vsel %vm2169, %v2161, %v1635
    %v2172 = vpack.c.bf16 %v2170, %v2170
    %2173 = vmatpush.bf16.msra.mxu0 %v538
    %2174 = vmatpush.bf16.msra.mxu0 %v537
    %2175 = vmatpush.bf16.msra.mxu0 %v536
    %2176 = vmatpush.bf16.msra.mxu0 %v535
    %2177 = vmatpush.bf16.msra.mxu0 %v534
    %2178 = vmatpush.bf16.msra.mxu0 %v533
    %2179 = vmatpush.bf16.msra.mxu0 %v532
    %2180 = vmatpush.bf16.msra.mxu0 %v531
    %2181 = vmatmul.bf16.gmra.mxu0 %v2172
    %v2182 = vpop.f32.mrf.mxu0
    %v2183 = vadd.f32 %v497, %v2182
    %v2184 = vpop.f32.mrf.mxu0
    %2185 = vdwg.mxu0
    %v2187 = vrot.slane %v2183, 1
    %v2188 = vrot.slane %v2183, 2
    %v2189 = vrot.slane %v2183, 3
    %v2190 = vrot.slane %v2183, 4
    %v2191 = vrot.slane %v2183, 5
    %v2192 = vrot.slane %v2183, 6
    %v2193 = vrot.slane %v2183, 7
    %v2194 = vperm.slane %v2183, 0
    %v2195 = vperm.slane %v2187, 0
    %v2196 = vperm.slane %v2188, 0
    %v2197 = vperm.slane %v2189, 0
    %v2198 = vperm.slane %v2190, 0
    %v2199 = vperm.slane %v2191, 0
    %v2200 = vperm.slane %v2192, 0
    %v2201 = vperm.slane %v2193, 0
    %v2210 = vadd.f32 %v141, %v2194
    %v2211 = vadd.f32 %v142, %v2195
    %v2212 = vadd.f32 %v143, %v2196
    %v2213 = vadd.f32 %v144, %v2197
    %v2214 = vadd.f32 %v145, %v2198
    %v2215 = vadd.f32 %v146, %v2199
    %v2216 = vadd.f32 %v147, %v2200
    %v2217 = vadd.f32 %v148, %v2201
    %v2218 = vtanh.pop %v2210
    %v2219 = vtanh.pop %v2211
    %v2220 = vtanh.pop %v2212
    %v2221 = vtanh.pop %v2213
    %v2222 = vtanh.pop %v2214
    %v2223 = vtanh.pop %v2215
    %v2224 = vtanh.pop %v2216
    %v2225 = vtanh.pop %v2217
    %v2226 = vmul.f32 %v2218, %v601
    %v2227 = vmul.f32 %v2219, %v601
    %v2228 = vmul.f32 %v2220, %v601
    %v2229 = vmul.f32 %v2221, %v601
    %v2230 = vmul.f32 %v2222, %v601
    %v2231 = vmul.f32 %v2223, %v601
    %v2232 = vmul.f32 %v2224, %v601
    %v2233 = vmul.f32 %v2225, %v601
    %2234 = vadd.xlane.f32.xlu0 %v2226
    %v2235 = vpop.xlane.xlu0 %2234
    %2236 = vadd.xlane.f32.xlu0 %v2227
    %v2237 = vpop.xlane.xlu0 %2236
    %2238 = vadd.xlane.f32.xlu0 %v2228
    %v2239 = vpop.xlane.xlu0 %2238
    %2240 = vadd.xlane.f32.xlu0 %v2229
    %v2241 = vpop.xlane.xlu0 %2240
    %2242 = vadd.xlane.f32.xlu0 %v2230
    %v2243 = vpop.xlane.xlu0 %2242
    %2244 = vadd.xlane.f32.xlu0 %v2231
    %v2245 = vpop.xlane.xlu0 %2244
    %2246 = vadd.xlane.f32.xlu0 %v2232
    %v2247 = vpop.xlane.xlu0 %2246
    %2248 = vadd.xlane.f32.xlu0 %v2233
    %v2249 = vpop.xlane.xlu0 %2248
    %v2250 = vadd.f32 %v2235, %v631
    %v2251 = vadd.f32 %v2237, %v631
    %v2252 = vadd.f32 %v2239, %v631
    %v2253 = vadd.f32 %v2241, %v631
    %v2254 = vadd.f32 %v2243, %v631
    %v2255 = vadd.f32 %v2245, %v631
    %v2256 = vadd.f32 %v2247, %v631
    %v2257 = vadd.f32 %v2249, %v631
    %v2266 = vperm.slane %v2250, %v650
    %v2267 = vperm.slane %v2251, %v650
    %v2268 = vperm.slane %v2252, %v650
    %v2269 = vperm.slane %v2253, %v650
    %v2270 = vperm.slane %v2254, %v650
    %v2271 = vperm.slane %v2255, %v650
    %v2272 = vperm.slane %v2256, %v650
    %v2273 = vperm.slane %v2257, %v650
    %v2274 = vsel %vm659, %v2267, %v2266
    %v2275 = vsel %vm661, %v2268, %v2274
    %v2276 = vsel %vm663, %v2269, %v2275
    %v2277 = vsel %vm665, %v2270, %v2276
    %v2278 = vsel %vm667, %v2271, %v2277
    %v2279 = vsel %vm669, %v2272, %v2278
    %v2280 = vsel %vm671, %v2273, %v2279
    %v2282 = vsel %vm674, %v2280, -inf
    %2283 = vmax.xlane.f32.xlu0 %v2282
    %v2284 = vpop.xlane.xlu0 %2283
    %v2286 = vperm.slane %v2284, 0
    %v2287 = vperm.slane %v2284, 1
    %v2288 = vperm.slane %v2284, 2
    %v2289 = vperm.slane %v2284, 3
    %v2290 = vperm.slane %v2284, 4
    %v2291 = vperm.slane %v2284, 5
    %v2292 = vperm.slane %v2284, 6
    %v2293 = vperm.slane %v2284, 7
    %v2302 = vsub.f32 %v2250, %v2286
    %v2303 = vsub.f32 %v2251, %v2287
    %v2304 = vsub.f32 %v2252, %v2288
    %v2305 = vsub.f32 %v2253, %v2289
    %v2306 = vsub.f32 %v2254, %v2290
    %v2307 = vsub.f32 %v2255, %v2291
    %v2308 = vsub.f32 %v2256, %v2292
    %v2309 = vsub.f32 %v2257, %v2293
    %v2310 = vmul.f32 %v2302, 1.442695
    %v2311 = vpow.pop %v2310
    %v2312 = vmul.f32 %v2303, 1.442695
    %v2313 = vpow.pop %v2312
    %v2314 = vmul.f32 %v2304, 1.442695
    %v2315 = vpow.pop %v2314
    %v2316 = vmul.f32 %v2305, 1.442695
    %v2317 = vpow.pop %v2316
    %v2318 = vmul.f32 %v2306, 1.442695
    %v2319 = vpow.pop %v2318
    %v2320 = vmul.f32 %v2307, 1.442695
    %v2321 = vpow.pop %v2320
    %v2322 = vmul.f32 %v2308, 1.442695
    %v2323 = vpow.pop %v2322
    %v2324 = vmul.f32 %v2309, 1.442695
    %v2325 = vpow.pop %v2324
    %2334 = vset.pattern.permute.xlu0 0
    %2335 = vperm.xlu0 %2334, %v2311
    %v2336 = vpop.permute.xlu0 %2335
    %2337 = vset.pattern.permute.xlu0 0
    %2338 = vperm.xlu0 %2337, %v2313
    %v2339 = vpop.permute.xlu0 %2338
    %2340 = vset.pattern.permute.xlu0 0
    %2341 = vperm.xlu0 %2340, %v2315
    %v2342 = vpop.permute.xlu0 %2341
    %2343 = vset.pattern.permute.xlu0 0
    %2344 = vperm.xlu0 %2343, %v2317
    %v2345 = vpop.permute.xlu0 %2344
    %2346 = vset.pattern.permute.xlu0 0
    %2347 = vperm.xlu0 %2346, %v2319
    %v2348 = vpop.permute.xlu0 %2347
    %2349 = vset.pattern.permute.xlu0 0
    %2350 = vperm.xlu0 %2349, %v2321
    %v2351 = vpop.permute.xlu0 %2350
    %2352 = vset.pattern.permute.xlu0 0
    %2353 = vperm.xlu0 %2352, %v2323
    %v2354 = vpop.permute.xlu0 %2353
    %2355 = vset.pattern.permute.xlu0 0
    %2356 = vperm.xlu0 %2355, %v2325
    %v2357 = vpop.permute.xlu0 %2356
    %v2358 = vperm.slane %v2336, %v650
    %v2359 = vperm.slane %v2339, %v650
    %v2360 = vperm.slane %v2342, %v650
    %v2361 = vperm.slane %v2345, %v650
    %v2362 = vperm.slane %v2348, %v650
    %v2363 = vperm.slane %v2351, %v650
    %v2364 = vperm.slane %v2354, %v650
    %v2365 = vperm.slane %v2357, %v650
    %v2366 = vsel %vm659, %v2359, %v2358
    %v2367 = vsel %vm661, %v2360, %v2366
    %v2368 = vsel %vm663, %v2361, %v2367
    %v2369 = vsel %vm665, %v2362, %v2368
    %v2370 = vsel %vm667, %v2363, %v2369
    %v2371 = vsel %vm669, %v2364, %v2370
    %v2372 = vsel %vm671, %v2365, %v2371
    %v2374 = vsel %vm674, %v2372, 0.0
    %2375 = vadd.xlane.f32.xlu0 %v2374
    %v2376 = vpop.xlane.xlu0 %2375
    %v2377 = vrcp.pop %v2376
    %v2379 = vperm.slane %v2377, 0
    %v2380 = vperm.slane %v2377, 1
    %v2381 = vperm.slane %v2377, 2
    %v2382 = vperm.slane %v2377, 3
    %v2383 = vperm.slane %v2377, 4
    %v2384 = vperm.slane %v2377, 5
    %v2385 = vperm.slane %v2377, 6
    %v2386 = vperm.slane %v2377, 7
    %v2395 = vmul.f32 %v2311, %v2379
    %v2396 = vmul.f32 %v2313, %v2380
    %v2397 = vmul.f32 %v2315, %v2381
    %v2398 = vmul.f32 %v2317, %v2382
    %v2399 = vmul.f32 %v2319, %v2383
    %v2400 = vmul.f32 %v2321, %v2384
    %v2401 = vmul.f32 %v2323, %v2385
    %v2402 = vmul.f32 %v2325, %v2386
    %2404 = vset.pattern.permute.xlu0 0
    %2405 = vperm.xlu0 %2404, %v2395
    %v2406 = vpop.permute.xlu0 %2405
    %2409 = vset.pattern.permute.xlu0 0
    %2410 = vperm.xlu0 %2409, %v2396
    %v2411 = vpop.permute.xlu0 %2410
    %2414 = vset.pattern.permute.xlu0 0
    %2415 = vperm.xlu0 %2414, %v2397
    %v2416 = vpop.permute.xlu0 %2415
    %2419 = vset.pattern.permute.xlu0 0
    %2420 = vperm.xlu0 %2419, %v2398
    %v2421 = vpop.permute.xlu0 %2420
    %2424 = vset.pattern.permute.xlu0 0
    %2425 = vperm.xlu0 %2424, %v2399
    %v2426 = vpop.permute.xlu0 %2425
    %2429 = vset.pattern.permute.xlu0 0
    %2430 = vperm.xlu0 %2429, %v2400
    %v2431 = vpop.permute.xlu0 %2430
    %2434 = vset.pattern.permute.xlu0 0
    %2435 = vperm.xlu0 %2434, %v2401
    %v2436 = vpop.permute.xlu0 %2435
    %2439 = vset.pattern.permute.xlu0 0
    %2440 = vperm.xlu0 %2439, %v2402
    %v2441 = vpop.permute.xlu0 %2440
    %v2443 = vmul.f32 %v2406, %v133
    %v2444 = vmul.f32 %v2411, %v134
    %v2445 = vmul.f32 %v2416, %v135
    %v2446 = vmul.f32 %v2421, %v136
    %v2447 = vmul.f32 %v2426, %v137
    %v2448 = vmul.f32 %v2431, %v138
    %v2449 = vmul.f32 %v2436, %v139
    %v2450 = vmul.f32 %v2441, %v140
    %v2451 = vrot.slane %v2443, 4
    %v2452 = vadd.f32 %v2443, %v2451
    %v2453 = vrot.slane %v2452, 2
    %v2454 = vadd.f32 %v2452, %v2453
    %v2455 = vrot.slane %v2454, 1
    %v2456 = vadd.f32 %v2454, %v2455
    %v2457 = vrot.slane %v2444, 4
    %v2458 = vadd.f32 %v2444, %v2457
    %v2459 = vrot.slane %v2458, 2
    %v2460 = vadd.f32 %v2458, %v2459
    %v2461 = vrot.slane %v2460, 1
    %v2462 = vadd.f32 %v2460, %v2461
    %v2463 = vrot.slane %v2445, 4
    %v2464 = vadd.f32 %v2445, %v2463
    %v2465 = vrot.slane %v2464, 2
    %v2466 = vadd.f32 %v2464, %v2465
    %v2467 = vrot.slane %v2466, 1
    %v2468 = vadd.f32 %v2466, %v2467
    %v2469 = vrot.slane %v2446, 4
    %v2470 = vadd.f32 %v2446, %v2469
    %v2471 = vrot.slane %v2470, 2
    %v2472 = vadd.f32 %v2470, %v2471
    %v2473 = vrot.slane %v2472, 1
    %v2474 = vadd.f32 %v2472, %v2473
    %v2475 = vrot.slane %v2447, 4
    %v2476 = vadd.f32 %v2447, %v2475
    %v2477 = vrot.slane %v2476, 2
    %v2478 = vadd.f32 %v2476, %v2477
    %v2479 = vrot.slane %v2478, 1
    %v2480 = vadd.f32 %v2478, %v2479
    %v2481 = vrot.slane %v2448, 4
    %v2482 = vadd.f32 %v2448, %v2481
    %v2483 = vrot.slane %v2482, 2
    %v2484 = vadd.f32 %v2482, %v2483
    %v2485 = vrot.slane %v2484, 1
    %v2486 = vadd.f32 %v2484, %v2485
    %v2487 = vrot.slane %v2449, 4
    %v2488 = vadd.f32 %v2449, %v2487
    %v2489 = vrot.slane %v2488, 2
    %v2490 = vadd.f32 %v2488, %v2489
    %v2491 = vrot.slane %v2490, 1
    %v2492 = vadd.f32 %v2490, %v2491
    %v2493 = vrot.slane %v2450, 4
    %v2494 = vadd.f32 %v2450, %v2493
    %v2495 = vrot.slane %v2494, 2
    %v2496 = vadd.f32 %v2494, %v2495
    %v2497 = vrot.slane %v2496, 1
    %v2498 = vadd.f32 %v2496, %v2497
    %v2500 = vrot.slane %v2170, 1
    %v2501 = vrot.slane %v2170, 2
    %v2502 = vrot.slane %v2170, 3
    %v2503 = vrot.slane %v2170, 4
    %v2504 = vrot.slane %v2170, 5
    %v2505 = vrot.slane %v2170, 6
    %v2506 = vrot.slane %v2170, 7
    %v2515 = vadd.f32 %v2456, %v2170
    %v2516 = vadd.f32 %v2462, %v2500
    %v2517 = vadd.f32 %v2468, %v2501
    %v2518 = vadd.f32 %v2474, %v2502
    %v2519 = vadd.f32 %v2480, %v2503
    %v2520 = vadd.f32 %v2486, %v2504
    %v2521 = vadd.f32 %v2492, %v2505
    %v2522 = vadd.f32 %v2498, %v2506
    %v2523 = vcvt.s32.f32 %v2165
    %2525 = vset.pattern.permute.xlu0 0
    %2526 = vperm.xlu0 %2525, %v2523
    %v2527 = vpop.permute.xlu0 %2526
    %v2528 = vrot.slane %v2527, 1
    %v2529 = vrot.slane %v2527, 2
    %v2530 = vrot.slane %v2527, 3
    %v2531 = vrot.slane %v2527, 4
    %v2532 = vrot.slane %v2527, 5
    %v2533 = vrot.slane %v2527, 6
    %v2534 = vrot.slane %v2527, 7
    %v2543 = vmul.f32 %v2515, %v2527
    %v2544 = vmul.f32 %v2516, %v2528
    %v2545 = vmul.f32 %v2517, %v2529
    %v2546 = vmul.f32 %v2518, %v2530
    %v2547 = vmul.f32 %v2519, %v2531
    %v2548 = vmul.f32 %v2520, %v2532
    %v2549 = vmul.f32 %v2521, %v2533
    %v2550 = vmul.f32 %v2522, %v2534
    %v2559 = vrot.slane %v2544, 7
    %v2560 = vsel %vm659, %v2559, %v2543
    %v2561 = vrot.slane %v2545, 6
    %v2562 = vsel %vm661, %v2561, %v2560
    %v2563 = vrot.slane %v2546, 5
    %v2564 = vsel %vm663, %v2563, %v2562
    %v2565 = vrot.slane %v2547, 4
    %v2566 = vsel %vm665, %v2565, %v2564
    %v2567 = vrot.slane %v2548, 3
    %v2568 = vsel %vm667, %v2567, %v2566
    %v2569 = vrot.slane %v2549, 2
    %v2570 = vsel %vm669, %v2569, %v2568
    %v2571 = vrot.slane %v2550, 1
    %v2572 = vsel %vm671, %v2571, %v2570
    %s2574 = scalar_lea.vmem [#allocation14], 24
    %2575 = vst [vmem:[%s2574] sm:$0xff] %v2572
    %s2576 = scalar_lea.vmem [#allocation3], 128
    %v2577 = vld [vmem:[%s2576] sm:$0xff]
    %v2578 = vld [vmem:[%s2576 + $0x8] sm:$0xff]
    %v2579 = vld [vmem:[%s2576 + $0x10] sm:$0xff]
    %v2580 = vld [vmem:[%s2576 + $0x18] sm:$0xff]
    %2581 = vmatpush.bf16.msra.mxu0 %v332
    %2582 = vmatpush.bf16.msra.mxu0 %v328
    %2583 = vmatpush.bf16.msra.mxu0 %v324
    %2584 = vmatpush.bf16.msra.mxu0 %v320
    %2585 = vmatpush.bf16.msra.mxu0 %v316
    %2586 = vmatpush.bf16.msra.mxu0 %v312
    %2587 = vmatpush.bf16.msra.mxu0 %v308
    %2588 = vmatpush.bf16.msra.mxu0 %v304
    %2589 = vmatmul.bf16.gmra.mxu0 %v2172
    %v2590 = vpop.f32.mrf.mxu0
    %v2591 = vadd.f32 0.0, %v2590
    %v2592 = vpop.f32.mrf.mxu0
    %2593 = vdwg.mxu0
    %2594 = vmatpush.bf16.msra.mxu0 %v333
    %2595 = vmatpush.bf16.msra.mxu0 %v329
    %2596 = vmatpush.bf16.msra.mxu0 %v325
    %2597 = vmatpush.bf16.msra.mxu0 %v321
    %2598 = vmatpush.bf16.msra.mxu0 %v317
    %2599 = vmatpush.bf16.msra.mxu0 %v313
    %2600 = vmatpush.bf16.msra.mxu0 %v309
    %2601 = vmatpush.bf16.msra.mxu0 %v305
    %2602 = vmatmul.bf16.gmra.mxu0 %v2172
    %v2603 = vpop.f32.mrf.mxu0
    %v2604 = vadd.f32 0.0, %v2603
    %v2605 = vpop.f32.mrf.mxu0
    %2606 = vdwg.mxu0
    %2607 = vmatpush.bf16.msra.mxu0 %v334
    %2608 = vmatpush.bf16.msra.mxu0 %v330
    %2609 = vmatpush.bf16.msra.mxu0 %v326
    %2610 = vmatpush.bf16.msra.mxu0 %v322
    %2611 = vmatpush.bf16.msra.mxu0 %v318
    %2612 = vmatpush.bf16.msra.mxu0 %v314
    %2613 = vmatpush.bf16.msra.mxu0 %v310
    %2614 = vmatpush.bf16.msra.mxu0 %v306
    %2615 = vmatmul.bf16.gmra.mxu0 %v2172
    %v2616 = vpop.f32.mrf.mxu0
    %v2617 = vadd.f32 0.0, %v2616
    %v2618 = vpop.f32.mrf.mxu0
    %2619 = vdwg.mxu0
    %2620 = vmatpush.bf16.msra.mxu0 %v335
    %2621 = vmatpush.bf16.msra.mxu0 %v331
    %2622 = vmatpush.bf16.msra.mxu0 %v327
    %2623 = vmatpush.bf16.msra.mxu0 %v323
    %2624 = vmatpush.bf16.msra.mxu0 %v319
    %2625 = vmatpush.bf16.msra.mxu0 %v315
    %2626 = vmatpush.bf16.msra.mxu0 %v311
    %2627 = vmatpush.bf16.msra.mxu0 %v307
    %2628 = vmatmul.bf16.gmra.mxu0 %v2172
    %v2629 = vpop.f32.mrf.mxu0
    %v2630 = vadd.f32 0.0, %v2629
    %v2631 = vpop.f32.mrf.mxu0
    %2632 = vdwg.mxu0
    %v2633 = vadd.f32 %v2577, %v2591
    %v2634 = vadd.f32 %v2578, %v2604
    %v2635 = vadd.f32 %v2579, %v2617
    %v2636 = vadd.f32 %v2580, %v2630
    %v2637 = vxor.u32 %v2633, 2147483648
    %v2638 = vmul.f32 %v2637, 1.442695
    %v2639 = vpow.pop %v2638
    %v2640 = vadd.f32 %v2639, 1.0
    %v2641 = vrcp.pop %v2640
    %v2642 = vmul.f32 %v2640, %v2641
    %v2643 = vsub.f32 1.0, %v2642
    %v2644 = vmul.f32 %v2641, %v2643
    %v2645 = vadd.f32 %v2641, %v2644
    %vm2646 = vweird.f32 %v2640
    %vm2647 = vweird.f32 %v2641
    %vm2648 = vmor %vm2646, %vm2647
    %v2649 = vsel %vm2648, %v2641, %v2645
    %v2650 = vand.u32 2147483647, %v2640
    %vm2651 = vcmp.eq.f32.partialorder %v2650, 8.507059e+37
    %v2652 = vand.u32 %v2640, 2147483648
    %v2653 = vor.u32 1.1754944e-38, %v2652
    %v2654 = vsel %vm2651, %v2653, %v2649
    %v2655 = vmul.f32 1.0, %v2654
    %v2656 = vxor.u32 %v2634, 2147483648
    %v2657 = vmul.f32 %v2656, 1.442695
    %v2658 = vpow.pop %v2657
    %v2659 = vadd.f32 %v2658, 1.0
    %v2660 = vrcp.pop %v2659
    %v2661 = vmul.f32 %v2659, %v2660
    %v2662 = vsub.f32 1.0, %v2661
    %v2663 = vmul.f32 %v2660, %v2662
    %v2664 = vadd.f32 %v2660, %v2663
    %vm2665 = vweird.f32 %v2659
    %vm2666 = vweird.f32 %v2660
    %vm2667 = vmor %vm2665, %vm2666
    %v2668 = vsel %vm2667, %v2660, %v2664
    %v2669 = vand.u32 2147483647, %v2659
    %vm2670 = vcmp.eq.f32.partialorder %v2669, 8.507059e+37
    %v2671 = vand.u32 %v2659, 2147483648
    %v2672 = vor.u32 1.1754944e-38, %v2671
    %v2673 = vsel %vm2670, %v2672, %v2668
    %v2674 = vmul.f32 1.0, %v2673
    %v2675 = vtanh.pop %v2635
    %v2676 = vxor.u32 %v2636, 2147483648
    %v2677 = vmul.f32 %v2676, 1.442695
    %v2678 = vpow.pop %v2677
    %v2679 = vadd.f32 %v2678, 1.0
    %v2680 = vrcp.pop %v2679
    %v2681 = vmul.f32 %v2679, %v2680
    %v2682 = vsub.f32 1.0, %v2681
    %v2683 = vmul.f32 %v2680, %v2682
    %v2684 = vadd.f32 %v2680, %v2683
    %vm2685 = vweird.f32 %v2679
    %vm2686 = vweird.f32 %v2680
    %vm2687 = vmor %vm2685, %vm2686
    %v2688 = vsel %vm2687, %v2680, %v2684
    %v2689 = vand.u32 2147483647, %v2679
    %vm2690 = vcmp.eq.f32.partialorder %v2689, 8.507059e+37
    %v2691 = vand.u32 %v2679, 2147483648
    %v2692 = vor.u32 1.1754944e-38, %v2691
    %v2693 = vsel %vm2690, %v2692, %v2688
    %v2694 = vmul.f32 1.0, %v2693
    %v2695 = vmul.f32 %v2674, %v2171
    %v2696 = vmul.f32 %v2655, %v2675
    %v2697 = vadd.f32 %v2695, %v2696
    %v2698 = vtanh.pop %v2697
    %v2699 = vmul.f32 %v2694, %v2698
    %vm2700 = vcmp.gt.s32.totalorder %v200, 4
    %v2701 = vsel %vm2700, 1, 0
    %2702 = vset.pattern.permute.xlu0 0
    %2703 = vperm.xlu0 %2702, %v2701
    %v2704 = vpop.permute.xlu0 %2703
    %vm2705 = vcmp.eq.s32.totalorder %v2704, 1
    %v2706 = vsel %vm2705, %v2699, %v2170
    %v2707 = vsel %vm2705, %v2697, %v2171
    %v2708 = vpack.c.bf16 %v2706, %v2706
    %2709 = vmatpush.bf16.msra.mxu0 %v538
    %2710 = vmatpush.bf16.msra.mxu0 %v537
    %2711 = vmatpush.bf16.msra.mxu0 %v536
    %2712 = vmatpush.bf16.msra.mxu0 %v535
    %2713 = vmatpush.bf16.msra.mxu0 %v534
    %2714 = vmatpush.bf16.msra.mxu0 %v533
    %2715 = vmatpush.bf16.msra.mxu0 %v532
    %2716 = vmatpush.bf16.msra.mxu0 %v531
    %2717 = vmatmul.bf16.gmra.mxu0 %v2708
    %v2718 = vpop.f32.mrf.mxu0
    %v2719 = vadd.f32 %v497, %v2718
    %v2720 = vpop.f32.mrf.mxu0
    %2721 = vdwg.mxu0
    %v2723 = vrot.slane %v2719, 1
    %v2724 = vrot.slane %v2719, 2
    %v2725 = vrot.slane %v2719, 3
    %v2726 = vrot.slane %v2719, 4
    %v2727 = vrot.slane %v2719, 5
    %v2728 = vrot.slane %v2719, 6
    %v2729 = vrot.slane %v2719, 7
    %v2730 = vperm.slane %v2719, 0
    %v2731 = vperm.slane %v2723, 0
    %v2732 = vperm.slane %v2724, 0
    %v2733 = vperm.slane %v2725, 0
    %v2734 = vperm.slane %v2726, 0
    %v2735 = vperm.slane %v2727, 0
    %v2736 = vperm.slane %v2728, 0
    %v2737 = vperm.slane %v2729, 0
    %v2746 = vadd.f32 %v141, %v2730
    %v2747 = vadd.f32 %v142, %v2731
    %v2748 = vadd.f32 %v143, %v2732
    %v2749 = vadd.f32 %v144, %v2733
    %v2750 = vadd.f32 %v145, %v2734
    %v2751 = vadd.f32 %v146, %v2735
    %v2752 = vadd.f32 %v147, %v2736
    %v2753 = vadd.f32 %v148, %v2737
    %v2754 = vtanh.pop %v2746
    %v2755 = vtanh.pop %v2747
    %v2756 = vtanh.pop %v2748
    %v2757 = vtanh.pop %v2749
    %v2758 = vtanh.pop %v2750
    %v2759 = vtanh.pop %v2751
    %v2760 = vtanh.pop %v2752
    %v2761 = vtanh.pop %v2753
    %v2762 = vmul.f32 %v2754, %v601
    %v2763 = vmul.f32 %v2755, %v601
    %v2764 = vmul.f32 %v2756, %v601
    %v2765 = vmul.f32 %v2757, %v601
    %v2766 = vmul.f32 %v2758, %v601
    %v2767 = vmul.f32 %v2759, %v601
    %v2768 = vmul.f32 %v2760, %v601
    %v2769 = vmul.f32 %v2761, %v601
    %2770 = vadd.xlane.f32.xlu0 %v2762
    %v2771 = vpop.xlane.xlu0 %2770
    %2772 = vadd.xlane.f32.xlu0 %v2763
    %v2773 = vpop.xlane.xlu0 %2772
    %2774 = vadd.xlane.f32.xlu0 %v2764
    %v2775 = vpop.xlane.xlu0 %2774
    %2776 = vadd.xlane.f32.xlu0 %v2765
    %v2777 = vpop.xlane.xlu0 %2776
    %2778 = vadd.xlane.f32.xlu0 %v2766
    %v2779 = vpop.xlane.xlu0 %2778
    %2780 = vadd.xlane.f32.xlu0 %v2767
    %v2781 = vpop.xlane.xlu0 %2780
    %2782 = vadd.xlane.f32.xlu0 %v2768
    %v2783 = vpop.xlane.xlu0 %2782
    %2784 = vadd.xlane.f32.xlu0 %v2769
    %v2785 = vpop.xlane.xlu0 %2784
    %v2786 = vadd.f32 %v2771, %v631
    %v2787 = vadd.f32 %v2773, %v631
    %v2788 = vadd.f32 %v2775, %v631
    %v2789 = vadd.f32 %v2777, %v631
    %v2790 = vadd.f32 %v2779, %v631
    %v2791 = vadd.f32 %v2781, %v631
    %v2792 = vadd.f32 %v2783, %v631
    %v2793 = vadd.f32 %v2785, %v631
    %v2802 = vperm.slane %v2786, %v650
    %v2803 = vperm.slane %v2787, %v650
    %v2804 = vperm.slane %v2788, %v650
    %v2805 = vperm.slane %v2789, %v650
    %v2806 = vperm.slane %v2790, %v650
    %v2807 = vperm.slane %v2791, %v650
    %v2808 = vperm.slane %v2792, %v650
    %v2809 = vperm.slane %v2793, %v650
    %v2810 = vsel %vm659, %v2803, %v2802
    %v2811 = vsel %vm661, %v2804, %v2810
    %v2812 = vsel %vm663, %v2805, %v2811
    %v2813 = vsel %vm665, %v2806, %v2812
    %v2814 = vsel %vm667, %v2807, %v2813
    %v2815 = vsel %vm669, %v2808, %v2814
    %v2816 = vsel %vm671, %v2809, %v2815
    %v2818 = vsel %vm674, %v2816, -inf
    %2819 = vmax.xlane.f32.xlu0 %v2818
    %v2820 = vpop.xlane.xlu0 %2819
    %v2822 = vperm.slane %v2820, 0
    %v2823 = vperm.slane %v2820, 1
    %v2824 = vperm.slane %v2820, 2
    %v2825 = vperm.slane %v2820, 3
    %v2826 = vperm.slane %v2820, 4
    %v2827 = vperm.slane %v2820, 5
    %v2828 = vperm.slane %v2820, 6
    %v2829 = vperm.slane %v2820, 7
    %v2838 = vsub.f32 %v2786, %v2822
    %v2839 = vsub.f32 %v2787, %v2823
    %v2840 = vsub.f32 %v2788, %v2824
    %v2841 = vsub.f32 %v2789, %v2825
    %v2842 = vsub.f32 %v2790, %v2826
    %v2843 = vsub.f32 %v2791, %v2827
    %v2844 = vsub.f32 %v2792, %v2828
    %v2845 = vsub.f32 %v2793, %v2829
    %v2846 = vmul.f32 %v2838, 1.442695
    %v2847 = vpow.pop %v2846
    %v2848 = vmul.f32 %v2839, 1.442695
    %v2849 = vpow.pop %v2848
    %v2850 = vmul.f32 %v2840, 1.442695
    %v2851 = vpow.pop %v2850
    %v2852 = vmul.f32 %v2841, 1.442695
    %v2853 = vpow.pop %v2852
    %v2854 = vmul.f32 %v2842, 1.442695
    %v2855 = vpow.pop %v2854
    %v2856 = vmul.f32 %v2843, 1.442695
    %v2857 = vpow.pop %v2856
    %v2858 = vmul.f32 %v2844, 1.442695
    %v2859 = vpow.pop %v2858
    %v2860 = vmul.f32 %v2845, 1.442695
    %v2861 = vpow.pop %v2860
    %2870 = vset.pattern.permute.xlu0 0
    %2871 = vperm.xlu0 %2870, %v2847
    %v2872 = vpop.permute.xlu0 %2871
    %2873 = vset.pattern.permute.xlu0 0
    %2874 = vperm.xlu0 %2873, %v2849
    %v2875 = vpop.permute.xlu0 %2874
    %2876 = vset.pattern.permute.xlu0 0
    %2877 = vperm.xlu0 %2876, %v2851
    %v2878 = vpop.permute.xlu0 %2877
    %2879 = vset.pattern.permute.xlu0 0
    %2880 = vperm.xlu0 %2879, %v2853
    %v2881 = vpop.permute.xlu0 %2880
    %2882 = vset.pattern.permute.xlu0 0
    %2883 = vperm.xlu0 %2882, %v2855
    %v2884 = vpop.permute.xlu0 %2883
    %2885 = vset.pattern.permute.xlu0 0
    %2886 = vperm.xlu0 %2885, %v2857
    %v2887 = vpop.permute.xlu0 %2886
    %2888 = vset.pattern.permute.xlu0 0
    %2889 = vperm.xlu0 %2888, %v2859
    %v2890 = vpop.permute.xlu0 %2889
    %2891 = vset.pattern.permute.xlu0 0
    %2892 = vperm.xlu0 %2891, %v2861
    %v2893 = vpop.permute.xlu0 %2892
    %v2894 = vperm.slane %v2872, %v650
    %v2895 = vperm.slane %v2875, %v650
    %v2896 = vperm.slane %v2878, %v650
    %v2897 = vperm.slane %v2881, %v650
    %v2898 = vperm.slane %v2884, %v650
    %v2899 = vperm.slane %v2887, %v650
    %v2900 = vperm.slane %v2890, %v650
    %v2901 = vperm.slane %v2893, %v650
    %v2902 = vsel %vm659, %v2895, %v2894
    %v2903 = vsel %vm661, %v2896, %v2902
    %v2904 = vsel %vm663, %v2897, %v2903
    %v2905 = vsel %vm665, %v2898, %v2904
    %v2906 = vsel %vm667, %v2899, %v2905
    %v2907 = vsel %vm669, %v2900, %v2906
    %v2908 = vsel %vm671, %v2901, %v2907
    %v2910 = vsel %vm674, %v2908, 0.0
    %2911 = vadd.xlane.f32.xlu0 %v2910
    %v2912 = vpop.xlane.xlu0 %2911
    %v2913 = vrcp.pop %v2912
    %v2915 = vperm.slane %v2913, 0
    %v2916 = vperm.slane %v2913, 1
    %v2917 = vperm.slane %v2913, 2
    %v2918 = vperm.slane %v2913, 3
    %v2919 = vperm.slane %v2913, 4
    %v2920 = vperm.slane %v2913, 5
    %v2921 = vperm.slane %v2913, 6
    %v2922 = vperm.slane %v2913, 7
    %v2931 = vmul.f32 %v2847, %v2915
    %v2932 = vmul.f32 %v2849, %v2916
    %v2933 = vmul.f32 %v2851, %v2917
    %v2934 = vmul.f32 %v2853, %v2918
    %v2935 = vmul.f32 %v2855, %v2919
    %v2936 = vmul.f32 %v2857, %v2920
    %v2937 = vmul.f32 %v2859, %v2921
    %v2938 = vmul.f32 %v2861, %v2922
    %2940 = vset.pattern.permute.xlu0 0
    %2941 = vperm.xlu0 %2940, %v2931
    %v2942 = vpop.permute.xlu0 %2941
    %2945 = vset.pattern.permute.xlu0 0
    %2946 = vperm.xlu0 %2945, %v2932
    %v2947 = vpop.permute.xlu0 %2946
    %2950 = vset.pattern.permute.xlu0 0
    %2951 = vperm.xlu0 %2950, %v2933
    %v2952 = vpop.permute.xlu0 %2951
    %2955 = vset.pattern.permute.xlu0 0
    %2956 = vperm.xlu0 %2955, %v2934
    %v2957 = vpop.permute.xlu0 %2956
    %2960 = vset.pattern.permute.xlu0 0
    %2961 = vperm.xlu0 %2960, %v2935
    %v2962 = vpop.permute.xlu0 %2961
    %2965 = vset.pattern.permute.xlu0 0
    %2966 = vperm.xlu0 %2965, %v2936
    %v2967 = vpop.permute.xlu0 %2966
    %2970 = vset.pattern.permute.xlu0 0
    %2971 = vperm.xlu0 %2970, %v2937
    %v2972 = vpop.permute.xlu0 %2971
    %2975 = vset.pattern.permute.xlu0 0
    %2976 = vperm.xlu0 %2975, %v2938
    %v2977 = vpop.permute.xlu0 %2976
    %v2979 = vmul.f32 %v2942, %v133
    %v2980 = vmul.f32 %v2947, %v134
    %v2981 = vmul.f32 %v2952, %v135
    %v2982 = vmul.f32 %v2957, %v136
    %v2983 = vmul.f32 %v2962, %v137
    %v2984 = vmul.f32 %v2967, %v138
    %v2985 = vmul.f32 %v2972, %v139
    %v2986 = vmul.f32 %v2977, %v140
    %v2987 = vrot.slane %v2979, 4
    %v2988 = vadd.f32 %v2979, %v2987
    %v2989 = vrot.slane %v2988, 2
    %v2990 = vadd.f32 %v2988, %v2989
    %v2991 = vrot.slane %v2990, 1
    %v2992 = vadd.f32 %v2990, %v2991
    %v2993 = vrot.slane %v2980, 4
    %v2994 = vadd.f32 %v2980, %v2993
    %v2995 = vrot.slane %v2994, 2
    %v2996 = vadd.f32 %v2994, %v2995
    %v2997 = vrot.slane %v2996, 1
    %v2998 = vadd.f32 %v2996, %v2997
    %v2999 = vrot.slane %v2981, 4
    %v3000 = vadd.f32 %v2981, %v2999
    %v3001 = vrot.slane %v3000, 2
    %v3002 = vadd.f32 %v3000, %v3001
    %v3003 = vrot.slane %v3002, 1
    %v3004 = vadd.f32 %v3002, %v3003
    %v3005 = vrot.slane %v2982, 4
    %v3006 = vadd.f32 %v2982, %v3005
    %v3007 = vrot.slane %v3006, 2
    %v3008 = vadd.f32 %v3006, %v3007
    %v3009 = vrot.slane %v3008, 1
    %v3010 = vadd.f32 %v3008, %v3009
    %v3011 = vrot.slane %v2983, 4
    %v3012 = vadd.f32 %v2983, %v3011
    %v3013 = vrot.slane %v3012, 2
    %v3014 = vadd.f32 %v3012, %v3013
    %v3015 = vrot.slane %v3014, 1
    %v3016 = vadd.f32 %v3014, %v3015
    %v3017 = vrot.slane %v2984, 4
    %v3018 = vadd.f32 %v2984, %v3017
    %v3019 = vrot.slane %v3018, 2
    %v3020 = vadd.f32 %v3018, %v3019
    %v3021 = vrot.slane %v3020, 1
    %v3022 = vadd.f32 %v3020, %v3021
    %v3023 = vrot.slane %v2985, 4
    %v3024 = vadd.f32 %v2985, %v3023
    %v3025 = vrot.slane %v3024, 2
    %v3026 = vadd.f32 %v3024, %v3025
    %v3027 = vrot.slane %v3026, 1
    %v3028 = vadd.f32 %v3026, %v3027
    %v3029 = vrot.slane %v2986, 4
    %v3030 = vadd.f32 %v2986, %v3029
    %v3031 = vrot.slane %v3030, 2
    %v3032 = vadd.f32 %v3030, %v3031
    %v3033 = vrot.slane %v3032, 1
    %v3034 = vadd.f32 %v3032, %v3033
    %v3036 = vrot.slane %v2706, 1
    %v3037 = vrot.slane %v2706, 2
    %v3038 = vrot.slane %v2706, 3
    %v3039 = vrot.slane %v2706, 4
    %v3040 = vrot.slane %v2706, 5
    %v3041 = vrot.slane %v2706, 6
    %v3042 = vrot.slane %v2706, 7
    %v3051 = vadd.f32 %v2992, %v2706
    %v3052 = vadd.f32 %v2998, %v3036
    %v3053 = vadd.f32 %v3004, %v3037
    %v3054 = vadd.f32 %v3010, %v3038
    %v3055 = vadd.f32 %v3016, %v3039
    %v3056 = vadd.f32 %v3022, %v3040
    %v3057 = vadd.f32 %v3028, %v3041
    %v3058 = vadd.f32 %v3034, %v3042
    %v3059 = vcvt.s32.f32 %v2701
    %3061 = vset.pattern.permute.xlu0 0
    %3062 = vperm.xlu0 %3061, %v3059
    %v3063 = vpop.permute.xlu0 %3062
    %v3064 = vrot.slane %v3063, 1
    %v3065 = vrot.slane %v3063, 2
    %v3066 = vrot.slane %v3063, 3
    %v3067 = vrot.slane %v3063, 4
    %v3068 = vrot.slane %v3063, 5
    %v3069 = vrot.slane %v3063, 6
    %v3070 = vrot.slane %v3063, 7
    %v3079 = vmul.f32 %v3051, %v3063
    %v3080 = vmul.f32 %v3052, %v3064
    %v3081 = vmul.f32 %v3053, %v3065
    %v3082 = vmul.f32 %v3054, %v3066
    %v3083 = vmul.f32 %v3055, %v3067
    %v3084 = vmul.f32 %v3056, %v3068
    %v3085 = vmul.f32 %v3057, %v3069
    %v3086 = vmul.f32 %v3058, %v3070
    %v3095 = vrot.slane %v3080, 7
    %v3096 = vsel %vm659, %v3095, %v3079
    %v3097 = vrot.slane %v3081, 6
    %v3098 = vsel %vm661, %v3097, %v3096
    %v3099 = vrot.slane %v3082, 5
    %v3100 = vsel %vm663, %v3099, %v3098
    %v3101 = vrot.slane %v3083, 4
    %v3102 = vsel %vm665, %v3101, %v3100
    %v3103 = vrot.slane %v3084, 3
    %v3104 = vsel %vm667, %v3103, %v3102
    %v3105 = vrot.slane %v3085, 2
    %v3106 = vsel %vm669, %v3105, %v3104
    %v3107 = vrot.slane %v3086, 1
    %v3108 = vsel %vm671, %v3107, %v3106
    %s3110 = scalar_lea.vmem [#allocation14], 32
    %3111 = vst [vmem:[%s3110] sm:$0xff] %v3108
    %s3112 = scalar_lea.vmem [#allocation3], 160
    %v3113 = vld [vmem:[%s3112] sm:$0xff]
    %v3114 = vld [vmem:[%s3112 + $0x8] sm:$0xff]
    %v3115 = vld [vmem:[%s3112 + $0x10] sm:$0xff]
    %v3116 = vld [vmem:[%s3112 + $0x18] sm:$0xff]
    %3117 = vmatpush.bf16.msra.mxu0 %v332
    %3118 = vmatpush.bf16.msra.mxu0 %v328
    %3119 = vmatpush.bf16.msra.mxu0 %v324
    %3120 = vmatpush.bf16.msra.mxu0 %v320
    %3121 = vmatpush.bf16.msra.mxu0 %v316
    %3122 = vmatpush.bf16.msra.mxu0 %v312
    %3123 = vmatpush.bf16.msra.mxu0 %v308
    %3124 = vmatpush.bf16.msra.mxu0 %v304
    %3125 = vmatmul.bf16.gmra.mxu0 %v2708
    %v3126 = vpop.f32.mrf.mxu0
    %v3127 = vadd.f32 0.0, %v3126
    %v3128 = vpop.f32.mrf.mxu0
    %3129 = vdwg.mxu0
    %3130 = vmatpush.bf16.msra.mxu0 %v333
    %3131 = vmatpush.bf16.msra.mxu0 %v329
    %3132 = vmatpush.bf16.msra.mxu0 %v325
    %3133 = vmatpush.bf16.msra.mxu0 %v321
    %3134 = vmatpush.bf16.msra.mxu0 %v317
    %3135 = vmatpush.bf16.msra.mxu0 %v313
    %3136 = vmatpush.bf16.msra.mxu0 %v309
    %3137 = vmatpush.bf16.msra.mxu0 %v305
    %3138 = vmatmul.bf16.gmra.mxu0 %v2708
    %v3139 = vpop.f32.mrf.mxu0
    %v3140 = vadd.f32 0.0, %v3139
    %v3141 = vpop.f32.mrf.mxu0
    %3142 = vdwg.mxu0
    %3143 = vmatpush.bf16.msra.mxu0 %v334
    %3144 = vmatpush.bf16.msra.mxu0 %v330
    %3145 = vmatpush.bf16.msra.mxu0 %v326
    %3146 = vmatpush.bf16.msra.mxu0 %v322
    %3147 = vmatpush.bf16.msra.mxu0 %v318
    %3148 = vmatpush.bf16.msra.mxu0 %v314
    %3149 = vmatpush.bf16.msra.mxu0 %v310
    %3150 = vmatpush.bf16.msra.mxu0 %v306
    %3151 = vmatmul.bf16.gmra.mxu0 %v2708
    %v3152 = vpop.f32.mrf.mxu0
    %v3153 = vadd.f32 0.0, %v3152
    %v3154 = vpop.f32.mrf.mxu0
    %3155 = vdwg.mxu0
    %3156 = vmatpush.bf16.msra.mxu0 %v335
    %3157 = vmatpush.bf16.msra.mxu0 %v331
    %3158 = vmatpush.bf16.msra.mxu0 %v327
    %3159 = vmatpush.bf16.msra.mxu0 %v323
    %3160 = vmatpush.bf16.msra.mxu0 %v319
    %3161 = vmatpush.bf16.msra.mxu0 %v315
    %3162 = vmatpush.bf16.msra.mxu0 %v311
    %3163 = vmatpush.bf16.msra.mxu0 %v307
    %3164 = vmatmul.bf16.gmra.mxu0 %v2708
    %v3165 = vpop.f32.mrf.mxu0
    %v3166 = vadd.f32 0.0, %v3165
    %v3167 = vpop.f32.mrf.mxu0
    %3168 = vdwg.mxu0
    %v3169 = vadd.f32 %v3113, %v3127
    %v3170 = vadd.f32 %v3114, %v3140
    %v3171 = vadd.f32 %v3115, %v3153
    %v3172 = vadd.f32 %v3116, %v3166
    %v3173 = vxor.u32 %v3169, 2147483648
    %v3174 = vmul.f32 %v3173, 1.442695
    %v3175 = vpow.pop %v3174
    %v3176 = vadd.f32 %v3175, 1.0
    %v3177 = vrcp.pop %v3176
    %v3178 = vmul.f32 %v3176, %v3177
    %v3179 = vsub.f32 1.0, %v3178
    %v3180 = vmul.f32 %v3177, %v3179
    %v3181 = vadd.f32 %v3177, %v3180
    %vm3182 = vweird.f32 %v3176
    %vm3183 = vweird.f32 %v3177
    %vm3184 = vmor %vm3182, %vm3183
    %v3185 = vsel %vm3184, %v3177, %v3181
    %v3186 = vand.u32 2147483647, %v3176
    %vm3187 = vcmp.eq.f32.partialorder %v3186, 8.507059e+37
    %v3188 = vand.u32 %v3176, 2147483648
    %v3189 = vor.u32 1.1754944e-38, %v3188
    %v3190 = vsel %vm3187, %v3189, %v3185
    %v3191 = vmul.f32 1.0, %v3190
    %v3192 = vxor.u32 %v3170, 2147483648
    %v3193 = vmul.f32 %v3192, 1.442695
    %v3194 = vpow.pop %v3193
    %v3195 = vadd.f32 %v3194, 1.0
    %v3196 = vrcp.pop %v3195
    %v3197 = vmul.f32 %v3195, %v3196
    %v3198 = vsub.f32 1.0, %v3197
    %v3199 = vmul.f32 %v3196, %v3198
    %v3200 = vadd.f32 %v3196, %v3199
    %vm3201 = vweird.f32 %v3195
    %vm3202 = vweird.f32 %v3196
    %vm3203 = vmor %vm3201, %vm3202
    %v3204 = vsel %vm3203, %v3196, %v3200
    %v3205 = vand.u32 2147483647, %v3195
    %vm3206 = vcmp.eq.f32.partialorder %v3205, 8.507059e+37
    %v3207 = vand.u32 %v3195, 2147483648
    %v3208 = vor.u32 1.1754944e-38, %v3207
    %v3209 = vsel %vm3206, %v3208, %v3204
    %v3210 = vmul.f32 1.0, %v3209
    %v3211 = vtanh.pop %v3171
    %v3212 = vxor.u32 %v3172, 2147483648
    %v3213 = vmul.f32 %v3212, 1.442695
    %v3214 = vpow.pop %v3213
    %v3215 = vadd.f32 %v3214, 1.0
    %v3216 = vrcp.pop %v3215
    %v3217 = vmul.f32 %v3215, %v3216
    %v3218 = vsub.f32 1.0, %v3217
    %v3219 = vmul.f32 %v3216, %v3218
    %v3220 = vadd.f32 %v3216, %v3219
    %vm3221 = vweird.f32 %v3215
    %vm3222 = vweird.f32 %v3216
    %vm3223 = vmor %vm3221, %vm3222
    %v3224 = vsel %vm3223, %v3216, %v3220
    %v3225 = vand.u32 2147483647, %v3215
    %vm3226 = vcmp.eq.f32.partialorder %v3225, 8.507059e+37
    %v3227 = vand.u32 %v3215, 2147483648
    %v3228 = vor.u32 1.1754944e-38, %v3227
    %v3229 = vsel %vm3226, %v3228, %v3224
    %v3230 = vmul.f32 1.0, %v3229
    %v3231 = vmul.f32 %v3210, %v2707
    %v3232 = vmul.f32 %v3191, %v3211
    %v3233 = vadd.f32 %v3231, %v3232
    %v3234 = vtanh.pop %v3233
    %v3235 = vmul.f32 %v3230, %v3234
    %vm3236 = vcmp.gt.s32.totalorder %v200, 5
    %v3237 = vsel %vm3236, 1, 0
    %3238 = vset.pattern.permute.xlu0 0
    %3239 = vperm.xlu0 %3238, %v3237
    %v3240 = vpop.permute.xlu0 %3239
    %vm3241 = vcmp.eq.s32.totalorder %v3240, 1
    %v3242 = vsel %vm3241, %v3235, %v2706
    %v3243 = vsel %vm3241, %v3233, %v2707
    %v3244 = vpack.c.bf16 %v3242, %v3242
    %3245 = vmatpush.bf16.msra.mxu0 %v538
    %3246 = vmatpush.bf16.msra.mxu0 %v537
    %3247 = vmatpush.bf16.msra.mxu0 %v536
    %3248 = vmatpush.bf16.msra.mxu0 %v535
    %3249 = vmatpush.bf16.msra.mxu0 %v534
    %3250 = vmatpush.bf16.msra.mxu0 %v533
    %3251 = vmatpush.bf16.msra.mxu0 %v532
    %3252 = vmatpush.bf16.msra.mxu0 %v531
    %3253 = vmatmul.bf16.gmra.mxu0 %v3244
    %v3254 = vpop.f32.mrf.mxu0
    %v3255 = vadd.f32 %v497, %v3254
    %v3256 = vpop.f32.mrf.mxu0
    %3257 = vdwg.mxu0
    %v3259 = vrot.slane %v3255, 1
    %v3260 = vrot.slane %v3255, 2
    %v3261 = vrot.slane %v3255, 3
    %v3262 = vrot.slane %v3255, 4
    %v3263 = vrot.slane %v3255, 5
    %v3264 = vrot.slane %v3255, 6
    %v3265 = vrot.slane %v3255, 7
    %v3266 = vperm.slane %v3255, 0
    %v3267 = vperm.slane %v3259, 0
    %v3268 = vperm.slane %v3260, 0
    %v3269 = vperm.slane %v3261, 0
    %v3270 = vperm.slane %v3262, 0
    %v3271 = vperm.slane %v3263, 0
    %v3272 = vperm.slane %v3264, 0
    %v3273 = vperm.slane %v3265, 0
    %v3282 = vadd.f32 %v141, %v3266
    %v3283 = vadd.f32 %v142, %v3267
    %v3284 = vadd.f32 %v143, %v3268
    %v3285 = vadd.f32 %v144, %v3269
    %v3286 = vadd.f32 %v145, %v3270
    %v3287 = vadd.f32 %v146, %v3271
    %v3288 = vadd.f32 %v147, %v3272
    %v3289 = vadd.f32 %v148, %v3273
    %v3290 = vtanh.pop %v3282
    %v3291 = vtanh.pop %v3283
    %v3292 = vtanh.pop %v3284
    %v3293 = vtanh.pop %v3285
    %v3294 = vtanh.pop %v3286
    %v3295 = vtanh.pop %v3287
    %v3296 = vtanh.pop %v3288
    %v3297 = vtanh.pop %v3289
    %v3298 = vmul.f32 %v3290, %v601
    %v3299 = vmul.f32 %v3291, %v601
    %v3300 = vmul.f32 %v3292, %v601
    %v3301 = vmul.f32 %v3293, %v601
    %v3302 = vmul.f32 %v3294, %v601
    %v3303 = vmul.f32 %v3295, %v601
    %v3304 = vmul.f32 %v3296, %v601
    %v3305 = vmul.f32 %v3297, %v601
    %3306 = vadd.xlane.f32.xlu0 %v3298
    %v3307 = vpop.xlane.xlu0 %3306
    %3308 = vadd.xlane.f32.xlu0 %v3299
    %v3309 = vpop.xlane.xlu0 %3308
    %3310 = vadd.xlane.f32.xlu0 %v3300
    %v3311 = vpop.xlane.xlu0 %3310
    %3312 = vadd.xlane.f32.xlu0 %v3301
    %v3313 = vpop.xlane.xlu0 %3312
    %3314 = vadd.xlane.f32.xlu0 %v3302
    %v3315 = vpop.xlane.xlu0 %3314
    %3316 = vadd.xlane.f32.xlu0 %v3303
    %v3317 = vpop.xlane.xlu0 %3316
    %3318 = vadd.xlane.f32.xlu0 %v3304
    %v3319 = vpop.xlane.xlu0 %3318
    %3320 = vadd.xlane.f32.xlu0 %v3305
    %v3321 = vpop.xlane.xlu0 %3320
    %v3322 = vadd.f32 %v3307, %v631
    %v3323 = vadd.f32 %v3309, %v631
    %v3324 = vadd.f32 %v3311, %v631
    %v3325 = vadd.f32 %v3313, %v631
    %v3326 = vadd.f32 %v3315, %v631
    %v3327 = vadd.f32 %v3317, %v631
    %v3328 = vadd.f32 %v3319, %v631
    %v3329 = vadd.f32 %v3321, %v631
    %v3338 = vperm.slane %v3322, %v650
    %v3339 = vperm.slane %v3323, %v650
    %v3340 = vperm.slane %v3324, %v650
    %v3341 = vperm.slane %v3325, %v650
    %v3342 = vperm.slane %v3326, %v650
    %v3343 = vperm.slane %v3327, %v650
    %v3344 = vperm.slane %v3328, %v650
    %v3345 = vperm.slane %v3329, %v650
    %v3346 = vsel %vm659, %v3339, %v3338
    %v3347 = vsel %vm661, %v3340, %v3346
    %v3348 = vsel %vm663, %v3341, %v3347
    %v3349 = vsel %vm665, %v3342, %v3348
    %v3350 = vsel %vm667, %v3343, %v3349
    %v3351 = vsel %vm669, %v3344, %v3350
    %v3352 = vsel %vm671, %v3345, %v3351
    %v3354 = vsel %vm674, %v3352, -inf
    %3355 = vmax.xlane.f32.xlu0 %v3354
    %v3356 = vpop.xlane.xlu0 %3355
    %v3358 = vperm.slane %v3356, 0
    %v3359 = vperm.slane %v3356, 1
    %v3360 = vperm.slane %v3356, 2
    %v3361 = vperm.slane %v3356, 3
    %v3362 = vperm.slane %v3356, 4
    %v3363 = vperm.slane %v3356, 5
    %v3364 = vperm.slane %v3356, 6
    %v3365 = vperm.slane %v3356, 7
    %v3374 = vsub.f32 %v3322, %v3358
    %v3375 = vsub.f32 %v3323, %v3359
    %v3376 = vsub.f32 %v3324, %v3360
    %v3377 = vsub.f32 %v3325, %v3361
    %v3378 = vsub.f32 %v3326, %v3362
    %v3379 = vsub.f32 %v3327, %v3363
    %v3380 = vsub.f32 %v3328, %v3364
    %v3381 = vsub.f32 %v3329, %v3365
    %v3382 = vmul.f32 %v3374, 1.442695
    %v3383 = vpow.pop %v3382
    %v3384 = vmul.f32 %v3375, 1.442695
    %v3385 = vpow.pop %v3384
    %v3386 = vmul.f32 %v3376, 1.442695
    %v3387 = vpow.pop %v3386
    %v3388 = vmul.f32 %v3377, 1.442695
    %v3389 = vpow.pop %v3388
    %v3390 = vmul.f32 %v3378, 1.442695
    %v3391 = vpow.pop %v3390
    %v3392 = vmul.f32 %v3379, 1.442695
    %v3393 = vpow.pop %v3392
    %v3394 = vmul.f32 %v3380, 1.442695
    %v3395 = vpow.pop %v3394
    %v3396 = vmul.f32 %v3381, 1.442695
    %v3397 = vpow.pop %v3396
    %3406 = vset.pattern.permute.xlu0 0
    %3407 = vperm.xlu0 %3406, %v3383
    %v3408 = vpop.permute.xlu0 %3407
    %3409 = vset.pattern.permute.xlu0 0
    %3410 = vperm.xlu0 %3409, %v3385
    %v3411 = vpop.permute.xlu0 %3410
    %3412 = vset.pattern.permute.xlu0 0
    %3413 = vperm.xlu0 %3412, %v3387
    %v3414 = vpop.permute.xlu0 %3413
    %3415 = vset.pattern.permute.xlu0 0
    %3416 = vperm.xlu0 %3415, %v3389
    %v3417 = vpop.permute.xlu0 %3416
    %3418 = vset.pattern.permute.xlu0 0
    %3419 = vperm.xlu0 %3418, %v3391
    %v3420 = vpop.permute.xlu0 %3419
    %3421 = vset.pattern.permute.xlu0 0
    %3422 = vperm.xlu0 %3421, %v3393
    %v3423 = vpop.permute.xlu0 %3422
    %3424 = vset.pattern.permute.xlu0 0
    %3425 = vperm.xlu0 %3424, %v3395
    %v3426 = vpop.permute.xlu0 %3425
    %3427 = vset.pattern.permute.xlu0 0
    %3428 = vperm.xlu0 %3427, %v3397
    %v3429 = vpop.permute.xlu0 %3428
    %v3430 = vperm.slane %v3408, %v650
    %v3431 = vperm.slane %v3411, %v650
    %v3432 = vperm.slane %v3414, %v650
    %v3433 = vperm.slane %v3417, %v650
    %v3434 = vperm.slane %v3420, %v650
    %v3435 = vperm.slane %v3423, %v650
    %v3436 = vperm.slane %v3426, %v650
    %v3437 = vperm.slane %v3429, %v650
    %v3438 = vsel %vm659, %v3431, %v3430
    %v3439 = vsel %vm661, %v3432, %v3438
    %v3440 = vsel %vm663, %v3433, %v3439
    %v3441 = vsel %vm665, %v3434, %v3440
    %v3442 = vsel %vm667, %v3435, %v3441
    %v3443 = vsel %vm669, %v3436, %v3442
    %v3444 = vsel %vm671, %v3437, %v3443
    %v3446 = vsel %vm674, %v3444, 0.0
    %3447 = vadd.xlane.f32.xlu0 %v3446
    %v3448 = vpop.xlane.xlu0 %3447
    %v3449 = vrcp.pop %v3448
    %v3451 = vperm.slane %v3449, 0
    %v3452 = vperm.slane %v3449, 1
    %v3453 = vperm.slane %v3449, 2
    %v3454 = vperm.slane %v3449, 3
    %v3455 = vperm.slane %v3449, 4
    %v3456 = vperm.slane %v3449, 5
    %v3457 = vperm.slane %v3449, 6
    %v3458 = vperm.slane %v3449, 7
    %v3467 = vmul.f32 %v3383, %v3451
    %v3468 = vmul.f32 %v3385, %v3452
    %v3469 = vmul.f32 %v3387, %v3453
    %v3470 = vmul.f32 %v3389, %v3454
    %v3471 = vmul.f32 %v3391, %v3455
    %v3472 = vmul.f32 %v3393, %v3456
    %v3473 = vmul.f32 %v3395, %v3457
    %v3474 = vmul.f32 %v3397, %v3458
    %3476 = vset.pattern.permute.xlu0 0
    %3477 = vperm.xlu0 %3476, %v3467
    %v3478 = vpop.permute.xlu0 %3477
    %3481 = vset.pattern.permute.xlu0 0
    %3482 = vperm.xlu0 %3481, %v3468
    %v3483 = vpop.permute.xlu0 %3482
    %3486 = vset.pattern.permute.xlu0 0
    %3487 = vperm.xlu0 %3486, %v3469
    %v3488 = vpop.permute.xlu0 %3487
    %3491 = vset.pattern.permute.xlu0 0
    %3492 = vperm.xlu0 %3491, %v3470
    %v3493 = vpop.permute.xlu0 %3492
    %3496 = vset.pattern.permute.xlu0 0
    %3497 = vperm.xlu0 %3496, %v3471
    %v3498 = vpop.permute.xlu0 %3497
    %3501 = vset.pattern.permute.xlu0 0
    %3502 = vperm.xlu0 %3501, %v3472
    %v3503 = vpop.permute.xlu0 %3502
    %3506 = vset.pattern.permute.xlu0 0
    %3507 = vperm.xlu0 %3506, %v3473
    %v3508 = vpop.permute.xlu0 %3507
    %3511 = vset.pattern.permute.xlu0 0
    %3512 = vperm.xlu0 %3511, %v3474
    %v3513 = vpop.permute.xlu0 %3512
    %v3515 = vmul.f32 %v3478, %v133
    %v3516 = vmul.f32 %v3483, %v134
    %v3517 = vmul.f32 %v3488, %v135
    %v3518 = vmul.f32 %v3493, %v136
    %v3519 = vmul.f32 %v3498, %v137
    %v3520 = vmul.f32 %v3503, %v138
    %v3521 = vmul.f32 %v3508, %v139
    %v3522 = vmul.f32 %v3513, %v140
    %v3523 = vrot.slane %v3515, 4
    %v3524 = vadd.f32 %v3515, %v3523
    %v3525 = vrot.slane %v3524, 2
    %v3526 = vadd.f32 %v3524, %v3525
    %v3527 = vrot.slane %v3526, 1
    %v3528 = vadd.f32 %v3526, %v3527
    %v3529 = vrot.slane %v3516, 4
    %v3530 = vadd.f32 %v3516, %v3529
    %v3531 = vrot.slane %v3530, 2
    %v3532 = vadd.f32 %v3530, %v3531
    %v3533 = vrot.slane %v3532, 1
    %v3534 = vadd.f32 %v3532, %v3533
    %v3535 = vrot.slane %v3517, 4
    %v3536 = vadd.f32 %v3517, %v3535
    %v3537 = vrot.slane %v3536, 2
    %v3538 = vadd.f32 %v3536, %v3537
    %v3539 = vrot.slane %v3538, 1
    %v3540 = vadd.f32 %v3538, %v3539
    %v3541 = vrot.slane %v3518, 4
    %v3542 = vadd.f32 %v3518, %v3541
    %v3543 = vrot.slane %v3542, 2
    %v3544 = vadd.f32 %v3542, %v3543
    %v3545 = vrot.slane %v3544, 1
    %v3546 = vadd.f32 %v3544, %v3545
    %v3547 = vrot.slane %v3519, 4
    %v3548 = vadd.f32 %v3519, %v3547
    %v3549 = vrot.slane %v3548, 2
    %v3550 = vadd.f32 %v3548, %v3549
    %v3551 = vrot.slane %v3550, 1
    %v3552 = vadd.f32 %v3550, %v3551
    %v3553 = vrot.slane %v3520, 4
    %v3554 = vadd.f32 %v3520, %v3553
    %v3555 = vrot.slane %v3554, 2
    %v3556 = vadd.f32 %v3554, %v3555
    %v3557 = vrot.slane %v3556, 1
    %v3558 = vadd.f32 %v3556, %v3557
    %v3559 = vrot.slane %v3521, 4
    %v3560 = vadd.f32 %v3521, %v3559
    %v3561 = vrot.slane %v3560, 2
    %v3562 = vadd.f32 %v3560, %v3561
    %v3563 = vrot.slane %v3562, 1
    %v3564 = vadd.f32 %v3562, %v3563
    %v3565 = vrot.slane %v3522, 4
    %v3566 = vadd.f32 %v3522, %v3565
    %v3567 = vrot.slane %v3566, 2
    %v3568 = vadd.f32 %v3566, %v3567
    %v3569 = vrot.slane %v3568, 1
    %v3570 = vadd.f32 %v3568, %v3569
    %v3572 = vrot.slane %v3242, 1
    %v3573 = vrot.slane %v3242, 2
    %v3574 = vrot.slane %v3242, 3
    %v3575 = vrot.slane %v3242, 4
    %v3576 = vrot.slane %v3242, 5
    %v3577 = vrot.slane %v3242, 6
    %v3578 = vrot.slane %v3242, 7
    %v3587 = vadd.f32 %v3528, %v3242
    %v3588 = vadd.f32 %v3534, %v3572
    %v3589 = vadd.f32 %v3540, %v3573
    %v3590 = vadd.f32 %v3546, %v3574
    %v3591 = vadd.f32 %v3552, %v3575
    %v3592 = vadd.f32 %v3558, %v3576
    %v3593 = vadd.f32 %v3564, %v3577
    %v3594 = vadd.f32 %v3570, %v3578
    %v3595 = vcvt.s32.f32 %v3237
    %3597 = vset.pattern.permute.xlu0 0
    %3598 = vperm.xlu0 %3597, %v3595
    %v3599 = vpop.permute.xlu0 %3598
    %v3600 = vrot.slane %v3599, 1
    %v3601 = vrot.slane %v3599, 2
    %v3602 = vrot.slane %v3599, 3
    %v3603 = vrot.slane %v3599, 4
    %v3604 = vrot.slane %v3599, 5
    %v3605 = vrot.slane %v3599, 6
    %v3606 = vrot.slane %v3599, 7
    %v3615 = vmul.f32 %v3587, %v3599
    %v3616 = vmul.f32 %v3588, %v3600
    %v3617 = vmul.f32 %v3589, %v3601
    %v3618 = vmul.f32 %v3590, %v3602
    %v3619 = vmul.f32 %v3591, %v3603
    %v3620 = vmul.f32 %v3592, %v3604
    %v3621 = vmul.f32 %v3593, %v3605
    %v3622 = vmul.f32 %v3594, %v3606
    %v3631 = vrot.slane %v3616, 7
    %v3632 = vsel %vm659, %v3631, %v3615
    %v3633 = vrot.slane %v3617, 6
    %v3634 = vsel %vm661, %v3633, %v3632
    %v3635 = vrot.slane %v3618, 5
    %v3636 = vsel %vm663, %v3635, %v3634
    %v3637 = vrot.slane %v3619, 4
    %v3638 = vsel %vm665, %v3637, %v3636
    %v3639 = vrot.slane %v3620, 3
    %v3640 = vsel %vm667, %v3639, %v3638
    %v3641 = vrot.slane %v3621, 2
    %v3642 = vsel %vm669, %v3641, %v3640
    %v3643 = vrot.slane %v3622, 1
    %v3644 = vsel %vm671, %v3643, %v3642
    %s3646 = scalar_lea.vmem [#allocation14], 40
    %3647 = vst [vmem:[%s3646] sm:$0xff] %v3644
    %s3648 = scalar_lea.vmem [#allocation3], 192
    %v3649 = vld [vmem:[%s3648] sm:$0xff]
    %v3650 = vld [vmem:[%s3648 + $0x8] sm:$0xff]
    %v3651 = vld [vmem:[%s3648 + $0x10] sm:$0xff]
    %v3652 = vld [vmem:[%s3648 + $0x18] sm:$0xff]
    %3653 = vmatpush.bf16.msra.mxu0 %v332
    %3654 = vmatpush.bf16.msra.mxu0 %v328
    %3655 = vmatpush.bf16.msra.mxu0 %v324
    %3656 = vmatpush.bf16.msra.mxu0 %v320
    %3657 = vmatpush.bf16.msra.mxu0 %v316
    %3658 = vmatpush.bf16.msra.mxu0 %v312
    %3659 = vmatpush.bf16.msra.mxu0 %v308
    %3660 = vmatpush.bf16.msra.mxu0 %v304
    %3661 = vmatmul.bf16.gmra.mxu0 %v3244
    %v3662 = vpop.f32.mrf.mxu0
    %v3663 = vadd.f32 0.0, %v3662
    %v3664 = vpop.f32.mrf.mxu0
    %3665 = vdwg.mxu0
    %3666 = vmatpush.bf16.msra.mxu0 %v333
    %3667 = vmatpush.bf16.msra.mxu0 %v329
    %3668 = vmatpush.bf16.msra.mxu0 %v325
    %3669 = vmatpush.bf16.msra.mxu0 %v321
    %3670 = vmatpush.bf16.msra.mxu0 %v317
    %3671 = vmatpush.bf16.msra.mxu0 %v313
    %3672 = vmatpush.bf16.msra.mxu0 %v309
    %3673 = vmatpush.bf16.msra.mxu0 %v305
    %3674 = vmatmul.bf16.gmra.mxu0 %v3244
    %v3675 = vpop.f32.mrf.mxu0
    %v3676 = vadd.f32 0.0, %v3675
    %v3677 = vpop.f32.mrf.mxu0
    %3678 = vdwg.mxu0
    %3679 = vmatpush.bf16.msra.mxu0 %v334
    %3680 = vmatpush.bf16.msra.mxu0 %v330
    %3681 = vmatpush.bf16.msra.mxu0 %v326
    %3682 = vmatpush.bf16.msra.mxu0 %v322
    %3683 = vmatpush.bf16.msra.mxu0 %v318
    %3684 = vmatpush.bf16.msra.mxu0 %v314
    %3685 = vmatpush.bf16.msra.mxu0 %v310
    %3686 = vmatpush.bf16.msra.mxu0 %v306
    %3687 = vmatmul.bf16.gmra.mxu0 %v3244
    %v3688 = vpop.f32.mrf.mxu0
    %v3689 = vadd.f32 0.0, %v3688
    %v3690 = vpop.f32.mrf.mxu0
    %3691 = vdwg.mxu0
    %3692 = vmatpush.bf16.msra.mxu0 %v335
    %3693 = vmatpush.bf16.msra.mxu0 %v331
    %3694 = vmatpush.bf16.msra.mxu0 %v327
    %3695 = vmatpush.bf16.msra.mxu0 %v323
    %3696 = vmatpush.bf16.msra.mxu0 %v319
    %3697 = vmatpush.bf16.msra.mxu0 %v315
    %3698 = vmatpush.bf16.msra.mxu0 %v311
    %3699 = vmatpush.bf16.msra.mxu0 %v307
    %3700 = vmatmul.bf16.gmra.mxu0 %v3244
    %v3701 = vpop.f32.mrf.mxu0
    %v3702 = vadd.f32 0.0, %v3701
    %v3703 = vpop.f32.mrf.mxu0
    %3704 = vdwg.mxu0
    %v3705 = vadd.f32 %v3649, %v3663
    %v3706 = vadd.f32 %v3650, %v3676
    %v3707 = vadd.f32 %v3651, %v3689
    %v3708 = vadd.f32 %v3652, %v3702
    %v3709 = vxor.u32 %v3705, 2147483648
    %v3710 = vmul.f32 %v3709, 1.442695
    %v3711 = vpow.pop %v3710
    %v3712 = vadd.f32 %v3711, 1.0
    %v3713 = vrcp.pop %v3712
    %v3714 = vmul.f32 %v3712, %v3713
    %v3715 = vsub.f32 1.0, %v3714
    %v3716 = vmul.f32 %v3713, %v3715
    %v3717 = vadd.f32 %v3713, %v3716
    %vm3718 = vweird.f32 %v3712
    %vm3719 = vweird.f32 %v3713
    %vm3720 = vmor %vm3718, %vm3719
    %v3721 = vsel %vm3720, %v3713, %v3717
    %v3722 = vand.u32 2147483647, %v3712
    %vm3723 = vcmp.eq.f32.partialorder %v3722, 8.507059e+37
    %v3724 = vand.u32 %v3712, 2147483648
    %v3725 = vor.u32 1.1754944e-38, %v3724
    %v3726 = vsel %vm3723, %v3725, %v3721
    %v3727 = vmul.f32 1.0, %v3726
    %v3728 = vxor.u32 %v3706, 2147483648
    %v3729 = vmul.f32 %v3728, 1.442695
    %v3730 = vpow.pop %v3729
    %v3731 = vadd.f32 %v3730, 1.0
    %v3732 = vrcp.pop %v3731
    %v3733 = vmul.f32 %v3731, %v3732
    %v3734 = vsub.f32 1.0, %v3733
    %v3735 = vmul.f32 %v3732, %v3734
    %v3736 = vadd.f32 %v3732, %v3735
    %vm3737 = vweird.f32 %v3731
    %vm3738 = vweird.f32 %v3732
    %vm3739 = vmor %vm3737, %vm3738
    %v3740 = vsel %vm3739, %v3732, %v3736
    %v3741 = vand.u32 2147483647, %v3731
    %vm3742 = vcmp.eq.f32.partialorder %v3741, 8.507059e+37
    %v3743 = vand.u32 %v3731, 2147483648
    %v3744 = vor.u32 1.1754944e-38, %v3743
    %v3745 = vsel %vm3742, %v3744, %v3740
    %v3746 = vmul.f32 1.0, %v3745
    %v3747 = vtanh.pop %v3707
    %v3748 = vxor.u32 %v3708, 2147483648
    %v3749 = vmul.f32 %v3748, 1.442695
    %v3750 = vpow.pop %v3749
    %v3751 = vadd.f32 %v3750, 1.0
    %v3752 = vrcp.pop %v3751
    %v3753 = vmul.f32 %v3751, %v3752
    %v3754 = vsub.f32 1.0, %v3753
    %v3755 = vmul.f32 %v3752, %v3754
    %v3756 = vadd.f32 %v3752, %v3755
    %vm3757 = vweird.f32 %v3751
    %vm3758 = vweird.f32 %v3752
    %vm3759 = vmor %vm3757, %vm3758
    %v3760 = vsel %vm3759, %v3752, %v3756
    %v3761 = vand.u32 2147483647, %v3751
    %vm3762 = vcmp.eq.f32.partialorder %v3761, 8.507059e+37
    %v3763 = vand.u32 %v3751, 2147483648
    %v3764 = vor.u32 1.1754944e-38, %v3763
    %v3765 = vsel %vm3762, %v3764, %v3760
    %v3766 = vmul.f32 1.0, %v3765
    %v3767 = vmul.f32 %v3746, %v3243
    %v3768 = vmul.f32 %v3727, %v3747
    %v3769 = vadd.f32 %v3767, %v3768
    %v3770 = vtanh.pop %v3769
    %v3771 = vmul.f32 %v3766, %v3770
    %vm3772 = vcmp.gt.s32.totalorder %v200, 6
    %v3773 = vsel %vm3772, 1, 0
    %3774 = vset.pattern.permute.xlu0 0
    %3775 = vperm.xlu0 %3774, %v3773
    %v3776 = vpop.permute.xlu0 %3775
    %vm3777 = vcmp.eq.s32.totalorder %v3776, 1
    %v3778 = vsel %vm3777, %v3771, %v3242
    %v3779 = vsel %vm3777, %v3769, %v3243
    %v3780 = vpack.c.bf16 %v3778, %v3778
    %3781 = vmatpush.bf16.msra.mxu0 %v538
    %3782 = vmatpush.bf16.msra.mxu0 %v537
    %3783 = vmatpush.bf16.msra.mxu0 %v536
    %3784 = vmatpush.bf16.msra.mxu0 %v535
    %3785 = vmatpush.bf16.msra.mxu0 %v534
    %3786 = vmatpush.bf16.msra.mxu0 %v533
    %3787 = vmatpush.bf16.msra.mxu0 %v532
    %3788 = vmatpush.bf16.msra.mxu0 %v531
    %3789 = vmatmul.bf16.gmra.mxu0 %v3780
    %v3790 = vpop.f32.mrf.mxu0
    %v3791 = vadd.f32 %v497, %v3790
    %v3792 = vpop.f32.mrf.mxu0
    %3793 = vdwg.mxu0
    %v3795 = vrot.slane %v3791, 1
    %v3796 = vrot.slane %v3791, 2
    %v3797 = vrot.slane %v3791, 3
    %v3798 = vrot.slane %v3791, 4
    %v3799 = vrot.slane %v3791, 5
    %v3800 = vrot.slane %v3791, 6
    %v3801 = vrot.slane %v3791, 7
    %v3802 = vperm.slane %v3791, 0
    %v3803 = vperm.slane %v3795, 0
    %v3804 = vperm.slane %v3796, 0
    %v3805 = vperm.slane %v3797, 0
    %v3806 = vperm.slane %v3798, 0
    %v3807 = vperm.slane %v3799, 0
    %v3808 = vperm.slane %v3800, 0
    %v3809 = vperm.slane %v3801, 0
    %v3818 = vadd.f32 %v141, %v3802
    %v3819 = vadd.f32 %v142, %v3803
    %v3820 = vadd.f32 %v143, %v3804
    %v3821 = vadd.f32 %v144, %v3805
    %v3822 = vadd.f32 %v145, %v3806
    %v3823 = vadd.f32 %v146, %v3807
    %v3824 = vadd.f32 %v147, %v3808
    %v3825 = vadd.f32 %v148, %v3809
    %v3826 = vtanh.pop %v3818
    %v3827 = vtanh.pop %v3819
    %v3828 = vtanh.pop %v3820
    %v3829 = vtanh.pop %v3821
    %v3830 = vtanh.pop %v3822
    %v3831 = vtanh.pop %v3823
    %v3832 = vtanh.pop %v3824
    %v3833 = vtanh.pop %v3825
    %v3834 = vmul.f32 %v3826, %v601
    %v3835 = vmul.f32 %v3827, %v601
    %v3836 = vmul.f32 %v3828, %v601
    %v3837 = vmul.f32 %v3829, %v601
    %v3838 = vmul.f32 %v3830, %v601
    %v3839 = vmul.f32 %v3831, %v601
    %v3840 = vmul.f32 %v3832, %v601
    %v3841 = vmul.f32 %v3833, %v601
    %3842 = vadd.xlane.f32.xlu0 %v3834
    %v3843 = vpop.xlane.xlu0 %3842
    %3844 = vadd.xlane.f32.xlu0 %v3835
    %v3845 = vpop.xlane.xlu0 %3844
    %3846 = vadd.xlane.f32.xlu0 %v3836
    %v3847 = vpop.xlane.xlu0 %3846
    %3848 = vadd.xlane.f32.xlu0 %v3837
    %v3849 = vpop.xlane.xlu0 %3848
    %3850 = vadd.xlane.f32.xlu0 %v3838
    %v3851 = vpop.xlane.xlu0 %3850
    %3852 = vadd.xlane.f32.xlu0 %v3839
    %v3853 = vpop.xlane.xlu0 %3852
    %3854 = vadd.xlane.f32.xlu0 %v3840
    %v3855 = vpop.xlane.xlu0 %3854
    %3856 = vadd.xlane.f32.xlu0 %v3841
    %v3857 = vpop.xlane.xlu0 %3856
    %v3858 = vadd.f32 %v3843, %v631
    %v3859 = vadd.f32 %v3845, %v631
    %v3860 = vadd.f32 %v3847, %v631
    %v3861 = vadd.f32 %v3849, %v631
    %v3862 = vadd.f32 %v3851, %v631
    %v3863 = vadd.f32 %v3853, %v631
    %v3864 = vadd.f32 %v3855, %v631
    %v3865 = vadd.f32 %v3857, %v631
    %v3874 = vperm.slane %v3858, %v650
    %v3875 = vperm.slane %v3859, %v650
    %v3876 = vperm.slane %v3860, %v650
    %v3877 = vperm.slane %v3861, %v650
    %v3878 = vperm.slane %v3862, %v650
    %v3879 = vperm.slane %v3863, %v650
    %v3880 = vperm.slane %v3864, %v650
    %v3881 = vperm.slane %v3865, %v650
    %v3882 = vsel %vm659, %v3875, %v3874
    %v3883 = vsel %vm661, %v3876, %v3882
    %v3884 = vsel %vm663, %v3877, %v3883
    %v3885 = vsel %vm665, %v3878, %v3884
    %v3886 = vsel %vm667, %v3879, %v3885
    %v3887 = vsel %vm669, %v3880, %v3886
    %v3888 = vsel %vm671, %v3881, %v3887
    %v3890 = vsel %vm674, %v3888, -inf
    %3891 = vmax.xlane.f32.xlu0 %v3890
    %v3892 = vpop.xlane.xlu0 %3891
    %v3894 = vperm.slane %v3892, 0
    %v3895 = vperm.slane %v3892, 1
    %v3896 = vperm.slane %v3892, 2
    %v3897 = vperm.slane %v3892, 3
    %v3898 = vperm.slane %v3892, 4
    %v3899 = vperm.slane %v3892, 5
    %v3900 = vperm.slane %v3892, 6
    %v3901 = vperm.slane %v3892, 7
    %v3910 = vsub.f32 %v3858, %v3894
    %v3911 = vsub.f32 %v3859, %v3895
    %v3912 = vsub.f32 %v3860, %v3896
    %v3913 = vsub.f32 %v3861, %v3897
    %v3914 = vsub.f32 %v3862, %v3898
    %v3915 = vsub.f32 %v3863, %v3899
    %v3916 = vsub.f32 %v3864, %v3900
    %v3917 = vsub.f32 %v3865, %v3901
    %v3918 = vmul.f32 %v3910, 1.442695
    %v3919 = vpow.pop %v3918
    %v3920 = vmul.f32 %v3911, 1.442695
    %v3921 = vpow.pop %v3920
    %v3922 = vmul.f32 %v3912, 1.442695
    %v3923 = vpow.pop %v3922
    %v3924 = vmul.f32 %v3913, 1.442695
    %v3925 = vpow.pop %v3924
    %v3926 = vmul.f32 %v3914, 1.442695
    %v3927 = vpow.pop %v3926
    %v3928 = vmul.f32 %v3915, 1.442695
    %v3929 = vpow.pop %v3928
    %v3930 = vmul.f32 %v3916, 1.442695
    %v3931 = vpow.pop %v3930
    %v3932 = vmul.f32 %v3917, 1.442695
    %v3933 = vpow.pop %v3932
    %3942 = vset.pattern.permute.xlu0 0
    %3943 = vperm.xlu0 %3942, %v3919
    %v3944 = vpop.permute.xlu0 %3943
    %3945 = vset.pattern.permute.xlu0 0
    %3946 = vperm.xlu0 %3945, %v3921
    %v3947 = vpop.permute.xlu0 %3946
    %3948 = vset.pattern.permute.xlu0 0
    %3949 = vperm.xlu0 %3948, %v3923
    %v3950 = vpop.permute.xlu0 %3949
    %3951 = vset.pattern.permute.xlu0 0
    %3952 = vperm.xlu0 %3951, %v3925
    %v3953 = vpop.permute.xlu0 %3952
    %3954 = vset.pattern.permute.xlu0 0
    %3955 = vperm.xlu0 %3954, %v3927
    %v3956 = vpop.permute.xlu0 %3955
    %3957 = vset.pattern.permute.xlu0 0
    %3958 = vperm.xlu0 %3957, %v3929
    %v3959 = vpop.permute.xlu0 %3958
    %3960 = vset.pattern.permute.xlu0 0
    %3961 = vperm.xlu0 %3960, %v3931
    %v3962 = vpop.permute.xlu0 %3961
    %3963 = vset.pattern.permute.xlu0 0
    %3964 = vperm.xlu0 %3963, %v3933
    %v3965 = vpop.permute.xlu0 %3964
    %v3966 = vperm.slane %v3944, %v650
    %v3967 = vperm.slane %v3947, %v650
    %v3968 = vperm.slane %v3950, %v650
    %v3969 = vperm.slane %v3953, %v650
    %v3970 = vperm.slane %v3956, %v650
    %v3971 = vperm.slane %v3959, %v650
    %v3972 = vperm.slane %v3962, %v650
    %v3973 = vperm.slane %v3965, %v650
    %v3974 = vsel %vm659, %v3967, %v3966
    %v3975 = vsel %vm661, %v3968, %v3974
    %v3976 = vsel %vm663, %v3969, %v3975
    %v3977 = vsel %vm665, %v3970, %v3976
    %v3978 = vsel %vm667, %v3971, %v3977
    %v3979 = vsel %vm669, %v3972, %v3978
    %v3980 = vsel %vm671, %v3973, %v3979
    %v3982 = vsel %vm674, %v3980, 0.0
    %3983 = vadd.xlane.f32.xlu0 %v3982
    %v3984 = vpop.xlane.xlu0 %3983
    %v3985 = vrcp.pop %v3984
    %v3987 = vperm.slane %v3985, 0
    %v3988 = vperm.slane %v3985, 1
    %v3989 = vperm.slane %v3985, 2
    %v3990 = vperm.slane %v3985, 3
    %v3991 = vperm.slane %v3985, 4
    %v3992 = vperm.slane %v3985, 5
    %v3993 = vperm.slane %v3985, 6
    %v3994 = vperm.slane %v3985, 7
    %v4003 = vmul.f32 %v3919, %v3987
    %v4004 = vmul.f32 %v3921, %v3988
    %v4005 = vmul.f32 %v3923, %v3989
    %v4006 = vmul.f32 %v3925, %v3990
    %v4007 = vmul.f32 %v3927, %v3991
    %v4008 = vmul.f32 %v3929, %v3992
    %v4009 = vmul.f32 %v3931, %v3993
    %v4010 = vmul.f32 %v3933, %v3994
    %4012 = vset.pattern.permute.xlu0 0
    %4013 = vperm.xlu0 %4012, %v4003
    %v4014 = vpop.permute.xlu0 %4013
    %4017 = vset.pattern.permute.xlu0 0
    %4018 = vperm.xlu0 %4017, %v4004
    %v4019 = vpop.permute.xlu0 %4018
    %4022 = vset.pattern.permute.xlu0 0
    %4023 = vperm.xlu0 %4022, %v4005
    %v4024 = vpop.permute.xlu0 %4023
    %4027 = vset.pattern.permute.xlu0 0
    %4028 = vperm.xlu0 %4027, %v4006
    %v4029 = vpop.permute.xlu0 %4028
    %4032 = vset.pattern.permute.xlu0 0
    %4033 = vperm.xlu0 %4032, %v4007
    %v4034 = vpop.permute.xlu0 %4033
    %4037 = vset.pattern.permute.xlu0 0
    %4038 = vperm.xlu0 %4037, %v4008
    %v4039 = vpop.permute.xlu0 %4038
    %4042 = vset.pattern.permute.xlu0 0
    %4043 = vperm.xlu0 %4042, %v4009
    %v4044 = vpop.permute.xlu0 %4043
    %4047 = vset.pattern.permute.xlu0 0
    %4048 = vperm.xlu0 %4047, %v4010
    %v4049 = vpop.permute.xlu0 %4048
    %v4051 = vmul.f32 %v4014, %v133
    %v4052 = vmul.f32 %v4019, %v134
    %v4053 = vmul.f32 %v4024, %v135
    %v4054 = vmul.f32 %v4029, %v136
    %v4055 = vmul.f32 %v4034, %v137
    %v4056 = vmul.f32 %v4039, %v138
    %v4057 = vmul.f32 %v4044, %v139
    %v4058 = vmul.f32 %v4049, %v140
    %v4059 = vrot.slane %v4051, 4
    %v4060 = vadd.f32 %v4051, %v4059
    %v4061 = vrot.slane %v4060, 2
    %v4062 = vadd.f32 %v4060, %v4061
    %v4063 = vrot.slane %v4062, 1
    %v4064 = vadd.f32 %v4062, %v4063
    %v4065 = vrot.slane %v4052, 4
    %v4066 = vadd.f32 %v4052, %v4065
    %v4067 = vrot.slane %v4066, 2
    %v4068 = vadd.f32 %v4066, %v4067
    %v4069 = vrot.slane %v4068, 1
    %v4070 = vadd.f32 %v4068, %v4069
    %v4071 = vrot.slane %v4053, 4
    %v4072 = vadd.f32 %v4053, %v4071
    %v4073 = vrot.slane %v4072, 2
    %v4074 = vadd.f32 %v4072, %v4073
    %v4075 = vrot.slane %v4074, 1
    %v4076 = vadd.f32 %v4074, %v4075
    %v4077 = vrot.slane %v4054, 4
    %v4078 = vadd.f32 %v4054, %v4077
    %v4079 = vrot.slane %v4078, 2
    %v4080 = vadd.f32 %v4078, %v4079
    %v4081 = vrot.slane %v4080, 1
    %v4082 = vadd.f32 %v4080, %v4081
    %v4083 = vrot.slane %v4055, 4
    %v4084 = vadd.f32 %v4055, %v4083
    %v4085 = vrot.slane %v4084, 2
    %v4086 = vadd.f32 %v4084, %v4085
    %v4087 = vrot.slane %v4086, 1
    %v4088 = vadd.f32 %v4086, %v4087
    %v4089 = vrot.slane %v4056, 4
    %v4090 = vadd.f32 %v4056, %v4089
    %v4091 = vrot.slane %v4090, 2
    %v4092 = vadd.f32 %v4090, %v4091
    %v4093 = vrot.slane %v4092, 1
    %v4094 = vadd.f32 %v4092, %v4093
    %v4095 = vrot.slane %v4057, 4
    %v4096 = vadd.f32 %v4057, %v4095
    %v4097 = vrot.slane %v4096, 2
    %v4098 = vadd.f32 %v4096, %v4097
    %v4099 = vrot.slane %v4098, 1
    %v4100 = vadd.f32 %v4098, %v4099
    %v4101 = vrot.slane %v4058, 4
    %v4102 = vadd.f32 %v4058, %v4101
    %v4103 = vrot.slane %v4102, 2
    %v4104 = vadd.f32 %v4102, %v4103
    %v4105 = vrot.slane %v4104, 1
    %v4106 = vadd.f32 %v4104, %v4105
    %v4108 = vrot.slane %v3778, 1
    %v4109 = vrot.slane %v3778, 2
    %v4110 = vrot.slane %v3778, 3
    %v4111 = vrot.slane %v3778, 4
    %v4112 = vrot.slane %v3778, 5
    %v4113 = vrot.slane %v3778, 6
    %v4114 = vrot.slane %v3778, 7
    %v4123 = vadd.f32 %v4064, %v3778
    %v4124 = vadd.f32 %v4070, %v4108
    %v4125 = vadd.f32 %v4076, %v4109
    %v4126 = vadd.f32 %v4082, %v4110
    %v4127 = vadd.f32 %v4088, %v4111
    %v4128 = vadd.f32 %v4094, %v4112
    %v4129 = vadd.f32 %v4100, %v4113
    %v4130 = vadd.f32 %v4106, %v4114
    %v4131 = vcvt.s32.f32 %v3773
    %4133 = vset.pattern.permute.xlu0 0
    %4134 = vperm.xlu0 %4133, %v4131
    %v4135 = vpop.permute.xlu0 %4134
    %v4136 = vrot.slane %v4135, 1
    %v4137 = vrot.slane %v4135, 2
    %v4138 = vrot.slane %v4135, 3
    %v4139 = vrot.slane %v4135, 4
    %v4140 = vrot.slane %v4135, 5
    %v4141 = vrot.slane %v4135, 6
    %v4142 = vrot.slane %v4135, 7
    %v4151 = vmul.f32 %v4123, %v4135
    %v4152 = vmul.f32 %v4124, %v4136
    %v4153 = vmul.f32 %v4125, %v4137
    %v4154 = vmul.f32 %v4126, %v4138
    %v4155 = vmul.f32 %v4127, %v4139
    %v4156 = vmul.f32 %v4128, %v4140
    %v4157 = vmul.f32 %v4129, %v4141
    %v4158 = vmul.f32 %v4130, %v4142
    %v4167 = vrot.slane %v4152, 7
    %v4168 = vsel %vm659, %v4167, %v4151
    %v4169 = vrot.slane %v4153, 6
    %v4170 = vsel %vm661, %v4169, %v4168
    %v4171 = vrot.slane %v4154, 5
    %v4172 = vsel %vm663, %v4171, %v4170
    %v4173 = vrot.slane %v4155, 4
    %v4174 = vsel %vm665, %v4173, %v4172
    %v4175 = vrot.slane %v4156, 3
    %v4176 = vsel %vm667, %v4175, %v4174
    %v4177 = vrot.slane %v4157, 2
    %v4178 = vsel %vm669, %v4177, %v4176
    %v4179 = vrot.slane %v4158, 1
    %v4180 = vsel %vm671, %v4179, %v4178
    %s4182 = scalar_lea.vmem [#allocation14], 48
    %4183 = vst [vmem:[%s4182] sm:$0xff] %v4180
    %s4184 = scalar_lea.vmem [#allocation3], 224
    %v4185 = vld [vmem:[%s4184] sm:$0xff]
    %v4186 = vld [vmem:[%s4184 + $0x8] sm:$0xff]
    %v4187 = vld [vmem:[%s4184 + $0x10] sm:$0xff]
    %v4188 = vld [vmem:[%s4184 + $0x18] sm:$0xff]
    %4189 = vmatpush.bf16.msra.mxu0 %v332
    %4190 = vmatpush.bf16.msra.mxu0 %v328
    %4191 = vmatpush.bf16.msra.mxu0 %v324
    %4192 = vmatpush.bf16.msra.mxu0 %v320
    %4193 = vmatpush.bf16.msra.mxu0 %v316
    %4194 = vmatpush.bf16.msra.mxu0 %v312
    %4195 = vmatpush.bf16.msra.mxu0 %v308
    %4196 = vmatpush.bf16.msra.mxu0 %v304
    %4197 = vmatmul.bf16.gmra.mxu0 %v3780
    %v4198 = vpop.f32.mrf.mxu0
    %v4199 = vadd.f32 0.0, %v4198
    %v4200 = vpop.f32.mrf.mxu0
    %4201 = vdwg.mxu0
    %4202 = vmatpush.bf16.msra.mxu0 %v333
    %4203 = vmatpush.bf16.msra.mxu0 %v329
    %4204 = vmatpush.bf16.msra.mxu0 %v325
    %4205 = vmatpush.bf16.msra.mxu0 %v321
    %4206 = vmatpush.bf16.msra.mxu0 %v317
    %4207 = vmatpush.bf16.msra.mxu0 %v313
    %4208 = vmatpush.bf16.msra.mxu0 %v309
    %4209 = vmatpush.bf16.msra.mxu0 %v305
    %4210 = vmatmul.bf16.gmra.mxu0 %v3780
    %v4211 = vpop.f32.mrf.mxu0
    %v4212 = vadd.f32 0.0, %v4211
    %v4213 = vpop.f32.mrf.mxu0
    %4214 = vdwg.mxu0
    %4215 = vmatpush.bf16.msra.mxu0 %v334
    %4216 = vmatpush.bf16.msra.mxu0 %v330
    %4217 = vmatpush.bf16.msra.mxu0 %v326
    %4218 = vmatpush.bf16.msra.mxu0 %v322
    %4219 = vmatpush.bf16.msra.mxu0 %v318
    %4220 = vmatpush.bf16.msra.mxu0 %v314
    %4221 = vmatpush.bf16.msra.mxu0 %v310
    %4222 = vmatpush.bf16.msra.mxu0 %v306
    %4223 = vmatmul.bf16.gmra.mxu0 %v3780
    %v4224 = vpop.f32.mrf.mxu0
    %v4225 = vadd.f32 0.0, %v4224
    %v4226 = vpop.f32.mrf.mxu0
    %4227 = vdwg.mxu0
    %4228 = vmatpush.bf16.msra.mxu0 %v335
    %4229 = vmatpush.bf16.msra.mxu0 %v331
    %4230 = vmatpush.bf16.msra.mxu0 %v327
    %4231 = vmatpush.bf16.msra.mxu0 %v323
    %4232 = vmatpush.bf16.msra.mxu0 %v319
    %4233 = vmatpush.bf16.msra.mxu0 %v315
    %4234 = vmatpush.bf16.msra.mxu0 %v311
    %4235 = vmatpush.bf16.msra.mxu0 %v307
    %4236 = vmatmul.bf16.gmra.mxu0 %v3780
    %v4237 = vpop.f32.mrf.mxu0
    %v4238 = vadd.f32 0.0, %v4237
    %v4239 = vpop.f32.mrf.mxu0
    %4240 = vdwg.mxu0
    %v4241 = vadd.f32 %v4185, %v4199
    %v4242 = vadd.f32 %v4186, %v4212
    %v4243 = vadd.f32 %v4187, %v4225
    %v4244 = vadd.f32 %v4188, %v4238
    %v4245 = vxor.u32 %v4241, 2147483648
    %v4246 = vmul.f32 %v4245, 1.442695
    %v4247 = vpow.pop %v4246
    %v4248 = vadd.f32 %v4247, 1.0
    %v4249 = vrcp.pop %v4248
    %v4250 = vmul.f32 %v4248, %v4249
    %v4251 = vsub.f32 1.0, %v4250
    %v4252 = vmul.f32 %v4249, %v4251
    %v4253 = vadd.f32 %v4249, %v4252
    %vm4254 = vweird.f32 %v4248
    %vm4255 = vweird.f32 %v4249
    %vm4256 = vmor %vm4254, %vm4255
    %v4257 = vsel %vm4256, %v4249, %v4253
    %v4258 = vand.u32 2147483647, %v4248
    %vm4259 = vcmp.eq.f32.partialorder %v4258, 8.507059e+37
    %v4260 = vand.u32 %v4248, 2147483648
    %v4261 = vor.u32 1.1754944e-38, %v4260
    %v4262 = vsel %vm4259, %v4261, %v4257
    %v4263 = vmul.f32 1.0, %v4262
    %v4264 = vxor.u32 %v4242, 2147483648
    %v4265 = vmul.f32 %v4264, 1.442695
    %v4266 = vpow.pop %v4265
    %v4267 = vadd.f32 %v4266, 1.0
    %v4268 = vrcp.pop %v4267
    %v4269 = vmul.f32 %v4267, %v4268
    %v4270 = vsub.f32 1.0, %v4269
    %v4271 = vmul.f32 %v4268, %v4270
    %v4272 = vadd.f32 %v4268, %v4271
    %vm4273 = vweird.f32 %v4267
    %vm4274 = vweird.f32 %v4268
    %vm4275 = vmor %vm4273, %vm4274
    %v4276 = vsel %vm4275, %v4268, %v4272
    %v4277 = vand.u32 2147483647, %v4267
    %vm4278 = vcmp.eq.f32.partialorder %v4277, 8.507059e+37
    %v4279 = vand.u32 %v4267, 2147483648
    %v4280 = vor.u32 1.1754944e-38, %v4279
    %v4281 = vsel %vm4278, %v4280, %v4276
    %v4282 = vmul.f32 1.0, %v4281
    %v4283 = vtanh.pop %v4243
    %v4284 = vxor.u32 %v4244, 2147483648
    %v4285 = vmul.f32 %v4284, 1.442695
    %v4286 = vpow.pop %v4285
    %v4287 = vadd.f32 %v4286, 1.0
    %v4288 = vrcp.pop %v4287
    %v4289 = vmul.f32 %v4287, %v4288
    %v4290 = vsub.f32 1.0, %v4289
    %v4291 = vmul.f32 %v4288, %v4290
    %v4292 = vadd.f32 %v4288, %v4291
    %vm4293 = vweird.f32 %v4287
    %vm4294 = vweird.f32 %v4288
    %vm4295 = vmor %vm4293, %vm4294
    %v4296 = vsel %vm4295, %v4288, %v4292
    %v4297 = vand.u32 2147483647, %v4287
    %vm4298 = vcmp.eq.f32.partialorder %v4297, 8.507059e+37
    %v4299 = vand.u32 %v4287, 2147483648
    %v4300 = vor.u32 1.1754944e-38, %v4299
    %v4301 = vsel %vm4298, %v4300, %v4296
    %v4302 = vmul.f32 1.0, %v4301
    %v4303 = vmul.f32 %v4282, %v3779
    %v4304 = vmul.f32 %v4263, %v4283
    %v4305 = vadd.f32 %v4303, %v4304
    %v4306 = vtanh.pop %v4305
    %v4307 = vmul.f32 %v4302, %v4306
    %vm4308 = vcmp.gt.s32.totalorder %v200, 7
    %v4309 = vsel %vm4308, 1, 0
    %4310 = vset.pattern.permute.xlu0 0
    %4311 = vperm.xlu0 %4310, %v4309
    %v4312 = vpop.permute.xlu0 %4311
    %vm4313 = vcmp.eq.s32.totalorder %v4312, 1
    %v4314 = vsel %vm4313, %v4307, %v3778
    %v4315 = vpack.c.bf16 %v4314, %v4314
    %4316 = vmatpush.bf16.msra.mxu0 %v538
    %4317 = vmatpush.bf16.msra.mxu0 %v537
    %4318 = vmatpush.bf16.msra.mxu0 %v536
    %4319 = vmatpush.bf16.msra.mxu0 %v535
    %4320 = vmatpush.bf16.msra.mxu0 %v534
    %4321 = vmatpush.bf16.msra.mxu0 %v533
    %4322 = vmatpush.bf16.msra.mxu0 %v532
    %4323 = vmatpush.bf16.msra.mxu0 %v531
    %4324 = vmatmul.bf16.gmra.mxu0 %v4315
    %v4325 = vpop.f32.mrf.mxu0
    %v4326 = vadd.f32 %v497, %v4325
    %v4327 = vpop.f32.mrf.mxu0
    %4328 = vdwg.mxu0
    %v4330 = vrot.slane %v4326, 1
    %v4331 = vrot.slane %v4326, 2
    %v4332 = vrot.slane %v4326, 3
    %v4333 = vrot.slane %v4326, 4
    %v4334 = vrot.slane %v4326, 5
    %v4335 = vrot.slane %v4326, 6
    %v4336 = vrot.slane %v4326, 7
    %v4337 = vperm.slane %v4326, 0
    %v4338 = vperm.slane %v4330, 0
    %v4339 = vperm.slane %v4331, 0
    %v4340 = vperm.slane %v4332, 0
    %v4341 = vperm.slane %v4333, 0
    %v4342 = vperm.slane %v4334, 0
    %v4343 = vperm.slane %v4335, 0
    %v4344 = vperm.slane %v4336, 0
    %v4353 = vadd.f32 %v141, %v4337
    %v4354 = vadd.f32 %v142, %v4338
    %v4355 = vadd.f32 %v143, %v4339
    %v4356 = vadd.f32 %v144, %v4340
    %v4357 = vadd.f32 %v145, %v4341
    %v4358 = vadd.f32 %v146, %v4342
    %v4359 = vadd.f32 %v147, %v4343
    %v4360 = vadd.f32 %v148, %v4344
    %v4361 = vtanh.pop %v4353
    %v4362 = vtanh.pop %v4354
    %v4363 = vtanh.pop %v4355
    %v4364 = vtanh.pop %v4356
    %v4365 = vtanh.pop %v4357
    %v4366 = vtanh.pop %v4358
    %v4367 = vtanh.pop %v4359
    %v4368 = vtanh.pop %v4360
    %v4369 = vmul.f32 %v4361, %v601
    %v4370 = vmul.f32 %v4362, %v601
    %v4371 = vmul.f32 %v4363, %v601
    %v4372 = vmul.f32 %v4364, %v601
    %v4373 = vmul.f32 %v4365, %v601
    %v4374 = vmul.f32 %v4366, %v601
    %v4375 = vmul.f32 %v4367, %v601
    %v4376 = vmul.f32 %v4368, %v601
    %4377 = vadd.xlane.f32.xlu0 %v4369
    %v4378 = vpop.xlane.xlu0 %4377
    %4379 = vadd.xlane.f32.xlu0 %v4370
    %v4380 = vpop.xlane.xlu0 %4379
    %4381 = vadd.xlane.f32.xlu0 %v4371
    %v4382 = vpop.xlane.xlu0 %4381
    %4383 = vadd.xlane.f32.xlu0 %v4372
    %v4384 = vpop.xlane.xlu0 %4383
    %4385 = vadd.xlane.f32.xlu0 %v4373
    %v4386 = vpop.xlane.xlu0 %4385
    %4387 = vadd.xlane.f32.xlu0 %v4374
    %v4388 = vpop.xlane.xlu0 %4387
    %4389 = vadd.xlane.f32.xlu0 %v4375
    %v4390 = vpop.xlane.xlu0 %4389
    %4391 = vadd.xlane.f32.xlu0 %v4376
    %v4392 = vpop.xlane.xlu0 %4391
    %v4393 = vadd.f32 %v4378, %v631
    %v4394 = vadd.f32 %v4380, %v631
    %v4395 = vadd.f32 %v4382, %v631
    %v4396 = vadd.f32 %v4384, %v631
    %v4397 = vadd.f32 %v4386, %v631
    %v4398 = vadd.f32 %v4388, %v631
    %v4399 = vadd.f32 %v4390, %v631
    %v4400 = vadd.f32 %v4392, %v631
    %v4409 = vperm.slane %v4393, %v650
    %v4410 = vperm.slane %v4394, %v650
    %v4411 = vperm.slane %v4395, %v650
    %v4412 = vperm.slane %v4396, %v650
    %v4413 = vperm.slane %v4397, %v650
    %v4414 = vperm.slane %v4398, %v650
    %v4415 = vperm.slane %v4399, %v650
    %v4416 = vperm.slane %v4400, %v650
    %v4417 = vsel %vm659, %v4410, %v4409
    %v4418 = vsel %vm661, %v4411, %v4417
    %v4419 = vsel %vm663, %v4412, %v4418
    %v4420 = vsel %vm665, %v4413, %v4419
    %v4421 = vsel %vm667, %v4414, %v4420
    %v4422 = vsel %vm669, %v4415, %v4421
    %v4423 = vsel %vm671, %v4416, %v4422
    %v4425 = vsel %vm674, %v4423, -inf
    %4426 = vmax.xlane.f32.xlu0 %v4425
    %v4427 = vpop.xlane.xlu0 %4426
    %v4429 = vperm.slane %v4427, 0
    %v4430 = vperm.slane %v4427, 1
    %v4431 = vperm.slane %v4427, 2
    %v4432 = vperm.slane %v4427, 3
    %v4433 = vperm.slane %v4427, 4
    %v4434 = vperm.slane %v4427, 5
    %v4435 = vperm.slane %v4427, 6
    %v4436 = vperm.slane %v4427, 7
    %v4445 = vsub.f32 %v4393, %v4429
    %v4446 = vsub.f32 %v4394, %v4430
    %v4447 = vsub.f32 %v4395, %v4431
    %v4448 = vsub.f32 %v4396, %v4432
    %v4449 = vsub.f32 %v4397, %v4433
    %v4450 = vsub.f32 %v4398, %v4434
    %v4451 = vsub.f32 %v4399, %v4435
    %v4452 = vsub.f32 %v4400, %v4436
    %v4453 = vmul.f32 %v4445, 1.442695
    %v4454 = vpow.pop %v4453
    %v4455 = vmul.f32 %v4446, 1.442695
    %v4456 = vpow.pop %v4455
    %v4457 = vmul.f32 %v4447, 1.442695
    %v4458 = vpow.pop %v4457
    %v4459 = vmul.f32 %v4448, 1.442695
    %v4460 = vpow.pop %v4459
    %v4461 = vmul.f32 %v4449, 1.442695
    %v4462 = vpow.pop %v4461
    %v4463 = vmul.f32 %v4450, 1.442695
    %v4464 = vpow.pop %v4463
    %v4465 = vmul.f32 %v4451, 1.442695
    %v4466 = vpow.pop %v4465
    %v4467 = vmul.f32 %v4452, 1.442695
    %v4468 = vpow.pop %v4467
    %4477 = vset.pattern.permute.xlu0 0
    %4478 = vperm.xlu0 %4477, %v4454
    %v4479 = vpop.permute.xlu0 %4478
    %4480 = vset.pattern.permute.xlu0 0
    %4481 = vperm.xlu0 %4480, %v4456
    %v4482 = vpop.permute.xlu0 %4481
    %4483 = vset.pattern.permute.xlu0 0
    %4484 = vperm.xlu0 %4483, %v4458
    %v4485 = vpop.permute.xlu0 %4484
    %4486 = vset.pattern.permute.xlu0 0
    %4487 = vperm.xlu0 %4486, %v4460
    %v4488 = vpop.permute.xlu0 %4487
    %4489 = vset.pattern.permute.xlu0 0
    %4490 = vperm.xlu0 %4489, %v4462
    %v4491 = vpop.permute.xlu0 %4490
    %4492 = vset.pattern.permute.xlu0 0
    %4493 = vperm.xlu0 %4492, %v4464
    %v4494 = vpop.permute.xlu0 %4493
    %4495 = vset.pattern.permute.xlu0 0
    %4496 = vperm.xlu0 %4495, %v4466
    %v4497 = vpop.permute.xlu0 %4496
    %4498 = vset.pattern.permute.xlu0 0
    %4499 = vperm.xlu0 %4498, %v4468
    %v4500 = vpop.permute.xlu0 %4499
    %v4501 = vperm.slane %v4479, %v650
    %v4502 = vperm.slane %v4482, %v650
    %v4503 = vperm.slane %v4485, %v650
    %v4504 = vperm.slane %v4488, %v650
    %v4505 = vperm.slane %v4491, %v650
    %v4506 = vperm.slane %v4494, %v650
    %v4507 = vperm.slane %v4497, %v650
    %v4508 = vperm.slane %v4500, %v650
    %v4509 = vsel %vm659, %v4502, %v4501
    %v4510 = vsel %vm661, %v4503, %v4509
    %v4511 = vsel %vm663, %v4504, %v4510
    %v4512 = vsel %vm665, %v4505, %v4511
    %v4513 = vsel %vm667, %v4506, %v4512
    %v4514 = vsel %vm669, %v4507, %v4513
    %v4515 = vsel %vm671, %v4508, %v4514
    %v4517 = vsel %vm674, %v4515, 0.0
    %4518 = vadd.xlane.f32.xlu0 %v4517
    %v4519 = vpop.xlane.xlu0 %4518
    %v4520 = vrcp.pop %v4519
    %v4522 = vperm.slane %v4520, 0
    %v4523 = vperm.slane %v4520, 1
    %v4524 = vperm.slane %v4520, 2
    %v4525 = vperm.slane %v4520, 3
    %v4526 = vperm.slane %v4520, 4
    %v4527 = vperm.slane %v4520, 5
    %v4528 = vperm.slane %v4520, 6
    %v4529 = vperm.slane %v4520, 7
    %v4538 = vmul.f32 %v4454, %v4522
    %v4539 = vmul.f32 %v4456, %v4523
    %v4540 = vmul.f32 %v4458, %v4524
    %v4541 = vmul.f32 %v4460, %v4525
    %v4542 = vmul.f32 %v4462, %v4526
    %v4543 = vmul.f32 %v4464, %v4527
    %v4544 = vmul.f32 %v4466, %v4528
    %v4545 = vmul.f32 %v4468, %v4529
    %4547 = vset.pattern.permute.xlu0 0
    %4548 = vperm.xlu0 %4547, %v4538
    %v4549 = vpop.permute.xlu0 %4548
    %4552 = vset.pattern.permute.xlu0 0
    %4553 = vperm.xlu0 %4552, %v4539
    %v4554 = vpop.permute.xlu0 %4553
    %4557 = vset.pattern.permute.xlu0 0
    %4558 = vperm.xlu0 %4557, %v4540
    %v4559 = vpop.permute.xlu0 %4558
    %4562 = vset.pattern.permute.xlu0 0
    %4563 = vperm.xlu0 %4562, %v4541
    %v4564 = vpop.permute.xlu0 %4563
    %4567 = vset.pattern.permute.xlu0 0
    %4568 = vperm.xlu0 %4567, %v4542
    %v4569 = vpop.permute.xlu0 %4568
    %4572 = vset.pattern.permute.xlu0 0
    %4573 = vperm.xlu0 %4572, %v4543
    %v4574 = vpop.permute.xlu0 %4573
    %4577 = vset.pattern.permute.xlu0 0
    %4578 = vperm.xlu0 %4577, %v4544
    %v4579 = vpop.permute.xlu0 %4578
    %4582 = vset.pattern.permute.xlu0 0
    %4583 = vperm.xlu0 %4582, %v4545
    %v4584 = vpop.permute.xlu0 %4583
    %v4586 = vmul.f32 %v4549, %v133
    %v4587 = vmul.f32 %v4554, %v134
    %v4588 = vmul.f32 %v4559, %v135
    %v4589 = vmul.f32 %v4564, %v136
    %v4590 = vmul.f32 %v4569, %v137
    %v4591 = vmul.f32 %v4574, %v138
    %v4592 = vmul.f32 %v4579, %v139
    %v4593 = vmul.f32 %v4584, %v140
    %v4594 = vrot.slane %v4586, 4
    %v4595 = vadd.f32 %v4586, %v4594
    %v4596 = vrot.slane %v4595, 2
    %v4597 = vadd.f32 %v4595, %v4596
    %v4598 = vrot.slane %v4597, 1
    %v4599 = vadd.f32 %v4597, %v4598
    %v4600 = vrot.slane %v4587, 4
    %v4601 = vadd.f32 %v4587, %v4600
    %v4602 = vrot.slane %v4601, 2
    %v4603 = vadd.f32 %v4601, %v4602
    %v4604 = vrot.slane %v4603, 1
    %v4605 = vadd.f32 %v4603, %v4604
    %v4606 = vrot.slane %v4588, 4
    %v4607 = vadd.f32 %v4588, %v4606
    %v4608 = vrot.slane %v4607, 2
    %v4609 = vadd.f32 %v4607, %v4608
    %v4610 = vrot.slane %v4609, 1
    %v4611 = vadd.f32 %v4609, %v4610
    %v4612 = vrot.slane %v4589, 4
    %v4613 = vadd.f32 %v4589, %v4612
    %v4614 = vrot.slane %v4613, 2
    %v4615 = vadd.f32 %v4613, %v4614
    %v4616 = vrot.slane %v4615, 1
    %v4617 = vadd.f32 %v4615, %v4616
    %v4618 = vrot.slane %v4590, 4
    %v4619 = vadd.f32 %v4590, %v4618
    %v4620 = vrot.slane %v4619, 2
    %v4621 = vadd.f32 %v4619, %v4620
    %v4622 = vrot.slane %v4621, 1
    %v4623 = vadd.f32 %v4621, %v4622
    %v4624 = vrot.slane %v4591, 4
    %v4625 = vadd.f32 %v4591, %v4624
    %v4626 = vrot.slane %v4625, 2
    %v4627 = vadd.f32 %v4625, %v4626
    %v4628 = vrot.slane %v4627, 1
    %v4629 = vadd.f32 %v4627, %v4628
    %v4630 = vrot.slane %v4592, 4
    %v4631 = vadd.f32 %v4592, %v4630
    %v4632 = vrot.slane %v4631, 2
    %v4633 = vadd.f32 %v4631, %v4632
    %v4634 = vrot.slane %v4633, 1
    %v4635 = vadd.f32 %v4633, %v4634
    %v4636 = vrot.slane %v4593, 4
    %v4637 = vadd.f32 %v4593, %v4636
    %v4638 = vrot.slane %v4637, 2
    %v4639 = vadd.f32 %v4637, %v4638
    %v4640 = vrot.slane %v4639, 1
    %v4641 = vadd.f32 %v4639, %v4640
    %v4643 = vrot.slane %v4314, 1
    %v4644 = vrot.slane %v4314, 2
    %v4645 = vrot.slane %v4314, 3
    %v4646 = vrot.slane %v4314, 4
    %v4647 = vrot.slane %v4314, 5
    %v4648 = vrot.slane %v4314, 6
    %v4649 = vrot.slane %v4314, 7
    %v4658 = vadd.f32 %v4599, %v4314
    %v4659 = vadd.f32 %v4605, %v4643
    %v4660 = vadd.f32 %v4611, %v4644
    %v4661 = vadd.f32 %v4617, %v4645
    %v4662 = vadd.f32 %v4623, %v4646
    %v4663 = vadd.f32 %v4629, %v4647
    %v4664 = vadd.f32 %v4635, %v4648
    %v4665 = vadd.f32 %v4641, %v4649
    %v4666 = vcvt.s32.f32 %v4309
    %4668 = vset.pattern.permute.xlu0 0
    %4669 = vperm.xlu0 %4668, %v4666
    %v4670 = vpop.permute.xlu0 %4669
    %v4671 = vrot.slane %v4670, 1
    %v4672 = vrot.slane %v4670, 2
    %v4673 = vrot.slane %v4670, 3
    %v4674 = vrot.slane %v4670, 4
    %v4675 = vrot.slane %v4670, 5
    %v4676 = vrot.slane %v4670, 6
    %v4677 = vrot.slane %v4670, 7
    %v4686 = vmul.f32 %v4658, %v4670
    %v4687 = vmul.f32 %v4659, %v4671
    %v4688 = vmul.f32 %v4660, %v4672
    %v4689 = vmul.f32 %v4661, %v4673
    %v4690 = vmul.f32 %v4662, %v4674
    %v4691 = vmul.f32 %v4663, %v4675
    %v4692 = vmul.f32 %v4664, %v4676
    %v4693 = vmul.f32 %v4665, %v4677
    %v4702 = vrot.slane %v4687, 7
    %v4703 = vsel %vm659, %v4702, %v4686
    %v4704 = vrot.slane %v4688, 6
    %v4705 = vsel %vm661, %v4704, %v4703
    %v4706 = vrot.slane %v4689, 5
    %v4707 = vsel %vm663, %v4706, %v4705
    %v4708 = vrot.slane %v4690, 4
    %v4709 = vsel %vm665, %v4708, %v4707
    %v4710 = vrot.slane %v4691, 3
    %v4711 = vsel %vm667, %v4710, %v4709
    %v4712 = vrot.slane %v4692, 2
    %v4713 = vsel %vm669, %v4712, %v4711
    %v4714 = vrot.slane %v4693, 1
    %v4715 = vsel %vm671, %v4714, %v4713
    %s4717 = scalar_lea.vmem [#allocation14], 56
    %4718 = vst [vmem:[%s4717] sm:$0xff] %v4715
    // Predicated region
    $region70: #{tpu_custom_call.1} parent=1 // pred_check
      _
    $region71: #{tpu_custom_call.1} parent=1 // pred_check_branch
      %4720 = sbr.rel (0) target = $region73
    $region72: #{tpu_custom_call.1} parent=1 // pred_region
      %4722 = vsyncadd [#allocation5], 0
      %s4723 = sshll.u32 [#allocation14], 4
      %s4724 = int_to_ptr.vmem [resolvable:$true] %s4723
      %s4725 = sshll.u32 %s11, 4
      %s4726 = int_to_ptr.hbm [resolvable:$true] %s4725
      %4731 = dma.vmem_to_hbm [thread:$0]  %s4724, 1024, %s4726, [#allocation5], 128, 128, 8
    $region73: #{tpu_custom_call.1} parent=1 // pred_fallthru
      _
    // Predicated region
    $region74: #{tpu_custom_call.1} parent=1 // pred_check
      _
    $region75: #{tpu_custom_call.1} parent=1 // pred_check_branch
      %4733 = sbr.rel (0) target = $region77
    $region76: #{tpu_custom_call.1} parent=1 // pred_region
      %4735 = dma.done [#allocation5], 1024
    $region77: #{tpu_custom_call.1} parent=1 // pred_fallthru
      _
    %4736 = vsyncpa [#allocation4], 1
    %4737 = vsyncpa [#allocation7], 1
    %4738 = vsyncpa [#allocation10], 1
    %4739 = vsyncpa [#allocation13], 1
    %4740 = vsyncpa [#allocation5], 1

</llo_original>
